<compile_context>
chip_gen: v6e
topology: v6e:2x2x1
jax: 0.10.0
libtpu: 0.0.40
codegen_flags: <defaults>
</compile_context>

<pallas_src>
import jax
import jax.numpy as jnp
from jax import lax
from jax.experimental import pallas as pl
from jax.experimental.pallas import tpu as pltpu

NEG_INF = -1e30


# --------------------------------------------------------------------------
# in-kernel helpers (f32 — v5e VPU/EUP have no bf16)
# --------------------------------------------------------------------------
def _layer_norm(v, gamma, beta, eps=1e-5):
    mu = jnp.mean(v, axis=-1, keepdims=True)
    var = jnp.mean((v - mu) ** 2, axis=-1, keepdims=True)
    return (v - mu) * lax.rsqrt(var + eps) * gamma + beta


def _softmax(s):
    m = jnp.max(s, axis=-1, keepdims=True)
    e = jnp.exp(s - m)
    return e * pl.reciprocal(jnp.sum(e, axis=-1, keepdims=True), approx=True)


# --------------------------------------------------------------------------
# Pallas kernel: one (batch, query-tile) pair per grid step
# --------------------------------------------------------------------------
def decoder_block_kernel(
    xq_ref, xf_ref, enc_ref,
    m_wq, m_bq, m_wk, m_bk, m_wv, m_bv, m_wout,
    c_wq, c_bq, c_wk, c_bk, c_wv, c_bv, c_wout,
    f_w1, f_b1, f_w2, vecs,
    out_ref):
    f32 = jnp.float32
    mm = m_wq.dtype                       # bf16 MXU operands, f32 accumulation
    xq = xq_ref[0]                        # (tq, D) f32  — query tile
    xf = xf_ref[0]                        # (T,  D) f32  — all self-attn keys/values
    enc = enc_ref[0]                      # (S,  D) bf16 — cast in wrapper
    tq, D = xq.shape
    T = xf.shape[0]
    qi = pl.program_id(1)

    # causal mask for this query tile (built once per grid step, not per head)
    row = qi * tq + lax.broadcasted_iota(jnp.int32, (tq, T), 0)
    col = lax.broadcasted_iota(jnp.int32, (tq, T), 1)
    causal = (col > row)[None]            # (1, tq, T) — broadcasts over heads

    def proj(act_h, w_ref, b_ref):
        # act_h (H, M, D) bf16 ; w (H, D, F) bf16 ; b (H, 1, F) f32 -> (H, M, F) f32
        y = lax.dot_general(act_h, w_ref[...], (((2,), (1,)), ((0,), (0,))),
                            preferred_element_type=f32)
        return y + b_ref[...]

    def mha(q_in, kv_in, wq, bq, wk, bk, wv, bv, wout, mask):
        # head-batched attention: q_in (M, D) bf16, kv_in (N, D) bf16
        H = wq.shape[0]
        qh = jnp.broadcast_to(q_in[None], (H,) + q_in.shape)    # (H, M, D)
        kvh = jnp.broadcast_to(kv_in[None], (H,) + kv_in.shape)  # (H, N, D)
        q = proj(qh, wq, bq)              # (H, M, dqk)  (1/sqrt(dqk) folded in)
        k = proj(kvh, wk, bk)             # (H, N, dqk)
        v = proj(kvh, wv, bv)             # (H, N, dv)
        s = lax.dot_general(q.astype(mm), k.astype(mm),
                            (((2,), (2,)), ((0,), (0,))),
                            preferred_element_type=f32)          # (H, M, N)
        if mask is not None:
            s = jnp.where(mask, NEG_INF, s)
        p = _softmax(s)
        # TODO(synk): attention dropout (p=0.1) treated as eval-mode identity.
        o = lax.dot_general(p.astype(mm), v.astype(mm),
                            (((2,), (1,)), ((0,), (0,))),
                            preferred_element_type=f32)          # (H, M, dv)
        # fused per-head (W_h @ W_out_proj) weight, then sum over heads into a
        # single (M, D) accumulator — no concat, no lane relayout.
        ph = lax.dot_general(o.astype(mm), wout[...],
                             (((2,), (1,)), ((0,), (0,))),
                             preferred_element_type=f32)         # (H, M, D)
        acc = ph[0]
        for h in range(1, H):             # static slab adds over the lead dim
            acc = acc + ph[h]
        return acc                        # (M, D)

    # ---------------- masked multi-head self-attention --------------------
    xq_b = xq.astype(mm)
    xf_b = xf.astype(mm)
    attn = mha(xq_b, xf_b, m_wq, m_bq, m_wk, m_bk, m_wv, m_bv, m_wout, causal)
    y1 = _layer_norm(xq + attn + vecs[0], vecs[1], vecs[2])

    # ---------------- multi-head cross-attention --------------------------
    attn = mha(y1.astype(mm), enc, c_wq, c_bq, c_wk, c_bk, c_wv, c_bv,
               c_wout, None)
    y2 = _layer_norm(y1 + attn + vecs[3], vecs[4], vecs[5])

    # ---------------- feed-forward network ---------------------------------
    h1 = jnp.dot(y2.astype(mm), f_w1[...], preferred_element_type=f32) + f_b1[0]
    h1 = jnp.maximum(h1, 0.0)
    # TODO(synk): FFN dropout (p=0.1) treated as eval-mode identity.
    h2 = jnp.dot(h1.astype(mm), f_w2[...], preferred_element_type=f32) + vecs[6]
    out_ref[0] = _layer_norm(y2 + h2, vecs[7], vecs[8])


# --------------------------------------------------------------------------
# wrapper-side parameter fusion (head-major layouts, scale + out-proj folded)
# --------------------------------------------------------------------------
def fuse_params(p, *, num_mask_heads, num_cross_heads,
                matmul_dtype=jnp.bfloat16):
    dqk = p["m_wq"].shape[-1]
    dv = p["m_wv"].shape[-1]
    dout = p["m_wh"].shape[-1]
    D = p["m_wq"].shape[1]
    scale = dqk ** -0.5
    cast = lambda w: w.astype(matmul_dtype)
    bias3 = lambda b: b[:, None, :].astype(jnp.float32)        # (H, F) -> (H,1,F)

    # masked self-attn (head-major; 1/sqrt(dqk) folded into Q weight/bias)
    m_wq = cast(p["m_wq"] * scale)
    m_bq = bias3(p["m_bq"] * scale)
    m_wk, m_bk = cast(p["m_wk"]), bias3(p["m_bk"])
    m_wv, m_bv = cast(p["m_wv"]), bias3(p["m_bv"])
    m_wo_h = p["m_wo"].reshape(num_mask_heads, dout, D)
    m_wout = cast(jnp.einsum("hvo,hoD->hvD", p["m_wh"], m_wo_h))   # (H, dv, D)
    m_bout = jnp.einsum("ho,hoD->D", p["m_bh"], m_wo_h) + p["m_bo"][0]

    # cross-attn
    c_wq = cast(p["c_wq"] * scale)
    c_bq = bias3(p["c_bq"] * scale)
    c_wk, c_bk = cast(p["c_wk"]), bias3(p["c_bk"])
    c_wv, c_bv = cast(p["c_wv"]), bias3(p["c_bv"])
    c_wo_h = p["c_wo"].reshape(num_cross_heads, dout, D)
    c_wout = cast(jnp.einsum("hvo,hoD->hvD", p["c_wh"], c_wo_h))
    c_bout = jnp.einsum("ho,hoD->D", p["c_bh"], c_wo_h) + p["c_bo"][0]

    # all (D,)-vectors packed into one small tensor (fewer DMA windows)
    vecs = jnp.stack([
        m_bout, p["n1_g"][0], p["n1_b"][0],
        c_bout, p["n2_g"][0], p["n2_b"][0],
        p["f_b2"][0], p["n3_g"][0], p["n3_b"][0],
    ]).astype(jnp.float32)

    fused = dict(
        m_wq=m_wq, m_bq=m_bq, m_wk=m_wk, m_bk=m_bk, m_wv=m_wv, m_bv=m_bv,
        m_wout=m_wout,
        c_wq=c_wq, c_bq=c_bq, c_wk=c_wk, c_bk=c_bk, c_wv=c_wv, c_bv=c_bv,
        c_wout=c_wout,
        f_w1=cast(p["f_w1"]), f_b1=p["f_b1"].astype(jnp.float32),
        f_w2=cast(p["f_w2"]), vecs=vecs)
    return fused, dqk, dv


FUSED_ORDER = ["m_wq", "m_bq", "m_wk", "m_bk", "m_wv", "m_bv", "m_wout",
               "c_wq", "c_bq", "c_wk", "c_bk", "c_wv", "c_bv", "c_wout",
               "f_w1", "f_b1", "f_w2", "vecs"]


def _pick_q_tile(T, max_tile=256):
    if T <= max_tile:
        return T
    if T % max_tile == 0:
        return max_tile
    for t in range(max_tile, 7, -8):      # largest multiple-of-8 divisor
        if T % t == 0:
            return t
    return T


def decoder_block(x, enc, params, *, num_mask_heads, num_cross_heads,
                  matmul_dtype=jnp.bfloat16, q_tile=256):
    B, T, D = x.shape
    _, S, _ = enc.shape
    fused, dqk, dv = fuse_params(
        params, num_mask_heads=num_mask_heads,
        num_cross_heads=num_cross_heads, matmul_dtype=matmul_dtype)
    weights = [fused[k] for k in FUSED_ORDER]

    tq = _pick_q_tile(T, q_tile)
    nq = T // tq
    enc_in = enc.astype(matmul_dtype)      # enc is only ever a matmul operand

    # VMEM budget derived from the actual footprint (cap 64 MiB => legal on v7x)
    weight_bytes = sum(int(w.size) * w.dtype.itemsize for w in weights)
    act_bytes = 4 * (
        6 * tq * D + T * D + S * D + tq * 4 * D
        + num_mask_heads * (T * (2 * dqk + dv) + tq * (T + dqk + dv + D))
        + num_cross_heads * (S * (2 * dqk + dv) + tq * (S + dqk + dv + D)))
    vmem_limit = int(min(64 * 2 ** 20,
                         max(32 * 2 ** 20, 2 * weight_bytes + 4 * act_bytes)))

    def run(single_buffer_weights):
        wspecs = []
        for w in weights:
            imap = lambda b, q, _nd=w.ndim: (0,) * _nd
            if single_buffer_weights:
                # grid-invariant weights: double-buffering buys nothing
                wspecs.append(pl.BlockSpec(w.shape, imap,
                                           pipeline_mode=pl.Buffered(1)))
            else:
                wspecs.append(pl.BlockSpec(w.shape, imap))
        in_specs = [
            pl.BlockSpec((1, tq, D), lambda b, q: (b, q, 0)),   # x query tile
            pl.BlockSpec((1, T, D), lambda b, q: (b, 0, 0)),    # x keys/values
            pl.BlockSpec((1, S, D), lambda b, q: (b, 0, 0)),    # encoder (bf16)
        ] + wspecs
        return pl.pallas_call(
            decoder_block_kernel,
            out_shape=jax.ShapeDtypeStruct((B, T, D), jnp.float32),
            grid_spec=pltpu.PrefetchScalarGridSpec(
                num_scalar_prefetch=0,
                grid=(B, nq),
                in_specs=in_specs,
                out_specs=pl.BlockSpec((1, tq, D), lambda b, q: (b, q, 0)),
            ),
            compiler_params=pltpu.CompilerParams(
                dimension_semantics=("parallel", "parallel"),
                vmem_limit_bytes=vmem_limit),
        )(x, x, enc_in, *weights)

    try:
        return run(True)
    except Exception:
        # pipeline_mode=pl.Buffered(1) unsupported on this jax version -> retry
        return run(False)


# --------------------------------------------------------------------------
# pure-JAX reference (mirrors the PyTorch forward, dropout = identity, f32)
# --------------------------------------------------------------------------
def decoder_block_ref(x, enc, p, *, num_mask_heads, num_cross_heads):
    def ln(v, g, b, eps=1e-5):
        mu = jnp.mean(v, -1, keepdims=True)
        var = jnp.mean((v - mu) ** 2, -1, keepdims=True)
        return (v - mu) / jnp.sqrt(var + eps) * g + b

    def softmax(s):
        m = jnp.max(s, -1, keepdims=True)
        e = jnp.exp(s - m)
        return e / jnp.sum(e, -1, keepdims=True)

    T = x.shape[1]
    causal = jnp.triu(jnp.ones((T, T), dtype=bool), k=1)

    outs = []
    for h in range(num_mask_heads):
        Q = x @ p["m_wq"][h] + p["m_bq"][h]
        K = x @ p["m_wk"][h] + p["m_bk"][h]
        V = x @ p["m_wv"][h] + p["m_bv"][h]
        s = jnp.matmul(Q, jnp.swapaxes(K, -2, -1)) * (K.shape[-1] ** -0.5)
        s = jnp.where(causal[None], NEG_INF, s)
        outs.append(jnp.matmul(softmax(s), V) @ p["m_wh"][h] + p["m_bh"][h])
    norm_emb = ln(x + jnp.concatenate(outs, -1) @ p["m_wo"] + p["m_bo"][0],
                  p["n1_g"][0], p["n1_b"][0])

    outs = []
    for h in range(num_cross_heads):
        Q = norm_emb @ p["c_wq"][h] + p["c_bq"][h]
        K = enc @ p["c_wk"][h] + p["c_bk"][h]
        V = enc @ p["c_wv"][h] + p["c_bv"][h]
        s = jnp.matmul(Q, jnp.swapaxes(K, -2, -1)) * (K.shape[-1] ** -0.5)
        outs.append(jnp.matmul(softmax(s), V) @ p["c_wh"][h] + p["c_bh"][h])
    norm_emb = ln(norm_emb + jnp.concatenate(outs, -1) @ p["c_wo"] + p["c_bo"][0],
                  p["n2_g"][0], p["n2_b"][0])

    ffn = jnp.maximum(norm_emb @ p["f_w1"] + p["f_b1"][0], 0.0) @ p["f_w2"] + p["f_b2"][0]
    return ln(norm_emb + ffn, p["n3_g"][0], p["n3_b"][0])


# --------------------------------------------------------------------------
# deterministic parameter init (PyTorch-style per-head layout)
# --------------------------------------------------------------------------
def init_params(key, *, dec_dim_in, dim_proj_QK, dim_proj_V, dec_dim_out,
                mask_heads, cross_heads):
    D, dqk, dv, dout = dec_dim_in, dim_proj_QK, dim_proj_V, dec_dim_out
    keys = iter(jax.random.split(key, 64))

    def rnd(shape, scale=0.05):
        return (scale * jax.random.normal(next(keys), shape)).astype(jnp.float32)

    return {
        "m_wq": rnd((mask_heads, D, dqk)), "m_bq": rnd((mask_heads, dqk)),
        "m_wk": rnd((mask_heads, D, dqk)), "m_bk": rnd((mask_heads, dqk)),
        "m_wv": rnd((mask_heads, D, dv)),  "m_bv": rnd((mask_heads, dv)),
        "m_wh": rnd((mask_heads, dv, dout)), "m_bh": rnd((mask_heads, dout)),
        "m_wo": rnd((mask_heads * dout, D)), "m_bo": rnd((1, D)),
        "n1_g": jnp.ones((1, D), jnp.float32), "n1_b": jnp.zeros((1, D), jnp.float32),
        "c_wq": rnd((cross_heads, D, dqk)), "c_bq": rnd((cross_heads, dqk)),
        "c_wk": rnd((cross_heads, D, dqk)), "c_bk": rnd((cross_heads, dqk)),
        "c_wv": rnd((cross_heads, D, dv)),  "c_bv": rnd((cross_heads, dv)),
        "c_wh": rnd((cross_heads, dv, dout)), "c_bh": rnd((cross_heads, dout)),
        "c_wo": rnd((cross_heads * dout, D)), "c_bo": rnd((1, D)),
        "n2_g": jnp.ones((1, D), jnp.float32), "n2_b": jnp.zeros((1, D), jnp.float32),
        "f_w1": rnd((D, 4 * D)), "f_b1": rnd((1, 4 * D)),
        "f_w2": rnd((4 * D, D)), "f_b2": rnd((1, D)),
        "n3_g": jnp.ones((1, D), jnp.float32), "n3_b": jnp.zeros((1, D), jnp.float32),
    }


# --------------------------------------------------------------------------
if __name__ == "__main__":
    # NOTE: demo shapes (T=8, D=32) are for correctness only; lane-dense perf
    # requires D and H*dv to be multiples of 128 at production sizes.
    B, T, S_ENC = 2, 8, 8
    DEC_DIM_IN, DIM_PROJ_QK, DIM_PROJ_V, DEC_DIM_OUT = 32, 16, 16, 16
    MASK_HEADS, CROSS_HEADS = 2, 2

    key = jax.random.PRNGKey(0)
    kx, kenc, kp = jax.random.split(key, 3)
    x = jax.random.normal(kx, (B, T, DEC_DIM_IN), dtype=jnp.float32)
    enc = jax.random.normal(kenc, (B, S_ENC, DEC_DIM_IN), dtype=jnp.float32)
    params = init_params(
        kp, dec_dim_in=DEC_DIM_IN, dim_proj_QK=DIM_PROJ_QK,
        dim_proj_V=DIM_PROJ_V, dec_dim_out=DEC_DIM_OUT,
        mask_heads=MASK_HEADS, cross_heads=CROSS_HEADS)

    out = decoder_block(x, enc, params,
                        num_mask_heads=MASK_HEADS, num_cross_heads=CROSS_HEADS)
    out = jax.block_until_ready(out)

    ref = decoder_block_ref(x, enc, params,
                            num_mask_heads=MASK_HEADS, num_cross_heads=CROSS_HEADS)
    assert out.shape == (B, T, DEC_DIM_IN)
    # tolerance relaxed for bf16 matmul operands + approx reciprocal + folded scale
    assert jnp.allclose(out, ref, rtol=5e-2, atol=5e-2), "mismatch vs reference"
    print("KERNEL_OK")
</pallas_src>

<mosaic_0001>
module attributes {stable_mosaic.version = 11 : i64} {
  func.func @decoder_block_kernel(%arg0: i32, %arg1: i32, %arg2: memref<1x8x32xf32, #tpu.memory_space<vmem>>, %arg3: memref<1x8x32xf32, #tpu.memory_space<vmem>>, %arg4: memref<1x8x32xbf16, #tpu.memory_space<vmem>>, %arg5: memref<2x32x16xbf16, #tpu.memory_space<vmem>>, %arg6: memref<2x1x16xf32, #tpu.memory_space<vmem>>, %arg7: memref<2x32x16xbf16, #tpu.memory_space<vmem>>, %arg8: memref<2x1x16xf32, #tpu.memory_space<vmem>>, %arg9: memref<2x32x16xbf16, #tpu.memory_space<vmem>>, %arg10: memref<2x1x16xf32, #tpu.memory_space<vmem>>, %arg11: memref<2x16x32xbf16, #tpu.memory_space<vmem>>, %arg12: memref<2x32x16xbf16, #tpu.memory_space<vmem>>, %arg13: memref<2x1x16xf32, #tpu.memory_space<vmem>>, %arg14: memref<2x32x16xbf16, #tpu.memory_space<vmem>>, %arg15: memref<2x1x16xf32, #tpu.memory_space<vmem>>, %arg16: memref<2x32x16xbf16, #tpu.memory_space<vmem>>, %arg17: memref<2x1x16xf32, #tpu.memory_space<vmem>>, %arg18: memref<2x16x32xbf16, #tpu.memory_space<vmem>>, %arg19: memref<32x128xbf16, #tpu.memory_space<vmem>>, %arg20: memref<1x128xf32, #tpu.memory_space<vmem>>, %arg21: memref<128x32xbf16, #tpu.memory_space<vmem>>, %arg22: memref<9x32xf32, #tpu.memory_space<vmem>>, %arg23: memref<1x8x32xf32, #tpu.memory_space<vmem>>) attributes {dimension_semantics = [#tpu.dimension_semantics<parallel>, #tpu.dimension_semantics<parallel>], iteration_bounds = array<i64: 2, 1>, scalar_prefetch = 0 : i64, scratch_operands = 0 : i64, tpu.core_type = #tpu.core_type<tc>, window_params = [{transform_indices = @transform_0, window_bounds = array<i64: 1, 8, 32>}, {transform_indices = @transform_1, window_bounds = array<i64: 1, 8, 32>}, {transform_indices = @transform_2, window_bounds = array<i64: 1, 8, 32>}, {pipeline_mode = #tpu.pipeline_mode<synchronous>, transform_indices = @transform_3, window_bounds = array<i64: 2, 32, 16>}, {pipeline_mode = #tpu.pipeline_mode<synchronous>, transform_indices = @transform_4, window_bounds = array<i64: 2, 1, 16>}, {pipeline_mode = #tpu.pipeline_mode<synchronous>, transform_indices = @transform_5, window_bounds = array<i64: 2, 32, 16>}, {pipeline_mode = #tpu.pipeline_mode<synchronous>, transform_indices = @transform_6, window_bounds = array<i64: 2, 1, 16>}, {pipeline_mode = #tpu.pipeline_mode<synchronous>, transform_indices = @transform_7, window_bounds = array<i64: 2, 32, 16>}, {pipeline_mode = #tpu.pipeline_mode<synchronous>, transform_indices = @transform_8, window_bounds = array<i64: 2, 1, 16>}, {pipeline_mode = #tpu.pipeline_mode<synchronous>, transform_indices = @transform_9, window_bounds = array<i64: 2, 16, 32>}, {pipeline_mode = #tpu.pipeline_mode<synchronous>, transform_indices = @transform_10, window_bounds = array<i64: 2, 32, 16>}, {pipeline_mode = #tpu.pipeline_mode<synchronous>, transform_indices = @transform_11, window_bounds = array<i64: 2, 1, 16>}, {pipeline_mode = #tpu.pipeline_mode<synchronous>, transform_indices = @transform_12, window_bounds = array<i64: 2, 32, 16>}, {pipeline_mode = #tpu.pipeline_mode<synchronous>, transform_indices = @transform_13, window_bounds = array<i64: 2, 1, 16>}, {pipeline_mode = #tpu.pipeline_mode<synchronous>, transform_indices = @transform_14, window_bounds = array<i64: 2, 32, 16>}, {pipeline_mode = #tpu.pipeline_mode<synchronous>, transform_indices = @transform_15, window_bounds = array<i64: 2, 1, 16>}, {pipeline_mode = #tpu.pipeline_mode<synchronous>, transform_indices = @transform_16, window_bounds = array<i64: 2, 16, 32>}, {pipeline_mode = #tpu.pipeline_mode<synchronous>, transform_indices = @transform_17, window_bounds = array<i64: 32, 128>}, {pipeline_mode = #tpu.pipeline_mode<synchronous>, transform_indices = @transform_18, window_bounds = array<i64: 1, 128>}, {pipeline_mode = #tpu.pipeline_mode<synchronous>, transform_indices = @transform_19, window_bounds = array<i64: 128, 32>}, {pipeline_mode = #tpu.pipeline_mode<synchronous>, transform_indices = @transform_20, window_bounds = array<i64: 9, 32>}, {transform_indices = @transform_21, window_bounds = array<i64: 1, 8, 32>}]} {
    %c0 = arith.constant 0 : index
    %c0_0 = arith.constant 0 : index
    %c0_1 = arith.constant 0 : index
    %0 = vector.load %arg2[%c0, %c0_0, %c0_1] : memref<1x8x32xf32, #tpu.memory_space<vmem>>, vector<1x8x32xf32>
    %1 = vector.shape_cast %0 : vector<1x8x32xf32> to vector<8x32xf32>
    %c0_2 = arith.constant 0 : index
    %c0_3 = arith.constant 0 : index
    %c0_4 = arith.constant 0 : index
    %2 = vector.load %arg3[%c0_2, %c0_3, %c0_4] : memref<1x8x32xf32, #tpu.memory_space<vmem>>, vector<1x8x32xf32>
    %3 = vector.shape_cast %2 : vector<1x8x32xf32> to vector<8x32xf32>
    %c0_5 = arith.constant 0 : index
    %c0_6 = arith.constant 0 : index
    %c0_7 = arith.constant 0 : index
    %4 = vector.load %arg4[%c0_5, %c0_6, %c0_7] : memref<1x8x32xbf16, #tpu.memory_space<vmem>>, vector<1x8x32xbf16>
    %5 = vector.shape_cast %4 : vector<1x8x32xbf16> to vector<8x32xbf16>
    %c8_i32 = arith.constant 8 : i32
    %6 = arith.muli %arg1, %c8_i32 : i32
    %7 = tpu.iota {dimensions = array<i32: 0>} : vector<8x8xi32>
    %8 = vector.broadcast %6 : i32 to vector<8x8xi32>
    %9 = arith.addi %8, %7 : vector<8x8xi32>
    %10 = tpu.iota {dimensions = array<i32: 1>} : vector<8x8xi32>
    %11 = arith.cmpi sgt, %10, %9 : vector<8x8xi32>
    %12 = vector.shape_cast %11 : vector<8x8xi1> to vector<1x8x8xi1>
    %13 = arith.truncf %1 : vector<8x32xf32> to vector<8x32xbf16>
    %14 = arith.truncf %3 : vector<8x32xf32> to vector<8x32xbf16>
    %15 = vector.shape_cast %13 : vector<8x32xbf16> to vector<1x8x32xbf16>
    %16 = vector.shape_cast %15 : vector<1x8x32xbf16> to vector<1x8x32xbf16>
    %17 = vector.broadcast %16 : vector<1x8x32xbf16> to vector<2x8x32xbf16>
    %18 = vector.shape_cast %14 : vector<8x32xbf16> to vector<1x8x32xbf16>
    %19 = vector.shape_cast %18 : vector<1x8x32xbf16> to vector<1x8x32xbf16>
    %20 = vector.broadcast %19 : vector<1x8x32xbf16> to vector<2x8x32xbf16>
    %c0_8 = arith.constant 0 : index
    %c0_9 = arith.constant 0 : index
    %c0_10 = arith.constant 0 : index
    %21 = vector.load %arg5[%c0_8, %c0_9, %c0_10] : memref<2x32x16xbf16, #tpu.memory_space<vmem>>, vector<2x32x16xbf16>
    %cst = arith.constant dense<0.000000e+00> : vector<2x8x16xf32>
    %22 = tpu.matmul %17, %21, %cst {dimension_numbers = #tpu.dot_dimension_numbers<[2], [1], [1], [2], [0, 0, 0, 1, 1, 2], [0], [0]>} : vector<2x8x32xbf16>, vector<2x32x16xbf16>, vector<2x8x16xf32> -> vector<2x8x16xf32>
    %c0_11 = arith.constant 0 : index
    %c0_12 = arith.constant 0 : index
    %c0_13 = arith.constant 0 : index
    %23 = vector.load %arg6[%c0_11, %c0_12, %c0_13] : memref<2x1x16xf32, #tpu.memory_space<vmem>>, vector<2x1x16xf32>
    %24 = vector.broadcast %23 : vector<2x1x16xf32> to vector<2x8x16xf32>
    %25 = arith.addf %22, %24 : vector<2x8x16xf32>
    %c0_14 = arith.constant 0 : index
    %c0_15 = arith.constant 0 : index
    %c0_16 = arith.constant 0 : index
    %26 = vector.load %arg7[%c0_14, %c0_15, %c0_16] : memref<2x32x16xbf16, #tpu.memory_space<vmem>>, vector<2x32x16xbf16>
    %cst_17 = arith.constant dense<0.000000e+00> : vector<2x8x16xf32>
    %27 = tpu.matmul %20, %26, %cst_17 {dimension_numbers = #tpu.dot_dimension_numbers<[2], [1], [1], [2], [0, 0, 0, 1, 1, 2], [0], [0]>} : vector<2x8x32xbf16>, vector<2x32x16xbf16>, vector<2x8x16xf32> -> vector<2x8x16xf32>
    %c0_18 = arith.constant 0 : index
    %c0_19 = arith.constant 0 : index
    %c0_20 = arith.constant 0 : index
    %28 = vector.load %arg8[%c0_18, %c0_19, %c0_20] : memref<2x1x16xf32, #tpu.memory_space<vmem>>, vector<2x1x16xf32>
    %29 = vector.broadcast %28 : vector<2x1x16xf32> to vector<2x8x16xf32>
    %30 = arith.addf %27, %29 : vector<2x8x16xf32>
    %c0_21 = arith.constant 0 : index
    %c0_22 = arith.constant 0 : index
    %c0_23 = arith.constant 0 : index
    %31 = vector.load %arg9[%c0_21, %c0_22, %c0_23] : memref<2x32x16xbf16, #tpu.memory_space<vmem>>, vector<2x32x16xbf16>
    %cst_24 = arith.constant dense<0.000000e+00> : vector<2x8x16xf32>
    %32 = tpu.matmul %20, %31, %cst_24 {dimension_numbers = #tpu.dot_dimension_numbers<[2], [1], [1], [2], [0, 0, 0, 1, 1, 2], [0], [0]>} : vector<2x8x32xbf16>, vector<2x32x16xbf16>, vector<2x8x16xf32> -> vector<2x8x16xf32>
    %c0_25 = arith.constant 0 : index
    %c0_26 = arith.constant 0 : index
    %c0_27 = arith.constant 0 : index
    %33 = vector.load %arg10[%c0_25, %c0_26, %c0_27] : memref<2x1x16xf32, #tpu.memory_space<vmem>>, vector<2x1x16xf32>
    %34 = vector.broadcast %33 : vector<2x1x16xf32> to vector<2x8x16xf32>
    %35 = arith.addf %32, %34 : vector<2x8x16xf32>
    %36 = arith.truncf %25 : vector<2x8x16xf32> to vector<2x8x16xbf16>
    %37 = arith.truncf %30 : vector<2x8x16xf32> to vector<2x8x16xbf16>
    %cst_28 = arith.constant dense<0.000000e+00> : vector<2x8x8xf32>
    %38 = tpu.matmul %36, %37, %cst_28 {dimension_numbers = #tpu.dot_dimension_numbers<[2], [2], [1], [1], [0, 0, 0, 1, 1, 1], [0], [0]>} : vector<2x8x16xbf16>, vector<2x8x16xbf16>, vector<2x8x8xf32> -> vector<2x8x8xf32>
    %cst_29 = arith.constant -1.000000e+30 : f32
    %39 = vector.shape_cast %12 : vector<1x8x8xi1> to vector<1x8x8xi1>
    %40 = vector.broadcast %39 : vector<1x8x8xi1> to vector<2x8x8xi1>
    %41 = vector.broadcast %cst_29 : f32 to vector<2x8x8xf32>
    %42 = arith.select %40, %41, %38 : vector<2x8x8xi1>, vector<2x8x8xf32>
    %cst_30 = arith.constant dense<0xFF800000> : vector<2x8xf32>
    %43 = vector.multi_reduction <maximumf>, %42, %cst_30 [2] : vector<2x8x8xf32> to vector<2x8xf32>
    %44 = vector.shape_cast %43 : vector<2x8xf32> to vector<2x8x1xf32>
    %45 = vector.broadcast %44 : vector<2x8x1xf32> to vector<2x8x8xf32>
    %46 = arith.subf %42, %45 : vector<2x8x8xf32>
    %47 = math.exp %46 : vector<2x8x8xf32>
    %cst_31 = arith.constant dense<0.000000e+00> : vector<2x8xf32>
    %48 = vector.multi_reduction <add>, %47, %cst_31 [2] : vector<2x8x8xf32> to vector<2x8xf32>
    %49 = vector.shape_cast %48 : vector<2x8xf32> to vector<2x8x1xf32>
    %50 = tpu.reciprocal %49 {approx = true} : vector<2x8x1xf32> -> vector<2x8x1xf32>
    %51 = vector.broadcast %50 : vector<2x8x1xf32> to vector<2x8x8xf32>
    %52 = arith.mulf %47, %51 : vector<2x8x8xf32>
    %53 = arith.truncf %52 : vector<2x8x8xf32> to vector<2x8x8xbf16>
    %54 = arith.truncf %35 : vector<2x8x16xf32> to vector<2x8x16xbf16>
    %cst_32 = arith.constant dense<0.000000e+00> : vector<2x8x16xf32>
    %55 = tpu.matmul %53, %54, %cst_32 {dimension_numbers = #tpu.dot_dimension_numbers<[2], [1], [1], [2], [0, 0, 0, 1, 1, 2], [0], [0]>} : vector<2x8x8xbf16>, vector<2x8x16xbf16>, vector<2x8x16xf32> -> vector<2x8x16xf32>
    %56 = arith.truncf %55 : vector<2x8x16xf32> to vector<2x8x16xbf16>
    %c0_33 = arith.constant 0 : index
    %c0_34 = arith.constant 0 : index
    %c0_35 = arith.constant 0 : index
    %57 = vector.load %arg11[%c0_33, %c0_34, %c0_35] : memref<2x16x32xbf16, #tpu.memory_space<vmem>>, vector<2x16x32xbf16>
    %cst_36 = arith.constant dense<0.000000e+00> : vector<2x8x32xf32>
    %58 = tpu.matmul %56, %57, %cst_36 {dimension_numbers = #tpu.dot_dimension_numbers<[2], [1], [1], [2], [0, 0, 0, 1, 1, 2], [0], [0]>} : vector<2x8x16xbf16>, vector<2x16x32xbf16>, vector<2x8x32xf32> -> vector<2x8x32xf32>
    %59 = vector.extract_strided_slice %58 {offsets = [0, 0, 0], sizes = [1, 8, 32], strides = [1, 1, 1]} : vector<2x8x32xf32> to vector<1x8x32xf32>
    %60 = vector.shape_cast %59 : vector<1x8x32xf32> to vector<8x32xf32>
    %61 = vector.extract_strided_slice %58 {offsets = [1, 0, 0], sizes = [1, 8, 32], strides = [1, 1, 1]} : vector<2x8x32xf32> to vector<1x8x32xf32>
    %62 = vector.shape_cast %61 : vector<1x8x32xf32> to vector<8x32xf32>
    %63 = arith.addf %60, %62 : vector<8x32xf32>
    %64 = arith.addf %1, %63 : vector<8x32xf32>
    %c0_37 = arith.constant 0 : index
    %c0_38 = arith.constant 0 : index
    %65 = vector.load %arg22[%c0_37, %c0_38] : memref<9x32xf32, #tpu.memory_space<vmem>>, vector<1x32xf32>
    %66 = vector.shape_cast %65 : vector<1x32xf32> to vector<32xf32>
    %67 = vector.shape_cast %66 : vector<32xf32> to vector<1x32xf32>
    %68 = vector.broadcast %67 : vector<1x32xf32> to vector<8x32xf32>
    %69 = arith.addf %64, %68 : vector<8x32xf32>
    %c1 = arith.constant 1 : index
    %c0_39 = arith.constant 0 : index
    %70 = vector.load %arg22[%c1, %c0_39] : memref<9x32xf32, #tpu.memory_space<vmem>>, vector<1x32xf32>
    %71 = vector.shape_cast %70 : vector<1x32xf32> to vector<32xf32>
    %c2 = arith.constant 2 : index
    %c0_40 = arith.constant 0 : index
    %72 = vector.load %arg22[%c2, %c0_40] : memref<9x32xf32, #tpu.memory_space<vmem>>, vector<1x32xf32>
    %73 = vector.shape_cast %72 : vector<1x32xf32> to vector<32xf32>
    %cst_41 = arith.constant dense<0.000000e+00> : vector<8xf32>
    %74 = vector.multi_reduction <add>, %69, %cst_41 [1] : vector<8x32xf32> to vector<8xf32>
    %75 = vector.shape_cast %74 : vector<8xf32> to vector<8x1xf32>
    %cst_42 = arith.constant 3.200000e+01 : f32
    %76 = vector.broadcast %cst_42 : f32 to vector<8x1xf32>
    %77 = arith.divf %75, %76 : vector<8x1xf32>
    %78 = vector.broadcast %77 : vector<8x1xf32> to vector<8x32xf32>
    %79 = arith.subf %69, %78 : vector<8x32xf32>
    %80 = arith.mulf %79, %79 : vector<8x32xf32>
    %cst_43 = arith.constant dense<0.000000e+00> : vector<8xf32>
    %81 = vector.multi_reduction <add>, %80, %cst_43 [1] : vector<8x32xf32> to vector<8xf32>
    %82 = vector.shape_cast %81 : vector<8xf32> to vector<8x1xf32>
    %cst_44 = arith.constant 3.200000e+01 : f32
    %83 = vector.broadcast %cst_44 : f32 to vector<8x1xf32>
    %84 = arith.divf %82, %83 : vector<8x1xf32>
    %85 = vector.broadcast %77 : vector<8x1xf32> to vector<8x32xf32>
    %86 = arith.subf %69, %85 : vector<8x32xf32>
    %cst_45 = arith.constant 9.99999974E-6 : f32
    %87 = vector.broadcast %cst_45 : f32 to vector<8x1xf32>
    %88 = arith.addf %84, %87 : vector<8x1xf32>
    %89 = math.rsqrt %88 : vector<8x1xf32>
    %90 = vector.broadcast %89 : vector<8x1xf32> to vector<8x32xf32>
    %91 = arith.mulf %86, %90 : vector<8x32xf32>
    %92 = vector.shape_cast %71 : vector<32xf32> to vector<1x32xf32>
    %93 = vector.broadcast %92 : vector<1x32xf32> to vector<8x32xf32>
    %94 = arith.mulf %91, %93 : vector<8x32xf32>
    %95 = vector.shape_cast %73 : vector<32xf32> to vector<1x32xf32>
    %96 = vector.broadcast %95 : vector<1x32xf32> to vector<8x32xf32>
    %97 = arith.addf %94, %96 : vector<8x32xf32>
    %98 = arith.truncf %97 : vector<8x32xf32> to vector<8x32xbf16>
    %99 = vector.shape_cast %98 : vector<8x32xbf16> to vector<1x8x32xbf16>
    %100 = vector.shape_cast %99 : vector<1x8x32xbf16> to vector<1x8x32xbf16>
    %101 = vector.broadcast %100 : vector<1x8x32xbf16> to vector<2x8x32xbf16>
    %102 = vector.shape_cast %5 : vector<8x32xbf16> to vector<1x8x32xbf16>
    %103 = vector.shape_cast %102 : vector<1x8x32xbf16> to vector<1x8x32xbf16>
    %104 = vector.broadcast %103 : vector<1x8x32xbf16> to vector<2x8x32xbf16>
    %c0_46 = arith.constant 0 : index
    %c0_47 = arith.constant 0 : index
    %c0_48 = arith.constant 0 : index
    %105 = vector.load %arg12[%c0_46, %c0_47, %c0_48] : memref<2x32x16xbf16, #tpu.memory_space<vmem>>, vector<2x32x16xbf16>
    %cst_49 = arith.constant dense<0.000000e+00> : vector<2x8x16xf32>
    %106 = tpu.matmul %101, %105, %cst_49 {dimension_numbers = #tpu.dot_dimension_numbers<[2], [1], [1], [2], [0, 0, 0, 1, 1, 2], [0], [0]>} : vector<2x8x32xbf16>, vector<2x32x16xbf16>, vector<2x8x16xf32> -> vector<2x8x16xf32>
    %c0_50 = arith.constant 0 : index
    %c0_51 = arith.constant 0 : index
    %c0_52 = arith.constant 0 : index
    %107 = vector.load %arg13[%c0_50, %c0_51, %c0_52] : memref<2x1x16xf32, #tpu.memory_space<vmem>>, vector<2x1x16xf32>
    %108 = vector.broadcast %107 : vector<2x1x16xf32> to vector<2x8x16xf32>
    %109 = arith.addf %106, %108 : vector<2x8x16xf32>
    %c0_53 = arith.constant 0 : index
    %c0_54 = arith.constant 0 : index
    %c0_55 = arith.constant 0 : index
    %110 = vector.load %arg14[%c0_53, %c0_54, %c0_55] : memref<2x32x16xbf16, #tpu.memory_space<vmem>>, vector<2x32x16xbf16>
    %cst_56 = arith.constant dense<0.000000e+00> : vector<2x8x16xf32>
    %111 = tpu.matmul %104, %110, %cst_56 {dimension_numbers = #tpu.dot_dimension_numbers<[2], [1], [1], [2], [0, 0, 0, 1, 1, 2], [0], [0]>} : vector<2x8x32xbf16>, vector<2x32x16xbf16>, vector<2x8x16xf32> -> vector<2x8x16xf32>
    %c0_57 = arith.constant 0 : index
    %c0_58 = arith.constant 0 : index
    %c0_59 = arith.constant 0 : index
    %112 = vector.load %arg15[%c0_57, %c0_58, %c0_59] : memref<2x1x16xf32, #tpu.memory_space<vmem>>, vector<2x1x16xf32>
    %113 = vector.broadcast %112 : vector<2x1x16xf32> to vector<2x8x16xf32>
    %114 = arith.addf %111, %113 : vector<2x8x16xf32>
    %c0_60 = arith.constant 0 : index
    %c0_61 = arith.constant 0 : index
    %c0_62 = arith.constant 0 : index
    %115 = vector.load %arg16[%c0_60, %c0_61, %c0_62] : memref<2x32x16xbf16, #tpu.memory_space<vmem>>, vector<2x32x16xbf16>
    %cst_63 = arith.constant dense<0.000000e+00> : vector<2x8x16xf32>
    %116 = tpu.matmul %104, %115, %cst_63 {dimension_numbers = #tpu.dot_dimension_numbers<[2], [1], [1], [2], [0, 0, 0, 1, 1, 2], [0], [0]>} : vector<2x8x32xbf16>, vector<2x32x16xbf16>, vector<2x8x16xf32> -> vector<2x8x16xf32>
    %c0_64 = arith.constant 0 : index
    %c0_65 = arith.constant 0 : index
    %c0_66 = arith.constant 0 : index
    %117 = vector.load %arg17[%c0_64, %c0_65, %c0_66] : memref<2x1x16xf32, #tpu.memory_space<vmem>>, vector<2x1x16xf32>
    %118 = vector.broadcast %117 : vector<2x1x16xf32> to vector<2x8x16xf32>
    %119 = arith.addf %116, %118 : vector<2x8x16xf32>
    %120 = arith.truncf %109 : vector<2x8x16xf32> to vector<2x8x16xbf16>
    %121 = arith.truncf %114 : vector<2x8x16xf32> to vector<2x8x16xbf16>
    %cst_67 = arith.constant dense<0.000000e+00> : vector<2x8x8xf32>
    %122 = tpu.matmul %120, %121, %cst_67 {dimension_numbers = #tpu.dot_dimension_numbers<[2], [2], [1], [1], [0, 0, 0, 1, 1, 1], [0], [0]>} : vector<2x8x16xbf16>, vector<2x8x16xbf16>, vector<2x8x8xf32> -> vector<2x8x8xf32>
    %cst_68 = arith.constant dense<0xFF800000> : vector<2x8xf32>
    %123 = vector.multi_reduction <maximumf>, %122, %cst_68 [2] : vector<2x8x8xf32> to vector<2x8xf32>
    %124 = vector.shape_cast %123 : vector<2x8xf32> to vector<2x8x1xf32>
    %125 = vector.broadcast %124 : vector<2x8x1xf32> to vector<2x8x8xf32>
    %126 = arith.subf %122, %125 : vector<2x8x8xf32>
    %127 = math.exp %126 : vector<2x8x8xf32>
    %cst_69 = arith.constant dense<0.000000e+00> : vector<2x8xf32>
    %128 = vector.multi_reduction <add>, %127, %cst_69 [2] : vector<2x8x8xf32> to vector<2x8xf32>
    %129 = vector.shape_cast %128 : vector<2x8xf32> to vector<2x8x1xf32>
    %130 = tpu.reciprocal %129 {approx = true} : vector<2x8x1xf32> -> vector<2x8x1xf32>
    %131 = vector.broadcast %130 : vector<2x8x1xf32> to vector<2x8x8xf32>
    %132 = arith.mulf %127, %131 : vector<2x8x8xf32>
    %133 = arith.truncf %132 : vector<2x8x8xf32> to vector<2x8x8xbf16>
    %134 = arith.truncf %119 : vector<2x8x16xf32> to vector<2x8x16xbf16>
    %cst_70 = arith.constant dense<0.000000e+00> : vector<2x8x16xf32>
    %135 = tpu.matmul %133, %134, %cst_70 {dimension_numbers = #tpu.dot_dimension_numbers<[2], [1], [1], [2], [0, 0, 0, 1, 1, 2], [0], [0]>} : vector<2x8x8xbf16>, vector<2x8x16xbf16>, vector<2x8x16xf32> -> vector<2x8x16xf32>
    %136 = arith.truncf %135 : vector<2x8x16xf32> to vector<2x8x16xbf16>
    %c0_71 = arith.constant 0 : index
    %c0_72 = arith.constant 0 : index
    %c0_73 = arith.constant 0 : index
    %137 = vector.load %arg18[%c0_71, %c0_72, %c0_73] : memref<2x16x32xbf16, #tpu.memory_space<vmem>>, vector<2x16x32xbf16>
    %cst_74 = arith.constant dense<0.000000e+00> : vector<2x8x32xf32>
    %138 = tpu.matmul %136, %137, %cst_74 {dimension_numbers = #tpu.dot_dimension_numbers<[2], [1], [1], [2], [0, 0, 0, 1, 1, 2], [0], [0]>} : vector<2x8x16xbf16>, vector<2x16x32xbf16>, vector<2x8x32xf32> -> vector<2x8x32xf32>
    %139 = vector.extract_strided_slice %138 {offsets = [0, 0, 0], sizes = [1, 8, 32], strides = [1, 1, 1]} : vector<2x8x32xf32> to vector<1x8x32xf32>
    %140 = vector.shape_cast %139 : vector<1x8x32xf32> to vector<8x32xf32>
    %141 = vector.extract_strided_slice %138 {offsets = [1, 0, 0], sizes = [1, 8, 32], strides = [1, 1, 1]} : vector<2x8x32xf32> to vector<1x8x32xf32>
    %142 = vector.shape_cast %141 : vector<1x8x32xf32> to vector<8x32xf32>
    %143 = arith.addf %140, %142 : vector<8x32xf32>
    %144 = arith.addf %97, %143 : vector<8x32xf32>
    %c3 = arith.constant 3 : index
    %c0_75 = arith.constant 0 : index
    %145 = vector.load %arg22[%c3, %c0_75] : memref<9x32xf32, #tpu.memory_space<vmem>>, vector<1x32xf32>
    %146 = vector.shape_cast %145 : vector<1x32xf32> to vector<32xf32>
    %147 = vector.shape_cast %146 : vector<32xf32> to vector<1x32xf32>
    %148 = vector.broadcast %147 : vector<1x32xf32> to vector<8x32xf32>
    %149 = arith.addf %144, %148 : vector<8x32xf32>
    %c4 = arith.constant 4 : index
    %c0_76 = arith.constant 0 : index
    %150 = vector.load %arg22[%c4, %c0_76] : memref<9x32xf32, #tpu.memory_space<vmem>>, vector<1x32xf32>
    %151 = vector.shape_cast %150 : vector<1x32xf32> to vector<32xf32>
    %c5 = arith.constant 5 : index
    %c0_77 = arith.constant 0 : index
    %152 = vector.load %arg22[%c5, %c0_77] : memref<9x32xf32, #tpu.memory_space<vmem>>, vector<1x32xf32>
    %153 = vector.shape_cast %152 : vector<1x32xf32> to vector<32xf32>
    %cst_78 = arith.constant dense<0.000000e+00> : vector<8xf32>
    %154 = vector.multi_reduction <add>, %149, %cst_78 [1] : vector<8x32xf32> to vector<8xf32>
    %155 = vector.shape_cast %154 : vector<8xf32> to vector<8x1xf32>
    %cst_79 = arith.constant 3.200000e+01 : f32
    %156 = vector.broadcast %cst_79 : f32 to vector<8x1xf32>
    %157 = arith.divf %155, %156 : vector<8x1xf32>
    %158 = vector.broadcast %157 : vector<8x1xf32> to vector<8x32xf32>
    %159 = arith.subf %149, %158 : vector<8x32xf32>
    %160 = arith.mulf %159, %159 : vector<8x32xf32>
    %cst_80 = arith.constant dense<0.000000e+00> : vector<8xf32>
    %161 = vector.multi_reduction <add>, %160, %cst_80 [1] : vector<8x32xf32> to vector<8xf32>
    %162 = vector.shape_cast %161 : vector<8xf32> to vector<8x1xf32>
    %cst_81 = arith.constant 3.200000e+01 : f32
    %163 = vector.broadcast %cst_81 : f32 to vector<8x1xf32>
    %164 = arith.divf %162, %163 : vector<8x1xf32>
    %165 = vector.broadcast %157 : vector<8x1xf32> to vector<8x32xf32>
    %166 = arith.subf %149, %165 : vector<8x32xf32>
    %cst_82 = arith.constant 9.99999974E-6 : f32
    %167 = vector.broadcast %cst_82 : f32 to vector<8x1xf32>
    %168 = arith.addf %164, %167 : vector<8x1xf32>
    %169 = math.rsqrt %168 : vector<8x1xf32>
    %170 = vector.broadcast %169 : vector<8x1xf32> to vector<8x32xf32>
    %171 = arith.mulf %166, %170 : vector<8x32xf32>
    %172 = vector.shape_cast %151 : vector<32xf32> to vector<1x32xf32>
    %173 = vector.broadcast %172 : vector<1x32xf32> to vector<8x32xf32>
    %174 = arith.mulf %171, %173 : vector<8x32xf32>
    %175 = vector.shape_cast %153 : vector<32xf32> to vector<1x32xf32>
    %176 = vector.broadcast %175 : vector<1x32xf32> to vector<8x32xf32>
    %177 = arith.addf %174, %176 : vector<8x32xf32>
    %178 = arith.truncf %177 : vector<8x32xf32> to vector<8x32xbf16>
    %c0_83 = arith.constant 0 : index
    %c0_84 = arith.constant 0 : index
    %179 = vector.load %arg19[%c0_83, %c0_84] : memref<32x128xbf16, #tpu.memory_space<vmem>>, vector<32x128xbf16>
    %cst_85 = arith.constant dense<0.000000e+00> : vector<8x128xf32>
    %180 = tpu.matmul %178, %179, %cst_85 {dimension_numbers = #tpu.dot_dimension_numbers<[1], [0], [0], [1], [0, 0, 1, 1], [], []>} : vector<8x32xbf16>, vector<32x128xbf16>, vector<8x128xf32> -> vector<8x128xf32>
    %c0_86 = arith.constant 0 : index
    %c0_87 = arith.constant 0 : index
    %181 = vector.load %arg20[%c0_86, %c0_87] : memref<1x128xf32, #tpu.memory_space<vmem>>, vector<1x128xf32>
    %182 = vector.shape_cast %181 : vector<1x128xf32> to vector<128xf32>
    %183 = vector.shape_cast %182 : vector<128xf32> to vector<1x128xf32>
    %184 = vector.broadcast %183 : vector<1x128xf32> to vector<8x128xf32>
    %185 = arith.addf %180, %184 : vector<8x128xf32>
    %cst_88 = arith.constant 0.000000e+00 : f32
    %186 = vector.broadcast %cst_88 : f32 to vector<8x128xf32>
    %187 = arith.maximumf %185, %186 : vector<8x128xf32>
    %188 = arith.truncf %187 : vector<8x128xf32> to vector<8x128xbf16>
    %c0_89 = arith.constant 0 : index
    %c0_90 = arith.constant 0 : index
    %189 = vector.load %arg21[%c0_89, %c0_90] : memref<128x32xbf16, #tpu.memory_space<vmem>>, vector<128x32xbf16>
    %cst_91 = arith.constant dense<0.000000e+00> : vector<8x32xf32>
    %190 = tpu.matmul %188, %189, %cst_91 {dimension_numbers = #tpu.dot_dimension_numbers<[1], [0], [0], [1], [0, 0, 1, 1], [], []>} : vector<8x128xbf16>, vector<128x32xbf16>, vector<8x32xf32> -> vector<8x32xf32>
    %c6 = arith.constant 6 : index
    %c0_92 = arith.constant 0 : index
    %191 = vector.load %arg22[%c6, %c0_92] : memref<9x32xf32, #tpu.memory_space<vmem>>, vector<1x32xf32>
    %192 = vector.shape_cast %191 : vector<1x32xf32> to vector<32xf32>
    %193 = vector.shape_cast %192 : vector<32xf32> to vector<1x32xf32>
    %194 = vector.broadcast %193 : vector<1x32xf32> to vector<8x32xf32>
    %195 = arith.addf %190, %194 : vector<8x32xf32>
    %196 = arith.addf %177, %195 : vector<8x32xf32>
    %c7 = arith.constant 7 : index
    %c0_93 = arith.constant 0 : index
    %197 = vector.load %arg22[%c7, %c0_93] : memref<9x32xf32, #tpu.memory_space<vmem>>, vector<1x32xf32>
    %198 = vector.shape_cast %197 : vector<1x32xf32> to vector<32xf32>
    %c8 = arith.constant 8 : index
    %c0_94 = arith.constant 0 : index
    %199 = vector.load %arg22[%c8, %c0_94] : memref<9x32xf32, #tpu.memory_space<vmem>>, vector<1x32xf32>
    %200 = vector.shape_cast %199 : vector<1x32xf32> to vector<32xf32>
    %cst_95 = arith.constant dense<0.000000e+00> : vector<8xf32>
    %201 = vector.multi_reduction <add>, %196, %cst_95 [1] : vector<8x32xf32> to vector<8xf32>
    %202 = vector.shape_cast %201 : vector<8xf32> to vector<8x1xf32>
    %cst_96 = arith.constant 3.200000e+01 : f32
    %203 = vector.broadcast %cst_96 : f32 to vector<8x1xf32>
    %204 = arith.divf %202, %203 : vector<8x1xf32>
    %205 = vector.broadcast %204 : vector<8x1xf32> to vector<8x32xf32>
    %206 = arith.subf %196, %205 : vector<8x32xf32>
    %207 = arith.mulf %206, %206 : vector<8x32xf32>
    %cst_97 = arith.constant dense<0.000000e+00> : vector<8xf32>
    %208 = vector.multi_reduction <add>, %207, %cst_97 [1] : vector<8x32xf32> to vector<8xf32>
    %209 = vector.shape_cast %208 : vector<8xf32> to vector<8x1xf32>
    %cst_98 = arith.constant 3.200000e+01 : f32
    %210 = vector.broadcast %cst_98 : f32 to vector<8x1xf32>
    %211 = arith.divf %209, %210 : vector<8x1xf32>
    %212 = vector.broadcast %204 : vector<8x1xf32> to vector<8x32xf32>
    %213 = arith.subf %196, %212 : vector<8x32xf32>
    %cst_99 = arith.constant 9.99999974E-6 : f32
    %214 = vector.broadcast %cst_99 : f32 to vector<8x1xf32>
    %215 = arith.addf %211, %214 : vector<8x1xf32>
    %216 = math.rsqrt %215 : vector<8x1xf32>
    %217 = vector.broadcast %216 : vector<8x1xf32> to vector<8x32xf32>
    %218 = arith.mulf %213, %217 : vector<8x32xf32>
    %219 = vector.shape_cast %198 : vector<32xf32> to vector<1x32xf32>
    %220 = vector.broadcast %219 : vector<1x32xf32> to vector<8x32xf32>
    %221 = arith.mulf %218, %220 : vector<8x32xf32>
    %222 = vector.shape_cast %200 : vector<32xf32> to vector<1x32xf32>
    %223 = vector.broadcast %222 : vector<1x32xf32> to vector<8x32xf32>
    %224 = arith.addf %221, %223 : vector<8x32xf32>
    %c0_100 = arith.constant 0 : index
    %c0_101 = arith.constant 0 : index
    %c0_102 = arith.constant 0 : index
    %225 = vector.load %arg23[%c0_100, %c0_101, %c0_102] : memref<1x8x32xf32, #tpu.memory_space<vmem>>, vector<1x8x32xf32>
    %226 = vector.shape_cast %225 : vector<1x8x32xf32> to vector<8x32xf32>
    %227 = vector.shape_cast %224 : vector<8x32xf32> to vector<1x8x32xf32>
    tpu.vector_store %arg23[%c0_100, %c0_101, %c0_102], %227 {strides = array<i32>} : memref<1x8x32xf32, #tpu.memory_space<vmem>>, vector<1x8x32xf32>,
    return
  }
  func.func @transform_0(%arg0: i32, %arg1: i32) -> (i32, i32, i32) {
    %c0_i32 = arith.constant 0 : i32
    %c0_i32_0 = arith.constant 0 : i32
    return %arg0, %arg1, %c0_i32 : i32, i32, i32
  }
  func.func @transform_1(%arg0: i32, %arg1: i32) -> (i32, i32, i32) {
    %c0_i32 = arith.constant 0 : i32
    %c0_i32_0 = arith.constant 0 : i32
    %c0_i32_1 = arith.constant 0 : i32
    return %arg0, %c0_i32, %c0_i32_0 : i32, i32, i32
  }
  func.func @transform_2(%arg0: i32, %arg1: i32) -> (i32, i32, i32) {
    %c0_i32 = arith.constant 0 : i32
    %c0_i32_0 = arith.constant 0 : i32
    %c0_i32_1 = arith.constant 0 : i32
    return %arg0, %c0_i32, %c0_i32_0 : i32, i32, i32
  }
  func.func @transform_3(%arg0: i32, %arg1: i32) -> (i32, i32, i32) {
    %c0_i32 = arith.constant 0 : i32
    %c0_i32_0 = arith.constant 0 : i32
    %c0_i32_1 = arith.constant 0 : i32
    %c0_i32_2 = arith.constant 0 : i32
    return %c0_i32, %c0_i32_0, %c0_i32_1 : i32, i32, i32
  }
  func.func @transform_4(%arg0: i32, %arg1: i32) -> (i32, i32, i32) {
    %c0_i32 = arith.constant 0 : i32
    %c0_i32_0 = arith.constant 0 : i32
    %c0_i32_1 = arith.constant 0 : i32
    %c0_i32_2 = arith.constant 0 : i32
    return %c0_i32, %c0_i32_0, %c0_i32_1 : i32, i32, i32
  }
  func.func @transform_5(%arg0: i32, %arg1: i32) -> (i32, i32, i32) {
    %c0_i32 = arith.constant 0 : i32
    %c0_i32_0 = arith.constant 0 : i32
    %c0_i32_1 = arith.constant 0 : i32
    %c0_i32_2 = arith.constant 0 : i32
    return %c0_i32, %c0_i32_0, %c0_i32_1 : i32, i32, i32
  }
  func.func @transform_6(%arg0: i32, %arg1: i32) -> (i32, i32, i32) {
    %c0_i32 = arith.constant 0 : i32
    %c0_i32_0 = arith.constant 0 : i32
    %c0_i32_1 = arith.constant 0 : i32
    %c0_i32_2 = arith.constant 0 : i32
    return %c0_i32, %c0_i32_0, %c0_i32_1 : i32, i32, i32
  }
  func.func @transform_7(%arg0: i32, %arg1: i32) -> (i32, i32, i32) {
    %c0_i32 = arith.constant 0 : i32
    %c0_i32_0 = arith.constant 0 : i32
    %c0_i32_1 = arith.constant 0 : i32
    %c0_i32_2 = arith.constant 0 : i32
    return %c0_i32, %c0_i32_0, %c0_i32_1 : i32, i32, i32
  }
  func.func @transform_8(%arg0: i32, %arg1: i32) -> (i32, i32, i32) {
    %c0_i32 = arith.constant 0 : i32
    %c0_i32_0 = arith.constant 0 : i32
    %c0_i32_1 = arith.constant 0 : i32
    %c0_i32_2 = arith.constant 0 : i32
    return %c0_i32, %c0_i32_0, %c0_i32_1 : i32, i32, i32
  }
  func.func @transform_9(%arg0: i32, %arg1: i32) -> (i32, i32, i32) {
    %c0_i32 = arith.constant 0 : i32
    %c0_i32_0 = arith.constant 0 : i32
    %c0_i32_1 = arith.constant 0 : i32
    %c0_i32_2 = arith.constant 0 : i32
    return %c0_i32, %c0_i32_0, %c0_i32_1 : i32, i32, i32
  }
  func.func @transform_10(%arg0: i32, %arg1: i32) -> (i32, i32, i32) {
    %c0_i32 = arith.constant 0 : i32
    %c0_i32_0 = arith.constant 0 : i32
    %c0_i32_1 = arith.constant 0 : i32
    %c0_i32_2 = arith.constant 0 : i32
    return %c0_i32, %c0_i32_0, %c0_i32_1 : i32, i32, i32
  }
  func.func @transform_11(%arg0: i32, %arg1: i32) -> (i32, i32, i32) {
    %c0_i32 = arith.constant 0 : i32
    %c0_i32_0 = arith.constant 0 : i32
    %c0_i32_1 = arith.constant 0 : i32
    %c0_i32_2 = arith.constant 0 : i32
    return %c0_i32, %c0_i32_0, %c0_i32_1 : i32, i32, i32
  }
  func.func @transform_12(%arg0: i32, %arg1: i32) -> (i32, i32, i32) {
    %c0_i32 = arith.constant 0 : i32
    %c0_i32_0 = arith.constant 0 : i32
    %c0_i32_1 = arith.constant 0 : i32
    %c0_i32_2 = arith.constant 0 : i32
    return %c0_i32, %c0_i32_0, %c0_i32_1 : i32, i32, i32
  }
  func.func @transform_13(%arg0: i32, %arg1: i32) -> (i32, i32, i32) {
    %c0_i32 = arith.constant 0 : i32
    %c0_i32_0 = arith.constant 0 : i32
    %c0_i32_1 = arith.constant 0 : i32
    %c0_i32_2 = arith.constant 0 : i32
    return %c0_i32, %c0_i32_0, %c0_i32_1 : i32, i32, i32
  }
  func.func @transform_14(%arg0: i32, %arg1: i32) -> (i32, i32, i32) {
    %c0_i32 = arith.constant 0 : i32
    %c0_i32_0 = arith.constant 0 : i32
    %c0_i32_1 = arith.constant 0 : i32
    %c0_i32_2 = arith.constant 0 : i32
    return %c0_i32, %c0_i32_0, %c0_i32_1 : i32, i32, i32
  }
  func.func @transform_15(%arg0: i32, %arg1: i32) -> (i32, i32, i32) {
    %c0_i32 = arith.constant 0 : i32
    %c0_i32_0 = arith.constant 0 : i32
    %c0_i32_1 = arith.constant 0 : i32
    %c0_i32_2 = arith.constant 0 : i32
    return %c0_i32, %c0_i32_0, %c0_i32_1 : i32, i32, i32
  }
  func.func @transform_16(%arg0: i32, %arg1: i32) -> (i32, i32, i32) {
    %c0_i32 = arith.constant 0 : i32
    %c0_i32_0 = arith.constant 0 : i32
    %c0_i32_1 = arith.constant 0 : i32
    %c0_i32_2 = arith.constant 0 : i32
    return %c0_i32, %c0_i32_0, %c0_i32_1 : i32, i32, i32
  }
  func.func @transform_17(%arg0: i32, %arg1: i32) -> (i32, i32) {
    %c0_i32 = arith.constant 0 : i32
    %c0_i32_0 = arith.constant 0 : i32
    %c0_i32_1 = arith.constant 0 : i32
    return %c0_i32, %c0_i32_0 : i32, i32
  }
  func.func @transform_18(%arg0: i32, %arg1: i32) -> (i32, i32) {
    %c0_i32 = arith.constant 0 : i32
    %c0_i32_0 = arith.constant 0 : i32
    %c0_i32_1 = arith.constant 0 : i32
    return %c0_i32, %c0_i32_0 : i32, i32
  }
  func.func @transform_19(%arg0: i32, %arg1: i32) -> (i32, i32) {
    %c0_i32 = arith.constant 0 : i32
    %c0_i32_0 = arith.constant 0 : i32
    %c0_i32_1 = arith.constant 0 : i32
    return %c0_i32, %c0_i32_0 : i32, i32
  }
  func.func @transform_20(%arg0: i32, %arg1: i32) -> (i32, i32) {
    %c0_i32 = arith.constant 0 : i32
    %c0_i32_0 = arith.constant 0 : i32
    %c0_i32_1 = arith.constant 0 : i32
    return %c0_i32, %c0_i32_0 : i32, i32
  }
  func.func @transform_21(%arg0: i32, %arg1: i32) -> (i32, i32, i32) {
    %c0_i32 = arith.constant 0 : i32
    %c0_i32_0 = arith.constant 0 : i32
    return %arg0, %arg1, %c0_i32 : i32, i32, i32
  }
}

module attributes {stable_mosaic.version = 11 : i64} {
  func.func @decoder_block_kernel(%arg0: i32, %arg1: i32, %arg2: memref<1x8x32xf32, #tpu.memory_space<vmem>>, %arg3: memref<1x8x32xf32, #tpu.memory_space<vmem>>, %arg4: memref<1x8x32xbf16, #tpu.memory_space<vmem>>, %arg5: memref<2x32x16xbf16, #tpu.memory_space<vmem>>, %arg6: memref<2x1x16xf32, #tpu.memory_space<vmem>>, %arg7: memref<2x32x16xbf16, #tpu.memory_space<vmem>>, %arg8: memref<2x1x16xf32, #tpu.memory_space<vmem>>, %arg9: memref<2x32x16xbf16, #tpu.memory_space<vmem>>, %arg10: memref<2x1x16xf32, #tpu.memory_space<vmem>>, %arg11: memref<2x16x32xbf16, #tpu.memory_space<vmem>>, %arg12: memref<2x32x16xbf16, #tpu.memory_space<vmem>>, %arg13: memref<2x1x16xf32, #tpu.memory_space<vmem>>, %arg14: memref<2x32x16xbf16, #tpu.memory_space<vmem>>, %arg15: memref<2x1x16xf32, #tpu.memory_space<vmem>>, %arg16: memref<2x32x16xbf16, #tpu.memory_space<vmem>>, %arg17: memref<2x1x16xf32, #tpu.memory_space<vmem>>, %arg18: memref<2x16x32xbf16, #tpu.memory_space<vmem>>, %arg19: memref<32x128xbf16, #tpu.memory_space<vmem>>, %arg20: memref<1x128xf32, #tpu.memory_space<vmem>>, %arg21: memref<128x32xbf16, #tpu.memory_space<vmem>>, %arg22: memref<9x32xf32, #tpu.memory_space<vmem>>, %arg23: memref<1x8x32xf32, #tpu.memory_space<vmem>>) attributes {dimension_semantics = [#tpu.dimension_semantics<parallel>, #tpu.dimension_semantics<parallel>], iteration_bounds = array<i64: 2, 1>, scalar_prefetch = 0 : i64, scratch_operands = 0 : i64, tpu.core_type = #tpu.core_type<tc>, window_params = [{transform_indices = @transform_0, window_bounds = array<i64: 1, 8, 32>}, {transform_indices = @transform_1, window_bounds = array<i64: 1, 8, 32>}, {transform_indices = @transform_2, window_bounds = array<i64: 1, 8, 32>}, {pipeline_mode = #tpu.pipeline_mode<synchronous>, transform_indices = @transform_3, window_bounds = array<i64: 2, 32, 16>}, {pipeline_mode = #tpu.pipeline_mode<synchronous>, transform_indices = @transform_4, window_bounds = array<i64: 2, 1, 16>}, {pipeline_mode = #tpu.pipeline_mode<synchronous>, transform_indices = @transform_5, window_bounds = array<i64: 2, 32, 16>}, {pipeline_mode = #tpu.pipeline_mode<synchronous>, transform_indices = @transform_6, window_bounds = array<i64: 2, 1, 16>}, {pipeline_mode = #tpu.pipeline_mode<synchronous>, transform_indices = @transform_7, window_bounds = array<i64: 2, 32, 16>}, {pipeline_mode = #tpu.pipeline_mode<synchronous>, transform_indices = @transform_8, window_bounds = array<i64: 2, 1, 16>}, {pipeline_mode = #tpu.pipeline_mode<synchronous>, transform_indices = @transform_9, window_bounds = array<i64: 2, 16, 32>}, {pipeline_mode = #tpu.pipeline_mode<synchronous>, transform_indices = @transform_10, window_bounds = array<i64: 2, 32, 16>}, {pipeline_mode = #tpu.pipeline_mode<synchronous>, transform_indices = @transform_11, window_bounds = array<i64: 2, 1, 16>}, {pipeline_mode = #tpu.pipeline_mode<synchronous>, transform_indices = @transform_12, window_bounds = array<i64: 2, 32, 16>}, {pipeline_mode = #tpu.pipeline_mode<synchronous>, transform_indices = @transform_13, window_bounds = array<i64: 2, 1, 16>}, {pipeline_mode = #tpu.pipeline_mode<synchronous>, transform_indices = @transform_14, window_bounds = array<i64: 2, 32, 16>}, {pipeline_mode = #tpu.pipeline_mode<synchronous>, transform_indices = @transform_15, window_bounds = array<i64: 2, 1, 16>}, {pipeline_mode = #tpu.pipeline_mode<synchronous>, transform_indices = @transform_16, window_bounds = array<i64: 2, 16, 32>}, {pipeline_mode = #tpu.pipeline_mode<synchronous>, transform_indices = @transform_17, window_bounds = array<i64: 32, 128>}, {pipeline_mode = #tpu.pipeline_mode<synchronous>, transform_indices = @transform_18, window_bounds = array<i64: 1, 128>}, {pipeline_mode = #tpu.pipeline_mode<synchronous>, transform_indices = @transform_19, window_bounds = array<i64: 128, 32>}, {pipeline_mode = #tpu.pipeline_mode<synchronous>, transform_indices = @transform_20, window_bounds = array<i64: 9, 32>}, {transform_indices = @transform_21, window_bounds = array<i64: 1, 8, 32>}]} {
    %c0 = arith.constant 0 : index
    %c0_0 = arith.constant 0 : index
    %c0_1 = arith.constant 0 : index
    %0 = vector.load %arg2[%c0, %c0_0, %c0_1] : memref<1x8x32xf32, #tpu.memory_space<vmem>>, vector<1x8x32xf32>
    %1 = vector.shape_cast %0 : vector<1x8x32xf32> to vector<8x32xf32>
    %c0_2 = arith.constant 0 : index
    %c0_3 = arith.constant 0 : index
    %c0_4 = arith.constant 0 : index
    %2 = vector.load %arg3[%c0_2, %c0_3, %c0_4] : memref<1x8x32xf32, #tpu.memory_space<vmem>>, vector<1x8x32xf32>
    %3 = vector.shape_cast %2 : vector<1x8x32xf32> to vector<8x32xf32>
    %c0_5 = arith.constant 0 : index
    %c0_6 = arith.constant 0 : index
    %c0_7 = arith.constant 0 : index
    %4 = vector.load %arg4[%c0_5, %c0_6, %c0_7] : memref<1x8x32xbf16, #tpu.memory_space<vmem>>, vector<1x8x32xbf16>
    %5 = vector.shape_cast %4 : vector<1x8x32xbf16> to vector<8x32xbf16>
    %c8_i32 = arith.constant 8 : i32
    %6 = arith.muli %arg1, %c8_i32 : i32
    %7 = tpu.iota {dimensions = array<i32: 0>} : vector<8x8xi32>
    %8 = vector.broadcast %6 : i32 to vector<8x8xi32>
    %9 = arith.addi %8, %7 : vector<8x8xi32>
    %10 = tpu.iota {dimensions = array<i32: 1>} : vector<8x8xi32>
    %11 = arith.cmpi sgt, %10, %9 : vector<8x8xi32>
    %12 = vector.shape_cast %11 : vector<8x8xi1> to vector<1x8x8xi1>
    %13 = arith.truncf %1 : vector<8x32xf32> to vector<8x32xbf16>
    %14 = arith.truncf %3 : vector<8x32xf32> to vector<8x32xbf16>
    %15 = vector.shape_cast %13 : vector<8x32xbf16> to vector<1x8x32xbf16>
    %16 = vector.shape_cast %15 : vector<1x8x32xbf16> to vector<1x8x32xbf16>
    %17 = vector.broadcast %16 : vector<1x8x32xbf16> to vector<2x8x32xbf16>
    %18 = vector.shape_cast %14 : vector<8x32xbf16> to vector<1x8x32xbf16>
    %19 = vector.shape_cast %18 : vector<1x8x32xbf16> to vector<1x8x32xbf16>
    %20 = vector.broadcast %19 : vector<1x8x32xbf16> to vector<2x8x32xbf16>
    %c0_8 = arith.constant 0 : index
    %c0_9 = arith.constant 0 : index
    %c0_10 = arith.constant 0 : index
    %21 = vector.load %arg5[%c0_8, %c0_9, %c0_10] : memref<2x32x16xbf16, #tpu.memory_space<vmem>>, vector<2x32x16xbf16>
    %cst = arith.constant dense<0.000000e+00> : vector<2x8x16xf32>
    %22 = tpu.matmul %17, %21, %cst {dimension_numbers = #tpu.dot_dimension_numbers<[2], [1], [1], [2], [0, 0, 0, 1, 1, 2], [0], [0]>} : vector<2x8x32xbf16>, vector<2x32x16xbf16>, vector<2x8x16xf32> -> vector<2x8x16xf32>
    %c0_11 = arith.constant 0 : index
    %c0_12 = arith.constant 0 : index
    %c0_13 = arith.constant 0 : index
    %23 = vector.load %arg6[%c0_11, %c0_12, %c0_13] : memref<2x1x16xf32, #tpu.memory_space<vmem>>, vector<2x1x16xf32>
    %24 = vector.broadcast %23 : vector<2x1x16xf32> to vector<2x8x16xf32>
    %25 = arith.addf %22, %24 : vector<2x8x16xf32>
    %c0_14 = arith.constant 0 : index
    %c0_15 = arith.constant 0 : index
    %c0_16 = arith.constant 0 : index
    %26 = vector.load %arg7[%c0_14, %c0_15, %c0_16] : memref<2x32x16xbf16, #tpu.memory_space<vmem>>, vector<2x32x16xbf16>
    %cst_17 = arith.constant dense<0.000000e+00> : vector<2x8x16xf32>
    %27 = tpu.matmul %20, %26, %cst_17 {dimension_numbers = #tpu.dot_dimension_numbers<[2], [1], [1], [2], [0, 0, 0, 1, 1, 2], [0], [0]>} : vector<2x8x32xbf16>, vector<2x32x16xbf16>, vector<2x8x16xf32> -> vector<2x8x16xf32>
    %c0_18 = arith.constant 0 : index
    %c0_19 = arith.constant 0 : index
    %c0_20 = arith.constant 0 : index
    %28 = vector.load %arg8[%c0_18, %c0_19, %c0_20] : memref<2x1x16xf32, #tpu.memory_space<vmem>>, vector<2x1x16xf32>
    %29 = vector.broadcast %28 : vector<2x1x16xf32> to vector<2x8x16xf32>
    %30 = arith.addf %27, %29 : vector<2x8x16xf32>
    %c0_21 = arith.constant 0 : index
    %c0_22 = arith.constant 0 : index
    %c0_23 = arith.constant 0 : index
    %31 = vector.load %arg9[%c0_21, %c0_22, %c0_23] : memref<2x32x16xbf16, #tpu.memory_space<vmem>>, vector<2x32x16xbf16>
    %cst_24 = arith.constant dense<0.000000e+00> : vector<2x8x16xf32>
    %32 = tpu.matmul %20, %31, %cst_24 {dimension_numbers = #tpu.dot_dimension_numbers<[2], [1], [1], [2], [0, 0, 0, 1, 1, 2], [0], [0]>} : vector<2x8x32xbf16>, vector<2x32x16xbf16>, vector<2x8x16xf32> -> vector<2x8x16xf32>
    %c0_25 = arith.constant 0 : index
    %c0_26 = arith.constant 0 : index
    %c0_27 = arith.constant 0 : index
    %33 = vector.load %arg10[%c0_25, %c0_26, %c0_27] : memref<2x1x16xf32, #tpu.memory_space<vmem>>, vector<2x1x16xf32>
    %34 = vector.broadcast %33 : vector<2x1x16xf32> to vector<2x8x16xf32>
    %35 = arith.addf %32, %34 : vector<2x8x16xf32>
    %36 = arith.truncf %25 : vector<2x8x16xf32> to vector<2x8x16xbf16>
    %37 = arith.truncf %30 : vector<2x8x16xf32> to vector<2x8x16xbf16>
    %cst_28 = arith.constant dense<0.000000e+00> : vector<2x8x8xf32>
    %38 = tpu.matmul %36, %37, %cst_28 {dimension_numbers = #tpu.dot_dimension_numbers<[2], [2], [1], [1], [0, 0, 0, 1, 1, 1], [0], [0]>} : vector<2x8x16xbf16>, vector<2x8x16xbf16>, vector<2x8x8xf32> -> vector<2x8x8xf32>
    %cst_29 = arith.constant -1.000000e+30 : f32
    %39 = vector.shape_cast %12 : vector<1x8x8xi1> to vector<1x8x8xi1>
    %40 = vector.broadcast %39 : vector<1x8x8xi1> to vector<2x8x8xi1>
    %41 = vector.broadcast %cst_29 : f32 to vector<2x8x8xf32>
    %42 = arith.select %40, %41, %38 : vector<2x8x8xi1>, vector<2x8x8xf32>
    %cst_30 = arith.constant dense<0xFF800000> : vector<2x8xf32>
    %43 = vector.multi_reduction <maximumf>, %42, %cst_30 [2] : vector<2x8x8xf32> to vector<2x8xf32>
    %44 = vector.shape_cast %43 : vector<2x8xf32> to vector<2x8x1xf32>
    %45 = vector.broadcast %44 : vector<2x8x1xf32> to vector<2x8x8xf32>
    %46 = arith.subf %42, %45 : vector<2x8x8xf32>
    %47 = math.exp %46 : vector<2x8x8xf32>
    %cst_31 = arith.constant dense<0.000000e+00> : vector<2x8xf32>
    %48 = vector.multi_reduction <add>, %47, %cst_31 [2] : vector<2x8x8xf32> to vector<2x8xf32>
    %49 = vector.shape_cast %48 : vector<2x8xf32> to vector<2x8x1xf32>
    %50 = tpu.reciprocal %49 {approx = true} : vector<2x8x1xf32> -> vector<2x8x1xf32>
    %51 = vector.broadcast %50 : vector<2x8x1xf32> to vector<2x8x8xf32>
    %52 = arith.mulf %47, %51 : vector<2x8x8xf32>
    %53 = arith.truncf %52 : vector<2x8x8xf32> to vector<2x8x8xbf16>
    %54 = arith.truncf %35 : vector<2x8x16xf32> to vector<2x8x16xbf16>
    %cst_32 = arith.constant dense<0.000000e+00> : vector<2x8x16xf32>
    %55 = tpu.matmul %53, %54, %cst_32 {dimension_numbers = #tpu.dot_dimension_numbers<[2], [1], [1], [2], [0, 0, 0, 1, 1, 2], [0], [0]>} : vector<2x8x8xbf16>, vector<2x8x16xbf16>, vector<2x8x16xf32> -> vector<2x8x16xf32>
    %56 = arith.truncf %55 : vector<2x8x16xf32> to vector<2x8x16xbf16>
    %c0_33 = arith.constant 0 : index
    %c0_34 = arith.constant 0 : index
    %c0_35 = arith.constant 0 : index
    %57 = vector.load %arg11[%c0_33, %c0_34, %c0_35] : memref<2x16x32xbf16, #tpu.memory_space<vmem>>, vector<2x16x32xbf16>
    %cst_36 = arith.constant dense<0.000000e+00> : vector<2x8x32xf32>
    %58 = tpu.matmul %56, %57, %cst_36 {dimension_numbers = #tpu.dot_dimension_numbers<[2], [1], [1], [2], [0, 0, 0, 1, 1, 2], [0], [0]>} : vector<2x8x16xbf16>, vector<2x16x32xbf16>, vector<2x8x32xf32> -> vector<2x8x32xf32>
    %59 = vector.extract_strided_slice %58 {offsets = [0, 0, 0], sizes = [1, 8, 32], strides = [1, 1, 1]} : vector<2x8x32xf32> to vector<1x8x32xf32>
    %60 = vector.shape_cast %59 : vector<1x8x32xf32> to vector<8x32xf32>
    %61 = vector.extract_strided_slice %58 {offsets = [1, 0, 0], sizes = [1, 8, 32], strides = [1, 1, 1]} : vector<2x8x32xf32> to vector<1x8x32xf32>
    %62 = vector.shape_cast %61 : vector<1x8x32xf32> to vector<8x32xf32>
    %63 = arith.addf %60, %62 : vector<8x32xf32>
    %64 = arith.addf %1, %63 : vector<8x32xf32>
    %c0_37 = arith.constant 0 : index
    %c0_38 = arith.constant 0 : index
    %65 = vector.load %arg22[%c0_37, %c0_38] : memref<9x32xf32, #tpu.memory_space<vmem>>, vector<1x32xf32>
    %66 = vector.shape_cast %65 : vector<1x32xf32> to vector<32xf32>
    %67 = vector.shape_cast %66 : vector<32xf32> to vector<1x32xf32>
    %68 = vector.broadcast %67 : vector<1x32xf32> to vector<8x32xf32>
    %69 = arith.addf %64, %68 : vector<8x32xf32>
    %c1 = arith.constant 1 : index
    %c0_39 = arith.constant 0 : index
    %70 = vector.load %arg22[%c1, %c0_39] : memref<9x32xf32, #tpu.memory_space<vmem>>, vector<1x32xf32>
    %71 = vector.shape_cast %70 : vector<1x32xf32> to vector<32xf32>
    %c2 = arith.constant 2 : index
    %c0_40 = arith.constant 0 : index
    %72 = vector.load %arg22[%c2, %c0_40] : memref<9x32xf32, #tpu.memory_space<vmem>>, vector<1x32xf32>
    %73 = vector.shape_cast %72 : vector<1x32xf32> to vector<32xf32>
    %cst_41 = arith.constant dense<0.000000e+00> : vector<8xf32>
    %74 = vector.multi_reduction <add>, %69, %cst_41 [1] : vector<8x32xf32> to vector<8xf32>
    %75 = vector.shape_cast %74 : vector<8xf32> to vector<8x1xf32>
    %cst_42 = arith.constant 3.200000e+01 : f32
    %76 = vector.broadcast %cst_42 : f32 to vector<8x1xf32>
    %77 = arith.divf %75, %76 : vector<8x1xf32>
    %78 = vector.broadcast %77 : vector<8x1xf32> to vector<8x32xf32>
    %79 = arith.subf %69, %78 : vector<8x32xf32>
    %80 = arith.mulf %79, %79 : vector<8x32xf32>
    %cst_43 = arith.constant dense<0.000000e+00> : vector<8xf32>
    %81 = vector.multi_reduction <add>, %80, %cst_43 [1] : vector<8x32xf32> to vector<8xf32>
    %82 = vector.shape_cast %81 : vector<8xf32> to vector<8x1xf32>
    %cst_44 = arith.constant 3.200000e+01 : f32
    %83 = vector.broadcast %cst_44 : f32 to vector<8x1xf32>
    %84 = arith.divf %82, %83 : vector<8x1xf32>
    %85 = vector.broadcast %77 : vector<8x1xf32> to vector<8x32xf32>
    %86 = arith.subf %69, %85 : vector<8x32xf32>
    %cst_45 = arith.constant 9.99999974E-6 : f32
    %87 = vector.broadcast %cst_45 : f32 to vector<8x1xf32>
    %88 = arith.addf %84, %87 : vector<8x1xf32>
    %89 = math.rsqrt %88 : vector<8x1xf32>
    %90 = vector.broadcast %89 : vector<8x1xf32> to vector<8x32xf32>
    %91 = arith.mulf %86, %90 : vector<8x32xf32>
    %92 = vector.shape_cast %71 : vector<32xf32> to vector<1x32xf32>
    %93 = vector.broadcast %92 : vector<1x32xf32> to vector<8x32xf32>
    %94 = arith.mulf %91, %93 : vector<8x32xf32>
    %95 = vector.shape_cast %73 : vector<32xf32> to vector<1x32xf32>
    %96 = vector.broadcast %95 : vector<1x32xf32> to vector<8x32xf32>
    %97 = arith.addf %94, %96 : vector<8x32xf32>
    %98 = arith.truncf %97 : vector<8x32xf32> to vector<8x32xbf16>
    %99 = vector.shape_cast %98 : vector<8x32xbf16> to vector<1x8x32xbf16>
    %100 = vector.shape_cast %99 : vector<1x8x32xbf16> to vector<1x8x32xbf16>
    %101 = vector.broadcast %100 : vector<1x8x32xbf16> to vector<2x8x32xbf16>
    %102 = vector.shape_cast %5 : vector<8x32xbf16> to vector<1x8x32xbf16>
    %103 = vector.shape_cast %102 : vector<1x8x32xbf16> to vector<1x8x32xbf16>
    %104 = vector.broadcast %103 : vector<1x8x32xbf16> to vector<2x8x32xbf16>
    %c0_46 = arith.constant 0 : index
    %c0_47 = arith.constant 0 : index
    %c0_48 = arith.constant 0 : index
    %105 = vector.load %arg12[%c0_46, %c0_47, %c0_48] : memref<2x32x16xbf16, #tpu.memory_space<vmem>>, vector<2x32x16xbf16>
    %cst_49 = arith.constant dense<0.000000e+00> : vector<2x8x16xf32>
    %106 = tpu.matmul %101, %105, %cst_49 {dimension_numbers = #tpu.dot_dimension_numbers<[2], [1], [1], [2], [0, 0, 0, 1, 1, 2], [0], [0]>} : vector<2x8x32xbf16>, vector<2x32x16xbf16>, vector<2x8x16xf32> -> vector<2x8x16xf32>
    %c0_50 = arith.constant 0 : index
    %c0_51 = arith.constant 0 : index
    %c0_52 = arith.constant 0 : index
    %107 = vector.load %arg13[%c0_50, %c0_51, %c0_52] : memref<2x1x16xf32, #tpu.memory_space<vmem>>, vector<2x1x16xf32>
    %108 = vector.broadcast %107 : vector<2x1x16xf32> to vector<2x8x16xf32>
    %109 = arith.addf %106, %108 : vector<2x8x16xf32>
    %c0_53 = arith.constant 0 : index
    %c0_54 = arith.constant 0 : index
    %c0_55 = arith.constant 0 : index
    %110 = vector.load %arg14[%c0_53, %c0_54, %c0_55] : memref<2x32x16xbf16, #tpu.memory_space<vmem>>, vector<2x32x16xbf16>
    %cst_56 = arith.constant dense<0.000000e+00> : vector<2x8x16xf32>
    %111 = tpu.matmul %104, %110, %cst_56 {dimension_numbers = #tpu.dot_dimension_numbers<[2], [1], [1], [2], [0, 0, 0, 1, 1, 2], [0], [0]>} : vector<2x8x32xbf16>, vector<2x32x16xbf16>, vector<2x8x16xf32> -> vector<2x8x16xf32>
    %c0_57 = arith.constant 0 : index
    %c0_58 = arith.constant 0 : index
    %c0_59 = arith.constant 0 : index
    %112 = vector.load %arg15[%c0_57, %c0_58, %c0_59] : memref<2x1x16xf32, #tpu.memory_space<vmem>>, vector<2x1x16xf32>
    %113 = vector.broadcast %112 : vector<2x1x16xf32> to vector<2x8x16xf32>
    %114 = arith.addf %111, %113 : vector<2x8x16xf32>
    %c0_60 = arith.constant 0 : index
    %c0_61 = arith.constant 0 : index
    %c0_62 = arith.constant 0 : index
    %115 = vector.load %arg16[%c0_60, %c0_61, %c0_62] : memref<2x32x16xbf16, #tpu.memory_space<vmem>>, vector<2x32x16xbf16>
    %cst_63 = arith.constant dense<0.000000e+00> : vector<2x8x16xf32>
    %116 = tpu.matmul %104, %115, %cst_63 {dimension_numbers = #tpu.dot_dimension_numbers<[2], [1], [1], [2], [0, 0, 0, 1, 1, 2], [0], [0]>} : vector<2x8x32xbf16>, vector<2x32x16xbf16>, vector<2x8x16xf32> -> vector<2x8x16xf32>
    %c0_64 = arith.constant 0 : index
    %c0_65 = arith.constant 0 : index
    %c0_66 = arith.constant 0 : index
    %117 = vector.load %arg17[%c0_64, %c0_65, %c0_66] : memref<2x1x16xf32, #tpu.memory_space<vmem>>, vector<2x1x16xf32>
    %118 = vector.broadcast %117 : vector<2x1x16xf32> to vector<2x8x16xf32>
    %119 = arith.addf %116, %118 : vector<2x8x16xf32>
    %120 = arith.truncf %109 : vector<2x8x16xf32> to vector<2x8x16xbf16>
    %121 = arith.truncf %114 : vector<2x8x16xf32> to vector<2x8x16xbf16>
    %cst_67 = arith.constant dense<0.000000e+00> : vector<2x8x8xf32>
    %122 = tpu.matmul %120, %121, %cst_67 {dimension_numbers = #tpu.dot_dimension_numbers<[2], [2], [1], [1], [0, 0, 0, 1, 1, 1], [0], [0]>} : vector<2x8x16xbf16>, vector<2x8x16xbf16>, vector<2x8x8xf32> -> vector<2x8x8xf32>
    %cst_68 = arith.constant dense<0xFF800000> : vector<2x8xf32>
    %123 = vector.multi_reduction <maximumf>, %122, %cst_68 [2] : vector<2x8x8xf32> to vector<2x8xf32>
    %124 = vector.shape_cast %123 : vector<2x8xf32> to vector<2x8x1xf32>
    %125 = vector.broadcast %124 : vector<2x8x1xf32> to vector<2x8x8xf32>
    %126 = arith.subf %122, %125 : vector<2x8x8xf32>
    %127 = math.exp %126 : vector<2x8x8xf32>
    %cst_69 = arith.constant dense<0.000000e+00> : vector<2x8xf32>
    %128 = vector.multi_reduction <add>, %127, %cst_69 [2] : vector<2x8x8xf32> to vector<2x8xf32>
    %129 = vector.shape_cast %128 : vector<2x8xf32> to vector<2x8x1xf32>
    %130 = tpu.reciprocal %129 {approx = true} : vector<2x8x1xf32> -> vector<2x8x1xf32>
    %131 = vector.broadcast %130 : vector<2x8x1xf32> to vector<2x8x8xf32>
    %132 = arith.mulf %127, %131 : vector<2x8x8xf32>
    %133 = arith.truncf %132 : vector<2x8x8xf32> to vector<2x8x8xbf16>
    %134 = arith.truncf %119 : vector<2x8x16xf32> to vector<2x8x16xbf16>
    %cst_70 = arith.constant dense<0.000000e+00> : vector<2x8x16xf32>
    %135 = tpu.matmul %133, %134, %cst_70 {dimension_numbers = #tpu.dot_dimension_numbers<[2], [1], [1], [2], [0, 0, 0, 1, 1, 2], [0], [0]>} : vector<2x8x8xbf16>, vector<2x8x16xbf16>, vector<2x8x16xf32> -> vector<2x8x16xf32>
    %136 = arith.truncf %135 : vector<2x8x16xf32> to vector<2x8x16xbf16>
    %c0_71 = arith.constant 0 : index
    %c0_72 = arith.constant 0 : index
    %c0_73 = arith.constant 0 : index
    %137 = vector.load %arg18[%c0_71, %c0_72, %c0_73] : memref<2x16x32xbf16, #tpu.memory_space<vmem>>, vector<2x16x32xbf16>
    %cst_74 = arith.constant dense<0.000000e+00> : vector<2x8x32xf32>
    %138 = tpu.matmul %136, %137, %cst_74 {dimension_numbers = #tpu.dot_dimension_numbers<[2], [1], [1], [2], [0, 0, 0, 1, 1, 2], [0], [0]>} : vector<2x8x16xbf16>, vector<2x16x32xbf16>, vector<2x8x32xf32> -> vector<2x8x32xf32>
    %139 = vector.extract_strided_slice %138 {offsets = [0, 0, 0], sizes = [1, 8, 32], strides = [1, 1, 1]} : vector<2x8x32xf32> to vector<1x8x32xf32>
    %140 = vector.shape_cast %139 : vector<1x8x32xf32> to vector<8x32xf32>
    %141 = vector.extract_strided_slice %138 {offsets = [1, 0, 0], sizes = [1, 8, 32], strides = [1, 1, 1]} : vector<2x8x32xf32> to vector<1x8x32xf32>
    %142 = vector.shape_cast %141 : vector<1x8x32xf32> to vector<8x32xf32>
    %143 = arith.addf %140, %142 : vector<8x32xf32>
    %144 = arith.addf %97, %143 : vector<8x32xf32>
    %c3 = arith.constant 3 : index
    %c0_75 = arith.constant 0 : index
    %145 = vector.load %arg22[%c3, %c0_75] : memref<9x32xf32, #tpu.memory_space<vmem>>, vector<1x32xf32>
    %146 = vector.shape_cast %145 : vector<1x32xf32> to vector<32xf32>
    %147 = vector.shape_cast %146 : vector<32xf32> to vector<1x32xf32>
    %148 = vector.broadcast %147 : vector<1x32xf32> to vector<8x32xf32>
    %149 = arith.addf %144, %148 : vector<8x32xf32>
    %c4 = arith.constant 4 : index
    %c0_76 = arith.constant 0 : index
    %150 = vector.load %arg22[%c4, %c0_76] : memref<9x32xf32, #tpu.memory_space<vmem>>, vector<1x32xf32>
    %151 = vector.shape_cast %150 : vector<1x32xf32> to vector<32xf32>
    %c5 = arith.constant 5 : index
    %c0_77 = arith.constant 0 : index
    %152 = vector.load %arg22[%c5, %c0_77] : memref<9x32xf32, #tpu.memory_space<vmem>>, vector<1x32xf32>
    %153 = vector.shape_cast %152 : vector<1x32xf32> to vector<32xf32>
    %cst_78 = arith.constant dense<0.000000e+00> : vector<8xf32>
    %154 = vector.multi_reduction <add>, %149, %cst_78 [1] : vector<8x32xf32> to vector<8xf32>
    %155 = vector.shape_cast %154 : vector<8xf32> to vector<8x1xf32>
    %cst_79 = arith.constant 3.200000e+01 : f32
    %156 = vector.broadcast %cst_79 : f32 to vector<8x1xf32>
    %157 = arith.divf %155, %156 : vector<8x1xf32>
    %158 = vector.broadcast %157 : vector<8x1xf32> to vector<8x32xf32>
    %159 = arith.subf %149, %158 : vector<8x32xf32>
    %160 = arith.mulf %159, %159 : vector<8x32xf32>
    %cst_80 = arith.constant dense<0.000000e+00> : vector<8xf32>
    %161 = vector.multi_reduction <add>, %160, %cst_80 [1] : vector<8x32xf32> to vector<8xf32>
    %162 = vector.shape_cast %161 : vector<8xf32> to vector<8x1xf32>
    %cst_81 = arith.constant 3.200000e+01 : f32
    %163 = vector.broadcast %cst_81 : f32 to vector<8x1xf32>
    %164 = arith.divf %162, %163 : vector<8x1xf32>
    %165 = vector.broadcast %157 : vector<8x1xf32> to vector<8x32xf32>
    %166 = arith.subf %149, %165 : vector<8x32xf32>
    %cst_82 = arith.constant 9.99999974E-6 : f32
    %167 = vector.broadcast %cst_82 : f32 to vector<8x1xf32>
    %168 = arith.addf %164, %167 : vector<8x1xf32>
    %169 = math.rsqrt %168 : vector<8x1xf32>
    %170 = vector.broadcast %169 : vector<8x1xf32> to vector<8x32xf32>
    %171 = arith.mulf %166, %170 : vector<8x32xf32>
    %172 = vector.shape_cast %151 : vector<32xf32> to vector<1x32xf32>
    %173 = vector.broadcast %172 : vector<1x32xf32> to vector<8x32xf32>
    %174 = arith.mulf %171, %173 : vector<8x32xf32>
    %175 = vector.shape_cast %153 : vector<32xf32> to vector<1x32xf32>
    %176 = vector.broadcast %175 : vector<1x32xf32> to vector<8x32xf32>
    %177 = arith.addf %174, %176 : vector<8x32xf32>
    %178 = arith.truncf %177 : vector<8x32xf32> to vector<8x32xbf16>
    %c0_83 = arith.constant 0 : index
    %c0_84 = arith.constant 0 : index
    %179 = vector.load %arg19[%c0_83, %c0_84] : memref<32x128xbf16, #tpu.memory_space<vmem>>, vector<32x128xbf16>
    %cst_85 = arith.constant dense<0.000000e+00> : vector<8x128xf32>
    %180 = tpu.matmul %178, %179, %cst_85 {dimension_numbers = #tpu.dot_dimension_numbers<[1], [0], [0], [1], [0, 0, 1, 1], [], []>} : vector<8x32xbf16>, vector<32x128xbf16>, vector<8x128xf32> -> vector<8x128xf32>
    %c0_86 = arith.constant 0 : index
    %c0_87 = arith.constant 0 : index
    %181 = vector.load %arg20[%c0_86, %c0_87] : memref<1x128xf32, #tpu.memory_space<vmem>>, vector<1x128xf32>
    %182 = vector.shape_cast %181 : vector<1x128xf32> to vector<128xf32>
    %183 = vector.shape_cast %182 : vector<128xf32> to vector<1x128xf32>
    %184 = vector.broadcast %183 : vector<1x128xf32> to vector<8x128xf32>
    %185 = arith.addf %180, %184 : vector<8x128xf32>
    %cst_88 = arith.constant 0.000000e+00 : f32
    %186 = vector.broadcast %cst_88 : f32 to vector<8x128xf32>
    %187 = arith.maximumf %185, %186 : vector<8x128xf32>
    %188 = arith.truncf %187 : vector<8x128xf32> to vector<8x128xbf16>
    %c0_89 = arith.constant 0 : index
    %c0_90 = arith.constant 0 : index
    %189 = vector.load %arg21[%c0_89, %c0_90] : memref<128x32xbf16, #tpu.memory_space<vmem>>, vector<128x32xbf16>
    %cst_91 = arith.constant dense<0.000000e+00> : vector<8x32xf32>
    %190 = tpu.matmul %188, %189, %cst_91 {dimension_numbers = #tpu.dot_dimension_numbers<[1], [0], [0], [1], [0, 0, 1, 1], [], []>} : vector<8x128xbf16>, vector<128x32xbf16>, vector<8x32xf32> -> vector<8x32xf32>
    %c6 = arith.constant 6 : index
    %c0_92 = arith.constant 0 : index
    %191 = vector.load %arg22[%c6, %c0_92] : memref<9x32xf32, #tpu.memory_space<vmem>>, vector<1x32xf32>
    %192 = vector.shape_cast %191 : vector<1x32xf32> to vector<32xf32>
    %193 = vector.shape_cast %192 : vector<32xf32> to vector<1x32xf32>
    %194 = vector.broadcast %193 : vector<1x32xf32> to vector<8x32xf32>
    %195 = arith.addf %190, %194 : vector<8x32xf32>
    %196 = arith.addf %177, %195 : vector<8x32xf32>
    %c7 = arith.constant 7 : index
    %c0_93 = arith.constant 0 : index
    %197 = vector.load %arg22[%c7, %c0_93] : memref<9x32xf32, #tpu.memory_space<vmem>>, vector<1x32xf32>
    %198 = vector.shape_cast %197 : vector<1x32xf32> to vector<32xf32>
    %c8 = arith.constant 8 : index
    %c0_94 = arith.constant 0 : index
    %199 = vector.load %arg22[%c8, %c0_94] : memref<9x32xf32, #tpu.memory_space<vmem>>, vector<1x32xf32>
    %200 = vector.shape_cast %199 : vector<1x32xf32> to vector<32xf32>
    %cst_95 = arith.constant dense<0.000000e+00> : vector<8xf32>
    %201 = vector.multi_reduction <add>, %196, %cst_95 [1] : vector<8x32xf32> to vector<8xf32>
    %202 = vector.shape_cast %201 : vector<8xf32> to vector<8x1xf32>
    %cst_96 = arith.constant 3.200000e+01 : f32
    %203 = vector.broadcast %cst_96 : f32 to vector<8x1xf32>
    %204 = arith.divf %202, %203 : vector<8x1xf32>
    %205 = vector.broadcast %204 : vector<8x1xf32> to vector<8x32xf32>
    %206 = arith.subf %196, %205 : vector<8x32xf32>
    %207 = arith.mulf %206, %206 : vector<8x32xf32>
    %cst_97 = arith.constant dense<0.000000e+00> : vector<8xf32>
    %208 = vector.multi_reduction <add>, %207, %cst_97 [1] : vector<8x32xf32> to vector<8xf32>
    %209 = vector.shape_cast %208 : vector<8xf32> to vector<8x1xf32>
    %cst_98 = arith.constant 3.200000e+01 : f32
    %210 = vector.broadcast %cst_98 : f32 to vector<8x1xf32>
    %211 = arith.divf %209, %210 : vector<8x1xf32>
    %212 = vector.broadcast %204 : vector<8x1xf32> to vector<8x32xf32>
    %213 = arith.subf %196, %212 : vector<8x32xf32>
    %cst_99 = arith.constant 9.99999974E-6 : f32
    %214 = vector.broadcast %cst_99 : f32 to vector<8x1xf32>
    %215 = arith.addf %211, %214 : vector<8x1xf32>
    %216 = math.rsqrt %215 : vector<8x1xf32>
    %217 = vector.broadcast %216 : vector<8x1xf32> to vector<8x32xf32>
    %218 = arith.mulf %213, %217 : vector<8x32xf32>
    %219 = vector.shape_cast %198 : vector<32xf32> to vector<1x32xf32>
    %220 = vector.broadcast %219 : vector<1x32xf32> to vector<8x32xf32>
    %221 = arith.mulf %218, %220 : vector<8x32xf32>
    %222 = vector.shape_cast %200 : vector<32xf32> to vector<1x32xf32>
    %223 = vector.broadcast %222 : vector<1x32xf32> to vector<8x32xf32>
    %224 = arith.addf %221, %223 : vector<8x32xf32>
    %c0_100 = arith.constant 0 : index
    %c0_101 = arith.constant 0 : index
    %c0_102 = arith.constant 0 : index
    %225 = vector.load %arg23[%c0_100, %c0_101, %c0_102] : memref<1x8x32xf32, #tpu.memory_space<vmem>>, vector<1x8x32xf32>
    %226 = vector.shape_cast %225 : vector<1x8x32xf32> to vector<8x32xf32>
    %227 = vector.shape_cast %224 : vector<8x32xf32> to vector<1x8x32xf32>
    tpu.vector_store %arg23[%c0_100, %c0_101, %c0_102], %227 {strides = array<i32>} : memref<1x8x32xf32, #tpu.memory_space<vmem>>, vector<1x8x32xf32>,
    return
  }
  func.func @transform_0(%arg0: i32, %arg1: i32) -> (i32, i32, i32) {
    %c0_i32 = arith.constant 0 : i32
    %c0_i32_0 = arith.constant 0 : i32
    return %arg0, %arg1, %c0_i32 : i32, i32, i32
  }
  func.func @transform_1(%arg0: i32, %arg1: i32) -> (i32, i32, i32) {
    %c0_i32 = arith.constant 0 : i32
    %c0_i32_0 = arith.constant 0 : i32
    %c0_i32_1 = arith.constant 0 : i32
    return %arg0, %c0_i32, %c0_i32_0 : i32, i32, i32
  }
  func.func @transform_2(%arg0: i32, %arg1: i32) -> (i32, i32, i32) {
    %c0_i32 = arith.constant 0 : i32
    %c0_i32_0 = arith.constant 0 : i32
    %c0_i32_1 = arith.constant 0 : i32
    return %arg0, %c0_i32, %c0_i32_0 : i32, i32, i32
  }
  func.func @transform_3(%arg0: i32, %arg1: i32) -> (i32, i32, i32) {
    %c0_i32 = arith.constant 0 : i32
    %c0_i32_0 = arith.constant 0 : i32
    %c0_i32_1 = arith.constant 0 : i32
    %c0_i32_2 = arith.constant 0 : i32
    return %c0_i32, %c0_i32_0, %c0_i32_1 : i32, i32, i32
  }
  func.func @transform_4(%arg0: i32, %arg1: i32) -> (i32, i32, i32) {
    %c0_i32 = arith.constant 0 : i32
    %c0_i32_0 = arith.constant 0 : i32
    %c0_i32_1 = arith.constant 0 : i32
    %c0_i32_2 = arith.constant 0 : i32
    return %c0_i32, %c0_i32_0, %c0_i32_1 : i32, i32, i32
  }
  func.func @transform_5(%arg0: i32, %arg1: i32) -> (i32, i32, i32) {
    %c0_i32 = arith.constant 0 : i32
    %c0_i32_0 = arith.constant 0 : i32
    %c0_i32_1 = arith.constant 0 : i32
    %c0_i32_2 = arith.constant 0 : i32
    return %c0_i32, %c0_i32_0, %c0_i32_1 : i32, i32, i32
  }
  func.func @transform_6(%arg0: i32, %arg1: i32) -> (i32, i32, i32) {
    %c0_i32 = arith.constant 0 : i32
    %c0_i32_0 = arith.constant 0 : i32
    %c0_i32_1 = arith.constant 0 : i32
    %c0_i32_2 = arith.constant 0 : i32
    return %c0_i32, %c0_i32_0, %c0_i32_1 : i32, i32, i32
  }
  func.func @transform_7(%arg0: i32, %arg1: i32) -> (i32, i32, i32) {
    %c0_i32 = arith.constant 0 : i32
    %c0_i32_0 = arith.constant 0 : i32
    %c0_i32_1 = arith.constant 0 : i32
    %c0_i32_2 = arith.constant 0 : i32
    return %c0_i32, %c0_i32_0, %c0_i32_1 : i32, i32, i32
  }
  func.func @transform_8(%arg0: i32, %arg1: i32) -> (i32, i32, i32) {
    %c0_i32 = arith.constant 0 : i32
    %c0_i32_0 = arith.constant 0 : i32
    %c0_i32_1 = arith.constant 0 : i32
    %c0_i32_2 = arith.constant 0 : i32
    return %c0_i32, %c0_i32_0, %c0_i32_1 : i32, i32, i32
  }
  func.func @transform_9(%arg0: i32, %arg1: i32) -> (i32, i32, i32) {
    %c0_i32 = arith.constant 0 : i32
    %c0_i32_0 = arith.constant 0 : i32
    %c0_i32_1 = arith.constant 0 : i32
    %c0_i32_2 = arith.constant 0 : i32
    return %c0_i32, %c0_i32_0, %c0_i32_1 : i32, i32, i32
  }
  func.func @transform_10(%arg0: i32, %arg1: i32) -> (i32, i32, i32) {
    %c0_i32 = arith.constant 0 : i32
    %c0_i32_0 = arith.constant 0 : i32
    %c0_i32_1 = arith.constant 0 : i32
    %c0_i32_2 = arith.constant 0 : i32
    return %c0_i32, %c0_i32_0, %c0_i32_1 : i32, i32, i32
  }
  func.func @transform_11(%arg0: i32, %arg1: i32) -> (i32, i32, i32) {
    %c0_i32 = arith.constant 0 : i32
    %c0_i32_0 = arith.constant 0 : i32
    %c0_i32_1 = arith.constant 0 : i32
    %c0_i32_2 = arith.constant 0 : i32
    return %c0_i32, %c0_i32_0, %c0_i32_1 : i32, i32, i32
  }
  func.func @transform_12(%arg0: i32, %arg1: i32) -> (i32, i32, i32) {
    %c0_i32 = arith.constant 0 : i32
    %c0_i32_0 = arith.constant 0 : i32
    %c0_i32_1 = arith.constant 0 : i32
    %c0_i32_2 = arith.constant 0 : i32
    return %c0_i32, %c0_i32_0, %c0_i32_1 : i32, i32, i32
  }
  func.func @transform_13(%arg0: i32, %arg1: i32) -> (i32, i32, i32) {
    %c0_i32 = arith.constant 0 : i32
    %c0_i32_0 = arith.constant 0 : i32
    %c0_i32_1 = arith.constant 0 : i32
    %c0_i32_2 = arith.constant 0 : i32
    return %c0_i32, %c0_i32_0, %c0_i32_1 : i32, i32, i32
  }
  func.func @transform_14(%arg0: i32, %arg1: i32) -> (i32, i32, i32) {
    %c0_i32 = arith.constant 0 : i32
    %c0_i32_0 = arith.constant 0 : i32
    %c0_i32_1 = arith.constant 0 : i32
    %c0_i32_2 = arith.constant 0 : i32
    return %c0_i32, %c0_i32_0, %c0_i32_1 : i32, i32, i32
  }
  func.func @transform_15(%arg0: i32, %arg1: i32) -> (i32, i32, i32) {
    %c0_i32 = arith.constant 0 : i32
    %c0_i32_0 = arith.constant 0 : i32
    %c0_i32_1 = arith.constant 0 : i32
    %c0_i32_2 = arith.constant 0 : i32
    return %c0_i32, %c0_i32_0, %c0_i32_1 : i32, i32, i32
  }
  func.func @transform_16(%arg0: i32, %arg1: i32) -> (i32, i32, i32) {
    %c0_i32 = arith.constant 0 : i32
    %c0_i32_0 = arith.constant 0 : i32
    %c0_i32_1 = arith.constant 0 : i32
    %c0_i32_2 = arith.constant 0 : i32
    return %c0_i32, %c0_i32_0, %c0_i32_1 : i32, i32, i32
  }
  func.func @transform_17(%arg0: i32, %arg1: i32) -> (i32, i32) {
    %c0_i32 = arith.constant 0 : i32
    %c0_i32_0 = arith.constant 0 : i32
    %c0_i32_1 = arith.constant 0 : i32
    return %c0_i32, %c0_i32_0 : i32, i32
  }
  func.func @transform_18(%arg0: i32, %arg1: i32) -> (i32, i32) {
    %c0_i32 = arith.constant 0 : i32
    %c0_i32_0 = arith.constant 0 : i32
    %c0_i32_1 = arith.constant 0 : i32
    return %c0_i32, %c0_i32_0 : i32, i32
  }
  func.func @transform_19(%arg0: i32, %arg1: i32) -> (i32, i32) {
    %c0_i32 = arith.constant 0 : i32
    %c0_i32_0 = arith.constant 0 : i32
    %c0_i32_1 = arith.constant 0 : i32
    return %c0_i32, %c0_i32_0 : i32, i32
  }
  func.func @transform_20(%arg0: i32, %arg1: i32) -> (i32, i32) {
    %c0_i32 = arith.constant 0 : i32
    %c0_i32_0 = arith.constant 0 : i32
    %c0_i32_1 = arith.constant 0 : i32
    return %c0_i32, %c0_i32_0 : i32, i32
  }
  func.func @transform_21(%arg0: i32, %arg1: i32) -> (i32, i32, i32) {
    %c0_i32 = arith.constant 0 : i32
    %c0_i32_0 = arith.constant 0 : i32
    return %arg0, %arg1, %c0_i32 : i32, i32, i32
  }
}

</mosaic_0001>

<llo_original>
// kernel: tpu_custom_call.1
$region0: #{tpu_custom_call.1}
  #allocation0 [shape = 'u32[]', space=smem, size = 0x4, offset = 0x4, fixed_abs, tag = 'smem constant byte address 0x4 - core index']
  #allocation1 [shape = 'u32[144,128]{1,0:T(1,128)}', space=vmem, size = 0x12000, scoped, tag = 'internal scratch']
  %s0 = inlined_call_operand.vmem [shape: f32[2,8,32], index: 0, kind: input, shape index: {}]
  %s1 = inlined_call_operand.vmem [shape: f32[2,8,32], index: 1, kind: input, shape index: {}]
  %s2 = inlined_call_operand.vmem [shape: bf16[2,8,32], index: 2, kind: input, shape index: {}]
  %s3 = inlined_call_operand.vmem [shape: bf16[2,32,16], index: 3, kind: input, shape index: {}]
  %s4 = inlined_call_operand.vmem [shape: f32[2,1,16], index: 4, kind: input, shape index: {}]
  %s5 = inlined_call_operand.vmem [shape: bf16[2,32,16], index: 5, kind: input, shape index: {}]
  %s6 = inlined_call_operand.vmem [shape: f32[2,1,16], index: 6, kind: input, shape index: {}]
  %s7 = inlined_call_operand.vmem [shape: bf16[2,32,16], index: 7, kind: input, shape index: {}]
  %s8 = inlined_call_operand.vmem [shape: f32[2,1,16], index: 8, kind: input, shape index: {}]
  %s9 = inlined_call_operand.vmem [shape: bf16[2,16,32], index: 9, kind: input, shape index: {}]
  %s10 = inlined_call_operand.vmem [shape: bf16[2,32,16], index: 10, kind: input, shape index: {}]
  %s11 = inlined_call_operand.vmem [shape: f32[2,1,16], index: 11, kind: input, shape index: {}]
  %s12 = inlined_call_operand.vmem [shape: bf16[2,32,16], index: 12, kind: input, shape index: {}]
  %s13 = inlined_call_operand.vmem [shape: f32[2,1,16], index: 13, kind: input, shape index: {}]
  %s14 = inlined_call_operand.vmem [shape: bf16[2,32,16], index: 14, kind: input, shape index: {}]
  %s15 = inlined_call_operand.vmem [shape: f32[2,1,16], index: 15, kind: input, shape index: {}]
  %s16 = inlined_call_operand.vmem [shape: bf16[2,16,32], index: 16, kind: input, shape index: {}]
  %s17 = inlined_call_operand.vmem [shape: bf16[32,128], index: 17, kind: input, shape index: {}]
  %s18 = inlined_call_operand.vmem [shape: f32[1,128], index: 18, kind: input, shape index: {}]
  %s19 = inlined_call_operand.vmem [shape: bf16[128,32], index: 19, kind: input, shape index: {}]
  %s20 = inlined_call_operand.vmem [shape: f32[9,32], index: 20, kind: input, shape index: {}]
  %s21 = inlined_call_operand.hbm [shape: f32[2,8,32], index: 21, kind: output, shape index: {}]
  %s22 = sld [smem:[#allocation0]]
  $region117: #{tpu_custom_call.1} parent=0
    _
  %s24 = ssub.s32 1, %s22
  %s25 = scalar_select 0, %s24, %s22
  $region1: #{tpu_custom_call.1} parent=0
    #allocation2 [shape = 'u8[8192]{0}', space=vmem, size = 0x2000, scoped, tag = 'output window, operand 0']
    #allocation3 [shape = 's32[2]{0}', space=sflag, size = 0x8, scoped, tag = 'scoped memory for tpu_custom_call.1']
    %26 = vsyncpa [#allocation3], 0
    %s27 = scalar_lea.sflag [#allocation3], 1
    %28 = vsyncpa %s27, 0
    loop: start=0, step=1, limit=4
    $region2: #{tpu_custom_call.1} parent=1 // loop_pre_header
      _
    $region3: #{tpu_custom_call.1} parent=1 // loop_header
      %s30 = sphi 0, %s34
      %p31 = scmp.ge.s32.totalorder %s30, 4
      %s37 = sphi 0, %s49
      %s38 = sphi 0, %s45
      %s39 = sphi 0, %s37
      %s40 = sphi 0, %s38
      %s41 = sphi 0, %s39
      %s42 = sphi 0, %s40
      %s54 = sphi 0, %s56
      %s57 = sphi 0, %s54
      %s58 = sphi 0, %s57
      %s74 = sphi 0, %s58
      %s80 = sphi 0, %s82
      %s83 = sphi 0, %s80
      %s84 = sphi 0, %s83
      %s100 = sphi 0, %s84
      %s106 = sphi 0, %s108
      %s109 = sphi 0, %s106
      %s110 = sphi 0, %s109
      %s126 = sphi 0, %s110
      %s130 = sphi 0, %s130
      %s132 = sphi 0, %s130
      %s133 = sphi 0, %s132
      %s147 = sphi 0, %s133
      %s151 = sphi 0, %s151
      %s153 = sphi 0, %s151
      %s154 = sphi 0, %s153
      %s168 = sphi 0, %s154
      %s172 = sphi 0, %s172
      %s174 = sphi 0, %s172
      %s175 = sphi 0, %s174
      %s189 = sphi 0, %s175
      %s193 = sphi 0, %s193
      %s195 = sphi 0, %s193
      %s196 = sphi 0, %s195
      %s210 = sphi 0, %s196
      %s214 = sphi 0, %s214
      %s216 = sphi 0, %s214
      %s217 = sphi 0, %s216
      %s231 = sphi 0, %s217
      %s235 = sphi 0, %s235
      %s237 = sphi 0, %s235
      %s238 = sphi 0, %s237
      %s252 = sphi 0, %s238
      %s256 = sphi 0, %s256
      %s258 = sphi 0, %s256
      %s259 = sphi 0, %s258
      %s273 = sphi 0, %s259
      %s277 = sphi 0, %s277
      %s279 = sphi 0, %s277
      %s280 = sphi 0, %s279
      %s294 = sphi 0, %s280
      %s298 = sphi 0, %s298
      %s300 = sphi 0, %s298
      %s301 = sphi 0, %s300
      %s315 = sphi 0, %s301
      %s319 = sphi 0, %s319
      %s321 = sphi 0, %s319
      %s322 = sphi 0, %s321
      %s336 = sphi 0, %s322
      %s340 = sphi 0, %s340
      %s342 = sphi 0, %s340
      %s343 = sphi 0, %s342
      %s357 = sphi 0, %s343
      %s361 = sphi 0, %s361
      %s363 = sphi 0, %s361
      %s364 = sphi 0, %s363
      %s378 = sphi 0, %s364
      %s382 = sphi 0, %s382
      %s384 = sphi 0, %s382
      %s385 = sphi 0, %s384
      %s399 = sphi 0, %s385
      %s403 = sphi 0, %s403
      %s405 = sphi 0, %s403
      %s406 = sphi 0, %s405
      %s420 = sphi 0, %s406
      %s424 = sphi 0, %s424
      %s426 = sphi 0, %s424
      %s427 = sphi 0, %s426
      %s441 = sphi 0, %s427
      %s445 = sphi 0, %s445
      %s447 = sphi 0, %s445
      %s448 = sphi 0, %s447
      %s462 = sphi 0, %s448
      %s466 = sphi 0, %s466
      %s468 = sphi 0, %s466
      %s469 = sphi 0, %s468
      %s483 = sphi 0, %s469
      %s487 = sphi 0, %s487
      %s489 = sphi 0, %s487
      %s490 = sphi 0, %s489
      %s504 = sphi 0, %s490
      %s512 = sphi 0, %s514
      %s515 = sphi 0, %s512
      %s516 = sphi 0, %s515
      %s532 = sphi 0, %s516
    $region4: #{tpu_custom_call.1} parent=1 // loop_header_branch
      %33 = sbr.rel (%p31) target = $region8
    $region5: #{tpu_custom_call.1} parent=1 // loop_body
      %s35 = ssub.s32 %s30, 1
      %s36 = ssub.s32 %s30, 2
      %s43 = sadd.s32 1, %s38
      %p44 = scmp.ge.s32.totalorder %s43, 1
      %s45 = scalar_select %p44, 0, %s43
      %s46 = sadd.s32 1, %s37
      %s47 = scalar_select %p44, %s46, %s37
      %p48 = scmp.ge.s32.totalorder %s47, 2
      %s49 = scalar_select %p48, 0, %s47
      %s50 = ssub.s32 %s37, %s49
      %s51 = ssub.s32 %s38, %s45
      %s52 = sor.u32 %s50, %s51
      %p53 = scmp.eq.s32.totalorder %s52, 0
      %s55 = sadd.s32 %s54, 1
      %s56 = scalar_select %p53, %s54, %s55
      %p59 = pneg %p53
      %p60 = scmp.eq.s32.totalorder %s30, 1
      %p61 = por %p59, %p60
      %p62 = scmp.ne.s32.totalorder %s54, %s57
      %p63 = scmp.eq.s32.totalorder %s30, 0
      %p64 = por %p62, %p63
      %p65 = scmp.ne.s32.totalorder %s54, %s57
      %p66 = scmp.eq.s32.totalorder %s35, 1
      %p67 = por %p65, %p66
      %p68 = scmp.ne.s32.totalorder %s57, %s58
      %p69 = scmp.eq.s32.totalorder %s35, 0
      %p70 = por %p68, %p69
      %p71 = scmp.ne.s32.totalorder %s57, %s58
      %p72 = scmp.eq.s32.totalorder %s36, 1
      %p73 = por %p71, %p72
      %p75 = scmp.ne.s32.totalorder %s58, %s74
      %p76 = scmp.eq.s32.totalorder %s36, 0
      %p77 = por %p75, %p76
      %s78 = ssub.s32 %s37, %s49
      %p79 = scmp.eq.s32.totalorder %s78, 0
      %s81 = sadd.s32 %s80, 1
      %s82 = scalar_select %p79, %s80, %s81
      %p85 = pneg %p79
      %p86 = scmp.eq.s32.totalorder %s30, 1
      %p87 = por %p85, %p86
      %p88 = scmp.ne.s32.totalorder %s80, %s83
      %p89 = scmp.eq.s32.totalorder %s30, 0
      %p90 = por %p88, %p89
      %p91 = scmp.ne.s32.totalorder %s80, %s83
      %p92 = scmp.eq.s32.totalorder %s35, 1
      %p93 = por %p91, %p92
      %p94 = scmp.ne.s32.totalorder %s83, %s84
      %p95 = scmp.eq.s32.totalorder %s35, 0
      %p96 = por %p94, %p95
      %p97 = scmp.ne.s32.totalorder %s83, %s84
      %p98 = scmp.eq.s32.totalorder %s36, 1
      %p99 = por %p97, %p98
      %p101 = scmp.ne.s32.totalorder %s84, %s100
      %p102 = scmp.eq.s32.totalorder %s36, 0
      %p103 = por %p101, %p102
      %s104 = ssub.s32 %s37, %s49
      %p105 = scmp.eq.s32.totalorder %s104, 0
      %s107 = sadd.s32 %s106, 1
      %s108 = scalar_select %p105, %s106, %s107
      %p111 = pneg %p105
      %p112 = scmp.eq.s32.totalorder %s30, 1
      %p113 = por %p111, %p112
      %p114 = scmp.ne.s32.totalorder %s106, %s109
      %p115 = scmp.eq.s32.totalorder %s30, 0
      %p116 = por %p114, %p115
      %p117 = scmp.ne.s32.totalorder %s106, %s109
      %p118 = scmp.eq.s32.totalorder %s35, 1
      %p119 = por %p117, %p118
      %p120 = scmp.ne.s32.totalorder %s109, %s110
      %p121 = scmp.eq.s32.totalorder %s35, 0
      %p122 = por %p120, %p121
      %p123 = scmp.ne.s32.totalorder %s109, %s110
      %p124 = scmp.eq.s32.totalorder %s36, 1
      %p125 = por %p123, %p124
      %p127 = scmp.ne.s32.totalorder %s110, %s126
      %p128 = scmp.eq.s32.totalorder %s36, 0
      %p129 = por %p127, %p128
      %s131 = sadd.s32 %s130, 1
      %p134 = scmp.eq.s32.totalorder %s30, 1
      %p135 = scmp.ne.s32.totalorder %s130, %s132
      %p136 = scmp.eq.s32.totalorder %s30, 0
      %p137 = por %p135, %p136
      %p138 = scmp.ne.s32.totalorder %s130, %s132
      %p139 = scmp.eq.s32.totalorder %s35, 1
      %p140 = por %p138, %p139
      %p141 = scmp.ne.s32.totalorder %s132, %s133
      %p142 = scmp.eq.s32.totalorder %s35, 0
      %p143 = por %p141, %p142
      %p144 = scmp.ne.s32.totalorder %s132, %s133
      %p145 = scmp.eq.s32.totalorder %s36, 1
      %p146 = por %p144, %p145
      %p148 = scmp.ne.s32.totalorder %s133, %s147
      %p149 = scmp.eq.s32.totalorder %s36, 0
      %p150 = por %p148, %p149
      %s152 = sadd.s32 %s151, 1
      %p155 = scmp.eq.s32.totalorder %s30, 1
      %p156 = scmp.ne.s32.totalorder %s151, %s153
      %p157 = scmp.eq.s32.totalorder %s30, 0
      %p158 = por %p156, %p157
      %p159 = scmp.ne.s32.totalorder %s151, %s153
      %p160 = scmp.eq.s32.totalorder %s35, 1
      %p161 = por %p159, %p160
      %p162 = scmp.ne.s32.totalorder %s153, %s154
      %p163 = scmp.eq.s32.totalorder %s35, 0
      %p164 = por %p162, %p163
      %p165 = scmp.ne.s32.totalorder %s153, %s154
      %p166 = scmp.eq.s32.totalorder %s36, 1
      %p167 = por %p165, %p166
      %p169 = scmp.ne.s32.totalorder %s154, %s168
      %p170 = scmp.eq.s32.totalorder %s36, 0
      %p171 = por %p169, %p170
      %s173 = sadd.s32 %s172, 1
      %p176 = scmp.eq.s32.totalorder %s30, 1
      %p177 = scmp.ne.s32.totalorder %s172, %s174
      %p178 = scmp.eq.s32.totalorder %s30, 0
      %p179 = por %p177, %p178
      %p180 = scmp.ne.s32.totalorder %s172, %s174
      %p181 = scmp.eq.s32.totalorder %s35, 1
      %p182 = por %p180, %p181
      %p183 = scmp.ne.s32.totalorder %s174, %s175
      %p184 = scmp.eq.s32.totalorder %s35, 0
      %p185 = por %p183, %p184
      %p186 = scmp.ne.s32.totalorder %s174, %s175
      %p187 = scmp.eq.s32.totalorder %s36, 1
      %p188 = por %p186, %p187
      %p190 = scmp.ne.s32.totalorder %s175, %s189
      %p191 = scmp.eq.s32.totalorder %s36, 0
      %p192 = por %p190, %p191
      %s194 = sadd.s32 %s193, 1
      %p197 = scmp.eq.s32.totalorder %s30, 1
      %p198 = scmp.ne.s32.totalorder %s193, %s195
      %p199 = scmp.eq.s32.totalorder %s30, 0
      %p200 = por %p198, %p199
      %p201 = scmp.ne.s32.totalorder %s193, %s195
      %p202 = scmp.eq.s32.totalorder %s35, 1
      %p203 = por %p201, %p202
      %p204 = scmp.ne.s32.totalorder %s195, %s196
      %p205 = scmp.eq.s32.totalorder %s35, 0
      %p206 = por %p204, %p205
      %p207 = scmp.ne.s32.totalorder %s195, %s196
      %p208 = scmp.eq.s32.totalorder %s36, 1
      %p209 = por %p207, %p208
      %p211 = scmp.ne.s32.totalorder %s196, %s210
      %p212 = scmp.eq.s32.totalorder %s36, 0
      %p213 = por %p211, %p212
      %s215 = sadd.s32 %s214, 1
      %p218 = scmp.eq.s32.totalorder %s30, 1
      %p219 = scmp.ne.s32.totalorder %s214, %s216
      %p220 = scmp.eq.s32.totalorder %s30, 0
      %p221 = por %p219, %p220
      %p222 = scmp.ne.s32.totalorder %s214, %s216
      %p223 = scmp.eq.s32.totalorder %s35, 1
      %p224 = por %p222, %p223
      %p225 = scmp.ne.s32.totalorder %s216, %s217
      %p226 = scmp.eq.s32.totalorder %s35, 0
      %p227 = por %p225, %p226
      %p228 = scmp.ne.s32.totalorder %s216, %s217
      %p229 = scmp.eq.s32.totalorder %s36, 1
      %p230 = por %p228, %p229
      %p232 = scmp.ne.s32.totalorder %s217, %s231
      %p233 = scmp.eq.s32.totalorder %s36, 0
      %p234 = por %p232, %p233
      %s236 = sadd.s32 %s235, 1
      %p239 = scmp.eq.s32.totalorder %s30, 1
      %p240 = scmp.ne.s32.totalorder %s235, %s237
      %p241 = scmp.eq.s32.totalorder %s30, 0
      %p242 = por %p240, %p241
      %p243 = scmp.ne.s32.totalorder %s235, %s237
      %p244 = scmp.eq.s32.totalorder %s35, 1
      %p245 = por %p243, %p244
      %p246 = scmp.ne.s32.totalorder %s237, %s238
      %p247 = scmp.eq.s32.totalorder %s35, 0
      %p248 = por %p246, %p247
      %p249 = scmp.ne.s32.totalorder %s237, %s238
      %p250 = scmp.eq.s32.totalorder %s36, 1
      %p251 = por %p249, %p250
      %p253 = scmp.ne.s32.totalorder %s238, %s252
      %p254 = scmp.eq.s32.totalorder %s36, 0
      %p255 = por %p253, %p254
      %s257 = sadd.s32 %s256, 1
      %p260 = scmp.eq.s32.totalorder %s30, 1
      %p261 = scmp.ne.s32.totalorder %s256, %s258
      %p262 = scmp.eq.s32.totalorder %s30, 0
      %p263 = por %p261, %p262
      %p264 = scmp.ne.s32.totalorder %s256, %s258
      %p265 = scmp.eq.s32.totalorder %s35, 1
      %p266 = por %p264, %p265
      %p267 = scmp.ne.s32.totalorder %s258, %s259
      %p268 = scmp.eq.s32.totalorder %s35, 0
      %p269 = por %p267, %p268
      %p270 = scmp.ne.s32.totalorder %s258, %s259
      %p271 = scmp.eq.s32.totalorder %s36, 1
      %p272 = por %p270, %p271
      %p274 = scmp.ne.s32.totalorder %s259, %s273
      %p275 = scmp.eq.s32.totalorder %s36, 0
      %p276 = por %p274, %p275
      %s278 = sadd.s32 %s277, 1
      %p281 = scmp.eq.s32.totalorder %s30, 1
      %p282 = scmp.ne.s32.totalorder %s277, %s279
      %p283 = scmp.eq.s32.totalorder %s30, 0
      %p284 = por %p282, %p283
      %p285 = scmp.ne.s32.totalorder %s277, %s279
      %p286 = scmp.eq.s32.totalorder %s35, 1
      %p287 = por %p285, %p286
      %p288 = scmp.ne.s32.totalorder %s279, %s280
      %p289 = scmp.eq.s32.totalorder %s35, 0
      %p290 = por %p288, %p289
      %p291 = scmp.ne.s32.totalorder %s279, %s280
      %p292 = scmp.eq.s32.totalorder %s36, 1
      %p293 = por %p291, %p292
      %p295 = scmp.ne.s32.totalorder %s280, %s294
      %p296 = scmp.eq.s32.totalorder %s36, 0
      %p297 = por %p295, %p296
      %s299 = sadd.s32 %s298, 1
      %p302 = scmp.eq.s32.totalorder %s30, 1
      %p303 = scmp.ne.s32.totalorder %s298, %s300
      %p304 = scmp.eq.s32.totalorder %s30, 0
      %p305 = por %p303, %p304
      %p306 = scmp.ne.s32.totalorder %s298, %s300
      %p307 = scmp.eq.s32.totalorder %s35, 1
      %p308 = por %p306, %p307
      %p309 = scmp.ne.s32.totalorder %s300, %s301
      %p310 = scmp.eq.s32.totalorder %s35, 0
      %p311 = por %p309, %p310
      %p312 = scmp.ne.s32.totalorder %s300, %s301
      %p313 = scmp.eq.s32.totalorder %s36, 1
      %p314 = por %p312, %p313
      %p316 = scmp.ne.s32.totalorder %s301, %s315
      %p317 = scmp.eq.s32.totalorder %s36, 0
      %p318 = por %p316, %p317
      %s320 = sadd.s32 %s319, 1
      %p323 = scmp.eq.s32.totalorder %s30, 1
      %p324 = scmp.ne.s32.totalorder %s319, %s321
      %p325 = scmp.eq.s32.totalorder %s30, 0
      %p326 = por %p324, %p325
      %p327 = scmp.ne.s32.totalorder %s319, %s321
      %p328 = scmp.eq.s32.totalorder %s35, 1
      %p329 = por %p327, %p328
      %p330 = scmp.ne.s32.totalorder %s321, %s322
      %p331 = scmp.eq.s32.totalorder %s35, 0
      %p332 = por %p330, %p331
      %p333 = scmp.ne.s32.totalorder %s321, %s322
      %p334 = scmp.eq.s32.totalorder %s36, 1
      %p335 = por %p333, %p334
      %p337 = scmp.ne.s32.totalorder %s322, %s336
      %p338 = scmp.eq.s32.totalorder %s36, 0
      %p339 = por %p337, %p338
      %s341 = sadd.s32 %s340, 1
      %p344 = scmp.eq.s32.totalorder %s30, 1
      %p345 = scmp.ne.s32.totalorder %s340, %s342
      %p346 = scmp.eq.s32.totalorder %s30, 0
      %p347 = por %p345, %p346
      %p348 = scmp.ne.s32.totalorder %s340, %s342
      %p349 = scmp.eq.s32.totalorder %s35, 1
      %p350 = por %p348, %p349
      %p351 = scmp.ne.s32.totalorder %s342, %s343
      %p352 = scmp.eq.s32.totalorder %s35, 0
      %p353 = por %p351, %p352
      %p354 = scmp.ne.s32.totalorder %s342, %s343
      %p355 = scmp.eq.s32.totalorder %s36, 1
      %p356 = por %p354, %p355
      %p358 = scmp.ne.s32.totalorder %s343, %s357
      %p359 = scmp.eq.s32.totalorder %s36, 0
      %p360 = por %p358, %p359
      %s362 = sadd.s32 %s361, 1
      %p365 = scmp.eq.s32.totalorder %s30, 1
      %p366 = scmp.ne.s32.totalorder %s361, %s363
      %p367 = scmp.eq.s32.totalorder %s30, 0
      %p368 = por %p366, %p367
      %p369 = scmp.ne.s32.totalorder %s361, %s363
      %p370 = scmp.eq.s32.totalorder %s35, 1
      %p371 = por %p369, %p370
      %p372 = scmp.ne.s32.totalorder %s363, %s364
      %p373 = scmp.eq.s32.totalorder %s35, 0
      %p374 = por %p372, %p373
      %p375 = scmp.ne.s32.totalorder %s363, %s364
      %p376 = scmp.eq.s32.totalorder %s36, 1
      %p377 = por %p375, %p376
      %p379 = scmp.ne.s32.totalorder %s364, %s378
      %p380 = scmp.eq.s32.totalorder %s36, 0
      %p381 = por %p379, %p380
      %s383 = sadd.s32 %s382, 1
      %p386 = scmp.eq.s32.totalorder %s30, 1
      %p387 = scmp.ne.s32.totalorder %s382, %s384
      %p388 = scmp.eq.s32.totalorder %s30, 0
      %p389 = por %p387, %p388
      %p390 = scmp.ne.s32.totalorder %s382, %s384
      %p391 = scmp.eq.s32.totalorder %s35, 1
      %p392 = por %p390, %p391
      %p393 = scmp.ne.s32.totalorder %s384, %s385
      %p394 = scmp.eq.s32.totalorder %s35, 0
      %p395 = por %p393, %p394
      %p396 = scmp.ne.s32.totalorder %s384, %s385
      %p397 = scmp.eq.s32.totalorder %s36, 1
      %p398 = por %p396, %p397
      %p400 = scmp.ne.s32.totalorder %s385, %s399
      %p401 = scmp.eq.s32.totalorder %s36, 0
      %p402 = por %p400, %p401
      %s404 = sadd.s32 %s403, 1
      %p407 = scmp.eq.s32.totalorder %s30, 1
      %p408 = scmp.ne.s32.totalorder %s403, %s405
      %p409 = scmp.eq.s32.totalorder %s30, 0
      %p410 = por %p408, %p409
      %p411 = scmp.ne.s32.totalorder %s403, %s405
      %p412 = scmp.eq.s32.totalorder %s35, 1
      %p413 = por %p411, %p412
      %p414 = scmp.ne.s32.totalorder %s405, %s406
      %p415 = scmp.eq.s32.totalorder %s35, 0
      %p416 = por %p414, %p415
      %p417 = scmp.ne.s32.totalorder %s405, %s406
      %p418 = scmp.eq.s32.totalorder %s36, 1
      %p419 = por %p417, %p418
      %p421 = scmp.ne.s32.totalorder %s406, %s420
      %p422 = scmp.eq.s32.totalorder %s36, 0
      %p423 = por %p421, %p422
      %s425 = sadd.s32 %s424, 1
      %p428 = scmp.eq.s32.totalorder %s30, 1
      %p429 = scmp.ne.s32.totalorder %s424, %s426
      %p430 = scmp.eq.s32.totalorder %s30, 0
      %p431 = por %p429, %p430
      %p432 = scmp.ne.s32.totalorder %s424, %s426
      %p433 = scmp.eq.s32.totalorder %s35, 1
      %p434 = por %p432, %p433
      %p435 = scmp.ne.s32.totalorder %s426, %s427
      %p436 = scmp.eq.s32.totalorder %s35, 0
      %p437 = por %p435, %p436
      %p438 = scmp.ne.s32.totalorder %s426, %s427
      %p439 = scmp.eq.s32.totalorder %s36, 1
      %p440 = por %p438, %p439
      %p442 = scmp.ne.s32.totalorder %s427, %s441
      %p443 = scmp.eq.s32.totalorder %s36, 0
      %p444 = por %p442, %p443
      %s446 = sadd.s32 %s445, 1
      %p449 = scmp.eq.s32.totalorder %s30, 1
      %p450 = scmp.ne.s32.totalorder %s445, %s447
      %p451 = scmp.eq.s32.totalorder %s30, 0
      %p452 = por %p450, %p451
      %p453 = scmp.ne.s32.totalorder %s445, %s447
      %p454 = scmp.eq.s32.totalorder %s35, 1
      %p455 = por %p453, %p454
      %p456 = scmp.ne.s32.totalorder %s447, %s448
      %p457 = scmp.eq.s32.totalorder %s35, 0
      %p458 = por %p456, %p457
      %p459 = scmp.ne.s32.totalorder %s447, %s448
      %p460 = scmp.eq.s32.totalorder %s36, 1
      %p461 = por %p459, %p460
      %p463 = scmp.ne.s32.totalorder %s448, %s462
      %p464 = scmp.eq.s32.totalorder %s36, 0
      %p465 = por %p463, %p464
      %s467 = sadd.s32 %s466, 1
      %p470 = scmp.eq.s32.totalorder %s30, 1
      %p471 = scmp.ne.s32.totalorder %s466, %s468
      %p472 = scmp.eq.s32.totalorder %s30, 0
      %p473 = por %p471, %p472
      %p474 = scmp.ne.s32.totalorder %s466, %s468
      %p475 = scmp.eq.s32.totalorder %s35, 1
      %p476 = por %p474, %p475
      %p477 = scmp.ne.s32.totalorder %s468, %s469
      %p478 = scmp.eq.s32.totalorder %s35, 0
      %p479 = por %p477, %p478
      %p480 = scmp.ne.s32.totalorder %s468, %s469
      %p481 = scmp.eq.s32.totalorder %s36, 1
      %p482 = por %p480, %p481
      %p484 = scmp.ne.s32.totalorder %s469, %s483
      %p485 = scmp.eq.s32.totalorder %s36, 0
      %p486 = por %p484, %p485
      %s488 = sadd.s32 %s487, 1
      %p491 = scmp.eq.s32.totalorder %s30, 1
      %p492 = scmp.ne.s32.totalorder %s487, %s489
      %p493 = scmp.eq.s32.totalorder %s30, 0
      %p494 = por %p492, %p493
      %p495 = scmp.ne.s32.totalorder %s487, %s489
      %p496 = scmp.eq.s32.totalorder %s35, 1
      %p497 = por %p495, %p496
      %p498 = scmp.ne.s32.totalorder %s489, %s490
      %p499 = scmp.eq.s32.totalorder %s35, 0
      %p500 = por %p498, %p499
      %p501 = scmp.ne.s32.totalorder %s489, %s490
      %p502 = scmp.eq.s32.totalorder %s36, 1
      %p503 = por %p501, %p502
      %p505 = scmp.ne.s32.totalorder %s490, %s504
      %p506 = scmp.eq.s32.totalorder %s36, 0
      %p507 = por %p505, %p506
      %s508 = ssub.s32 %s37, %s49
      %s509 = ssub.s32 %s38, %s45
      %s510 = sor.u32 %s508, %s509
      %p511 = scmp.eq.s32.totalorder %s510, 0
      %s513 = sadd.s32 %s512, 1
      %s514 = scalar_select %p511, %s512, %s513
      %p517 = pneg %p511
      %p518 = scmp.eq.s32.totalorder %s30, 1
      %p519 = por %p517, %p518
      %p520 = scmp.ne.s32.totalorder %s512, %s515
      %p521 = scmp.eq.s32.totalorder %s30, 0
      %p522 = por %p520, %p521
      %p523 = scmp.ne.s32.totalorder %s512, %s515
      %p524 = scmp.eq.s32.totalorder %s35, 1
      %p525 = por %p523, %p524
      %p526 = scmp.ne.s32.totalorder %s515, %s516
      %p527 = scmp.eq.s32.totalorder %s35, 0
      %p528 = por %p526, %p527
      %p529 = scmp.ne.s32.totalorder %s515, %s516
      %p530 = scmp.eq.s32.totalorder %s36, 1
      %p531 = por %p529, %p530
      %p533 = scmp.ne.s32.totalorder %s516, %s532
      %p534 = scmp.eq.s32.totalorder %s36, 0
      %p535 = por %p533, %p534
      %p536 = scmp.le.s32.totalorder 1, %s30
      %p537 = scmp.lt.s32.totalorder %s30, 3
      %p538 = pnand %p536, %p537
      %p539 = pneg %p538
      // Predicated region
      $region9: #{tpu_custom_call.1} parent=5 // pred_check
        _
      $region10: #{tpu_custom_call.1} parent=5 // pred_check_branch
        %541 = sbr.rel (%p538) target = $region12
      $region11: #{tpu_custom_call.1} parent=5 // pred_region
        %s542 = ssub.s32 %s30, 1
        // Predicated region
        $region13: #{tpu_custom_call.1} parent=11 // pred_check
          %p543 = pneg %p143
        $region14: #{tpu_custom_call.1} parent=11 // pred_check_branch
          %545 = sbr.rel (%p543) target = $region16
        $region15: #{tpu_custom_call.1} parent=11 // pred_region
          _
        $region16: #{tpu_custom_call.1} parent=11 // pred_fallthru
          _
        // Predicated region
        $region17: #{tpu_custom_call.1} parent=11 // pred_check
          %p546 = pneg %p164
        $region18: #{tpu_custom_call.1} parent=11 // pred_check_branch
          %548 = sbr.rel (%p546) target = $region20
        $region19: #{tpu_custom_call.1} parent=11 // pred_region
          _
        $region20: #{tpu_custom_call.1} parent=11 // pred_fallthru
          _
        // Predicated region
        $region21: #{tpu_custom_call.1} parent=11 // pred_check
          %p549 = pneg %p185
        $region22: #{tpu_custom_call.1} parent=11 // pred_check_branch
          %551 = sbr.rel (%p549) target = $region24
        $region23: #{tpu_custom_call.1} parent=11 // pred_region
          _
        $region24: #{tpu_custom_call.1} parent=11 // pred_fallthru
          _
        // Predicated region
        $region25: #{tpu_custom_call.1} parent=11 // pred_check
          %p552 = pneg %p206
        $region26: #{tpu_custom_call.1} parent=11 // pred_check_branch
          %554 = sbr.rel (%p552) target = $region28
        $region27: #{tpu_custom_call.1} parent=11 // pred_region
          _
        $region28: #{tpu_custom_call.1} parent=11 // pred_fallthru
          _
        // Predicated region
        $region29: #{tpu_custom_call.1} parent=11 // pred_check
          %p555 = pneg %p227
        $region30: #{tpu_custom_call.1} parent=11 // pred_check_branch
          %557 = sbr.rel (%p555) target = $region32
        $region31: #{tpu_custom_call.1} parent=11 // pred_region
          _
        $region32: #{tpu_custom_call.1} parent=11 // pred_fallthru
          _
        // Predicated region
        $region33: #{tpu_custom_call.1} parent=11 // pred_check
          %p558 = pneg %p248
        $region34: #{tpu_custom_call.1} parent=11 // pred_check_branch
          %560 = sbr.rel (%p558) target = $region36
        $region35: #{tpu_custom_call.1} parent=11 // pred_region
          _
        $region36: #{tpu_custom_call.1} parent=11 // pred_fallthru
          _
        // Predicated region
        $region37: #{tpu_custom_call.1} parent=11 // pred_check
          %p561 = pneg %p269
        $region38: #{tpu_custom_call.1} parent=11 // pred_check_branch
          %563 = sbr.rel (%p561) target = $region40
        $region39: #{tpu_custom_call.1} parent=11 // pred_region
          _
        $region40: #{tpu_custom_call.1} parent=11 // pred_fallthru
          _
        // Predicated region
        $region41: #{tpu_custom_call.1} parent=11 // pred_check
          %p564 = pneg %p290
        $region42: #{tpu_custom_call.1} parent=11 // pred_check_branch
          %566 = sbr.rel (%p564) target = $region44
        $region43: #{tpu_custom_call.1} parent=11 // pred_region
          _
        $region44: #{tpu_custom_call.1} parent=11 // pred_fallthru
          _
        // Predicated region
        $region45: #{tpu_custom_call.1} parent=11 // pred_check
          %p567 = pneg %p311
        $region46: #{tpu_custom_call.1} parent=11 // pred_check_branch
          %569 = sbr.rel (%p567) target = $region48
        $region47: #{tpu_custom_call.1} parent=11 // pred_region
          _
        $region48: #{tpu_custom_call.1} parent=11 // pred_fallthru
          _
        // Predicated region
        $region49: #{tpu_custom_call.1} parent=11 // pred_check
          %p570 = pneg %p332
        $region50: #{tpu_custom_call.1} parent=11 // pred_check_branch
          %572 = sbr.rel (%p570) target = $region52
        $region51: #{tpu_custom_call.1} parent=11 // pred_region
          _
        $region52: #{tpu_custom_call.1} parent=11 // pred_fallthru
          _
        // Predicated region
        $region53: #{tpu_custom_call.1} parent=11 // pred_check
          %p573 = pneg %p353
        $region54: #{tpu_custom_call.1} parent=11 // pred_check_branch
          %575 = sbr.rel (%p573) target = $region56
        $region55: #{tpu_custom_call.1} parent=11 // pred_region
          _
        $region56: #{tpu_custom_call.1} parent=11 // pred_fallthru
          _
        // Predicated region
        $region57: #{tpu_custom_call.1} parent=11 // pred_check
          %p576 = pneg %p374
        $region58: #{tpu_custom_call.1} parent=11 // pred_check_branch
          %578 = sbr.rel (%p576) target = $region60
        $region59: #{tpu_custom_call.1} parent=11 // pred_region
          _
        $region60: #{tpu_custom_call.1} parent=11 // pred_fallthru
          _
        // Predicated region
        $region61: #{tpu_custom_call.1} parent=11 // pred_check
          %p579 = pneg %p395
        $region62: #{tpu_custom_call.1} parent=11 // pred_check_branch
          %581 = sbr.rel (%p579) target = $region64
        $region63: #{tpu_custom_call.1} parent=11 // pred_region
          _
        $region64: #{tpu_custom_call.1} parent=11 // pred_fallthru
          _
        // Predicated region
        $region65: #{tpu_custom_call.1} parent=11 // pred_check
          %p582 = pneg %p416
        $region66: #{tpu_custom_call.1} parent=11 // pred_check_branch
          %584 = sbr.rel (%p582) target = $region68
        $region67: #{tpu_custom_call.1} parent=11 // pred_region
          _
        $region68: #{tpu_custom_call.1} parent=11 // pred_fallthru
          _
        // Predicated region
        $region69: #{tpu_custom_call.1} parent=11 // pred_check
          %p585 = pneg %p437
        $region70: #{tpu_custom_call.1} parent=11 // pred_check_branch
          %587 = sbr.rel (%p585) target = $region72
        $region71: #{tpu_custom_call.1} parent=11 // pred_region
          _
        $region72: #{tpu_custom_call.1} parent=11 // pred_fallthru
          _
        // Predicated region
        $region73: #{tpu_custom_call.1} parent=11 // pred_check
          %p588 = pneg %p458
        $region74: #{tpu_custom_call.1} parent=11 // pred_check_branch
          %590 = sbr.rel (%p588) target = $region76
        $region75: #{tpu_custom_call.1} parent=11 // pred_region
          _
        $region76: #{tpu_custom_call.1} parent=11 // pred_fallthru
          _
        // Predicated region
        $region77: #{tpu_custom_call.1} parent=11 // pred_check
          %p591 = pneg %p479
        $region78: #{tpu_custom_call.1} parent=11 // pred_check_branch
          %593 = sbr.rel (%p591) target = $region80
        $region79: #{tpu_custom_call.1} parent=11 // pred_region
          _
        $region80: #{tpu_custom_call.1} parent=11 // pred_fallthru
          _
        // Predicated region
        $region81: #{tpu_custom_call.1} parent=11 // pred_check
          %p594 = pneg %p500
        $region82: #{tpu_custom_call.1} parent=11 // pred_check_branch
          %596 = sbr.rel (%p594) target = $region84
        $region83: #{tpu_custom_call.1} parent=11 // pred_region
          _
        $region84: #{tpu_custom_call.1} parent=11 // pred_fallthru
          _
      $region12: #{tpu_custom_call.1} parent=5 // pred_fallthru
        _
      %p597 = scmp.lt.s32.totalorder %s30, 2
      // Predicated region
      $region85: #{tpu_custom_call.1} parent=5 // pred_check
        %p598 = pneg %p597
      $region86: #{tpu_custom_call.1} parent=5 // pred_check_branch
        %600 = sbr.rel (%p598) target = $region88
      $region87: #{tpu_custom_call.1} parent=5 // pred_region
        // Predicated region
        $region89: #{tpu_custom_call.1} parent=87 // pred_check
          %p601 = pneg %p64
        $region90: #{tpu_custom_call.1} parent=87 // pred_check_branch
          %603 = sbr.rel (%p601) target = $region92
        $region91: #{tpu_custom_call.1} parent=87 // pred_region
          %p604 = scmp.lt.s32.totalorder %s37, 1
          %s605 = scalar_select %p604, %s37, 1
          %p606 = scmp.lt.s32.totalorder %s38, 0
          %s607 = scalar_select %p606, %s38, 0
          %s608 = sadd.s32 %s607, %s605
          %s609 = smul.addr %s608, 8
          %s610 = scalar_lea.vmem %s0, %s609
        $region92: #{tpu_custom_call.1} parent=87 // pred_fallthru
          _
        // Predicated region
        $region93: #{tpu_custom_call.1} parent=87 // pred_check
          %p611 = pneg %p90
        $region94: #{tpu_custom_call.1} parent=87 // pred_check_branch
          %613 = sbr.rel (%p611) target = $region96
        $region95: #{tpu_custom_call.1} parent=87 // pred_region
          %p614 = scmp.lt.s32.totalorder %s37, 1
          %s615 = scalar_select %p614, %s37, 1
          %s616 = smul.addr %s615, 8
          %s617 = scalar_lea.vmem %s1, %s616
        $region96: #{tpu_custom_call.1} parent=87 // pred_fallthru
          _
        // Predicated region
        $region97: #{tpu_custom_call.1} parent=87 // pred_check
          %p618 = pneg %p116
        $region98: #{tpu_custom_call.1} parent=87 // pred_check_branch
          %620 = sbr.rel (%p618) target = $region100
        $region99: #{tpu_custom_call.1} parent=87 // pred_region
          %p621 = scmp.lt.s32.totalorder %s37, 1
          %s622 = scalar_select %p621, %s37, 1
          %s623 = smul.addr %s622, 4
          %s624 = scalar_lea.vmem %s2, %s623
        $region100: #{tpu_custom_call.1} parent=87 // pred_fallthru
          _
      $region88: #{tpu_custom_call.1} parent=5 // pred_fallthru
        _
      %p625 = scmp.le.s32.totalorder 1, %s30
      %p626 = scmp.lt.s32.totalorder %s30, 3
      %p627 = pnand %p625, %p626
      %p628 = pneg %p627
      // Predicated region
      $region101: #{tpu_custom_call.1} parent=5 // pred_check
        _
      $region102: #{tpu_custom_call.1} parent=5 // pred_check_branch
        %630 = sbr.rel (%p627) target = $region104
      $region103: #{tpu_custom_call.1} parent=5 // pred_region
        %s631 = ssub.s32 %s30, 1
        %p632 = scmp.lt.s32.totalorder %s39, 1
        %s633 = scalar_select %p632, %s39, 1
        %p634 = scmp.lt.s32.totalorder %s40, 0
        %s635 = scalar_select %p634, %s40, 0
        %s636 = sadd.s32 %s635, %s633
        %s637 = smul.addr %s636, 8
        %s638 = scalar_lea.vmem %s0, %s637
        %p639 = pneg %p70
        %p640 = pneg %p67
        %p641 = scmp.lt.s32.totalorder %s39, 1
        %s642 = scalar_select %p641, %s39, 1
        %s643 = smul.addr %s642, 8
        %s644 = scalar_lea.vmem %s1, %s643
        %p645 = pneg %p96
        %p646 = pneg %p93
        %p647 = scmp.lt.s32.totalorder %s39, 1
        %s648 = scalar_select %p647, %s39, 1
        %s649 = smul.addr %s648, 4
        %s650 = scalar_lea.vmem %s2, %s649
        %p651 = pneg %p122
        %p652 = pneg %p119
        %p653 = pneg %p143
        %p654 = pneg %p140
        %p655 = pneg %p164
        %p656 = pneg %p161
        %p657 = pneg %p185
        %p658 = pneg %p182
        %p659 = pneg %p206
        %p660 = pneg %p203
        %p661 = pneg %p227
        %p662 = pneg %p224
        %p663 = pneg %p248
        %p664 = pneg %p245
        %p665 = pneg %p269
        %p666 = pneg %p266
        %p667 = pneg %p290
        %p668 = pneg %p287
        %p669 = pneg %p311
        %p670 = pneg %p308
        %p671 = pneg %p332
        %p672 = pneg %p329
        %p673 = pneg %p353
        %p674 = pneg %p350
        %p675 = pneg %p374
        %p676 = pneg %p371
        %p677 = pneg %p395
        %p678 = pneg %p392
        %p679 = pneg %p416
        %p680 = pneg %p413
        %p681 = pneg %p437
        %p682 = pneg %p434
        %p683 = pneg %p458
        %p684 = pneg %p455
        %p685 = pneg %p479
        %p686 = pneg %p476
        %p687 = pneg %p500
        %p688 = pneg %p497
        %p689 = pneg %p528
        %p690 = pneg %p525
        %s691 = sand.u32 %s515, 1
        %s692 = scalar_lea.sflag [#allocation3], %s691
        %s693 = sand.u32 %s515, 1
        %s694 = smul.addr %s693, 8
        %s695 = scalar_lea.vmem [#allocation2], %s694
        %p696 = scmp.lt.s32.totalorder %s39, 1
        %s697 = scalar_select %p696, %s39, 1
        %p698 = scmp.lt.s32.totalorder %s40, 0
        %s699 = scalar_select %p698, %s40, 0
        %s700 = sadd.s32 %s699, %s697
        %s701 = smul.addr %s700, 8
        %s702 = scalar_lea.vmem %s0, %s701
        %p703 = scmp.lt.s32.totalorder %s39, 1
        %s704 = scalar_select %p703, %s39, 1
        %s705 = smul.addr %s704, 8
        %s706 = scalar_lea.vmem %s1, %s705
        %p707 = scmp.lt.s32.totalorder %s39, 1
        %s708 = scalar_select %p707, %s39, 1
        %s709 = smul.addr %s708, 4
        %s710 = scalar_lea.vmem %s2, %s709
        %v712 = vld [vmem:[%s702] sm:$0xff]
        %v713 = vld [vmem:[%s706] sm:$0xff]
        %v714 = vld [vmem:[%s710] sm:$0xf]
        %s715 = smul.u32 %s40, 8
        %v716 = vlaneseq
        %v717 = vshrl.u32 %v716, 7
        %v718 = vstv %s715
        %v719 = vadd.s32 %v718, %v717
        %v720 = vlaneseq
        %v721 = vand.u32 %v720, 127
        %vm722 = vcmp.gt.s32.totalorder %v721, %v719
        %v723 = vpack.c.bf16 %v712, %v712
        %v724 = vpack.c.bf16 %v713, %v713
        %v725 = vld [vmem:[%s3] sm:$0xf]
        %v726 = vld [vmem:[%s3 + $0x4] sm:$0xf]
        %v727 = vld [vmem:[%s3 + $0x8] sm:$0xf]
        %v728 = vld [vmem:[%s3 + $0xc] sm:$0xf]
        %v729 = vld [vmem:[%s3 + $0x10] sm:$0xf]
        %v730 = vld [vmem:[%s3 + $0x14] sm:$0xf]
        %v731 = vld [vmem:[%s3 + $0x18] sm:$0xf]
        %v732 = vld [vmem:[%s3 + $0x1c] sm:$0xf]
        %v733 = vld [vmem:[%s4] sm:$0x1]
        %v734 = vld [vmem:[%s4 + $0x1] sm:$0x1]
        %v737 = vlaneseq
        %v738 = vshrl.u32 %v737, 7
        %v739 = vsub.s32 0, %v738
        %v740 = vrot.slane %v733, %v739
        %v741 = vlaneseq
        %v742 = vshrl.u32 %v741, 7
        %v743 = vsub.s32 0, %v742
        %v744 = vrot.slane %v734, %v743
        %v751 = vunpack.c.l.b16 %v725
        %v752 = vunpack.c.l.b16 %v726
        %v753 = vunpack.c.l.b16 %v727
        %v754 = vunpack.c.l.b16 %v728
        %v755 = vpack.c.b16 %v752, %v751
        %v756 = vpack.c.b16 %v754, %v753
        %vm759 = vcmask 261120
        %v761 = vsel %vm759, %v723, 0
        %763 = vmatprep.subr.bf16.mxu0 0
        %764 = vmatpush1.bf16.msra.mxu0 0
        %765 = vmatprep.subr.bf16.mxu0 0
        %766 = vmatpush1.bf16.msra.mxu0 0
        %767 = vmatprep.subr.bf16.mxu0 0
        %768 = vmatpush1.bf16.msra.mxu0 0
        %769 = vmatprep.subr.bf16.mxu0 0
        %770 = vmatpush1.bf16.msra.mxu0 0
        %771 = vmatprep.subr.bf16.mxu0 0
        %772 = vmatpush1.bf16.msra.mxu0 0
        %773 = vmatprep.subr.bf16.mxu0 0
        %774 = vmatpush1.bf16.msra.mxu0 0
        %775 = vmatprep.subr.bf16.mxu0 0
        %776 = vmatpush1.bf16.msra.mxu0 %v756
        %777 = vmatprep.subr.bf16.mxu0 0
        %778 = vmatpush1.bf16.msra.mxu0 %v755
        %779 = vmatprep.subr.bf16.mxu0 0
        %780 = vmatpush2.bf16.msra.mxu0 0
        %781 = vmatprep.subr.bf16.mxu0 0
        %782 = vmatpush2.bf16.msra.mxu0 0
        %783 = vmatprep.subr.bf16.mxu0 0
        %784 = vmatpush2.bf16.msra.mxu0 0
        %785 = vmatprep.subr.bf16.mxu0 0
        %786 = vmatpush2.bf16.msra.mxu0 0
        %787 = vmatprep.subr.bf16.mxu0 0
        %788 = vmatpush2.bf16.msra.mxu0 0
        %789 = vmatprep.subr.bf16.mxu0 0
        %790 = vmatpush2.bf16.msra.mxu0 0
        %791 = vmatprep.subr.bf16.mxu0 0
        %792 = vmatpush2.bf16.msra.mxu0 0
        %793 = vmatprep.subr.bf16.mxu0 0
        %794 = vmatpush2.bf16.msra.mxu0 0
        %795 = vmatprep.mubr.bf16.mxu0 0
        %796 = vmatmul.mubr.bf16.gmra.mxu0 %v761
        %v797 = vpop.f32.mrf.mxu0
        %v798 = vadd.f32 %v740, %v797
        %v799 = vpop.f32.mrf.mxu0
        %v800 = vpop.f32.mrf.mxu0
        %v801 = vpop.f32.mrf.mxu0
        %802 = vdwg.mxu0
        %v807 = vunpack.c.l.b16 %v729
        %v808 = vunpack.c.l.b16 %v730
        %v809 = vunpack.c.l.b16 %v731
        %v810 = vunpack.c.l.b16 %v732
        %v811 = vpack.c.b16 %v808, %v807
        %v812 = vpack.c.b16 %v810, %v809
        %815 = vmatprep.subr.bf16.mxu0 0
        %816 = vmatpush1.bf16.msra.mxu0 0
        %817 = vmatprep.subr.bf16.mxu0 0
        %818 = vmatpush1.bf16.msra.mxu0 0
        %819 = vmatprep.subr.bf16.mxu0 0
        %820 = vmatpush1.bf16.msra.mxu0 0
        %821 = vmatprep.subr.bf16.mxu0 0
        %822 = vmatpush1.bf16.msra.mxu0 0
        %823 = vmatprep.subr.bf16.mxu0 0
        %824 = vmatpush1.bf16.msra.mxu0 0
        %825 = vmatprep.subr.bf16.mxu0 0
        %826 = vmatpush1.bf16.msra.mxu0 0
        %827 = vmatprep.subr.bf16.mxu0 0
        %828 = vmatpush1.bf16.msra.mxu0 %v812
        %829 = vmatprep.subr.bf16.mxu0 0
        %830 = vmatpush1.bf16.msra.mxu0 %v811
        %831 = vmatprep.subr.bf16.mxu0 0
        %832 = vmatpush2.bf16.msra.mxu0 0
        %833 = vmatprep.subr.bf16.mxu0 0
        %834 = vmatpush2.bf16.msra.mxu0 0
        %835 = vmatprep.subr.bf16.mxu0 0
        %836 = vmatpush2.bf16.msra.mxu0 0
        %837 = vmatprep.subr.bf16.mxu0 0
        %838 = vmatpush2.bf16.msra.mxu0 0
        %839 = vmatprep.subr.bf16.mxu0 0
        %840 = vmatpush2.bf16.msra.mxu0 0
        %841 = vmatprep.subr.bf16.mxu0 0
        %842 = vmatpush2.bf16.msra.mxu0 0
        %843 = vmatprep.subr.bf16.mxu0 0
        %844 = vmatpush2.bf16.msra.mxu0 0
        %845 = vmatprep.subr.bf16.mxu0 0
        %846 = vmatpush2.bf16.msra.mxu0 0
        %847 = vmatprep.mubr.bf16.mxu0 0
        %848 = vmatmul.mubr.bf16.gmra.mxu0 %v761
        %v849 = vpop.f32.mrf.mxu0
        %v850 = vadd.f32 %v744, %v849
        %v851 = vpop.f32.mrf.mxu0
        %v852 = vpop.f32.mrf.mxu0
        %v853 = vpop.f32.mrf.mxu0
        %854 = vdwg.mxu0
        %v855 = vld [vmem:[%s5] sm:$0xf]
        %v856 = vld [vmem:[%s5 + $0x4] sm:$0xf]
        %v857 = vld [vmem:[%s5 + $0x8] sm:$0xf]
        %v858 = vld [vmem:[%s5 + $0xc] sm:$0xf]
        %v859 = vld [vmem:[%s5 + $0x10] sm:$0xf]
        %v860 = vld [vmem:[%s5 + $0x14] sm:$0xf]
        %v861 = vld [vmem:[%s5 + $0x18] sm:$0xf]
        %v862 = vld [vmem:[%s5 + $0x1c] sm:$0xf]
        %v863 = vld [vmem:[%s6] sm:$0x1]
        %v864 = vld [vmem:[%s6 + $0x1] sm:$0x1]
        %v867 = vlaneseq
        %v868 = vshrl.u32 %v867, 7
        %v869 = vsub.s32 0, %v868
        %v870 = vrot.slane %v863, %v869
        %v871 = vlaneseq
        %v872 = vshrl.u32 %v871, 7
        %v873 = vsub.s32 0, %v872
        %v874 = vrot.slane %v864, %v873
        %v881 = vunpack.c.l.b16 %v855
        %v882 = vunpack.c.l.b16 %v856
        %v883 = vunpack.c.l.b16 %v857
        %v884 = vunpack.c.l.b16 %v858
        %v885 = vpack.c.b16 %v882, %v881
        %v886 = vpack.c.b16 %v884, %v883
        %v890 = vsel %vm759, %v724, 0
        %892 = vmatprep.subr.bf16.mxu0 0
        %893 = vmatpush1.bf16.msra.mxu0 0
        %894 = vmatprep.subr.bf16.mxu0 0
        %895 = vmatpush1.bf16.msra.mxu0 0
        %896 = vmatprep.subr.bf16.mxu0 0
        %897 = vmatpush1.bf16.msra.mxu0 0
        %898 = vmatprep.subr.bf16.mxu0 0
        %899 = vmatpush1.bf16.msra.mxu0 0
        %900 = vmatprep.subr.bf16.mxu0 0
        %901 = vmatpush1.bf16.msra.mxu0 0
        %902 = vmatprep.subr.bf16.mxu0 0
        %903 = vmatpush1.bf16.msra.mxu0 0
        %904 = vmatprep.subr.bf16.mxu0 0
        %905 = vmatpush1.bf16.msra.mxu0 %v886
        %906 = vmatprep.subr.bf16.mxu0 0
        %907 = vmatpush1.bf16.msra.mxu0 %v885
        %908 = vmatprep.subr.bf16.mxu0 0
        %909 = vmatpush2.bf16.msra.mxu0 0
        %910 = vmatprep.subr.bf16.mxu0 0
        %911 = vmatpush2.bf16.msra.mxu0 0
        %912 = vmatprep.subr.bf16.mxu0 0
        %913 = vmatpush2.bf16.msra.mxu0 0
        %914 = vmatprep.subr.bf16.mxu0 0
        %915 = vmatpush2.bf16.msra.mxu0 0
        %916 = vmatprep.subr.bf16.mxu0 0
        %917 = vmatpush2.bf16.msra.mxu0 0
        %918 = vmatprep.subr.bf16.mxu0 0
        %919 = vmatpush2.bf16.msra.mxu0 0
        %920 = vmatprep.subr.bf16.mxu0 0
        %921 = vmatpush2.bf16.msra.mxu0 0
        %922 = vmatprep.subr.bf16.mxu0 0
        %923 = vmatpush2.bf16.msra.mxu0 0
        %924 = vmatprep.mubr.bf16.mxu0 0
        %925 = vmatmul.mubr.bf16.gmra.mxu0 %v890
        %v926 = vpop.f32.mrf.mxu0
        %v927 = vadd.f32 %v870, %v926
        %v928 = vpop.f32.mrf.mxu0
        %v929 = vpop.f32.mrf.mxu0
        %v930 = vpop.f32.mrf.mxu0
        %931 = vdwg.mxu0
        %v936 = vunpack.c.l.b16 %v859
        %v937 = vunpack.c.l.b16 %v860
        %v938 = vunpack.c.l.b16 %v861
        %v939 = vunpack.c.l.b16 %v862
        %v940 = vpack.c.b16 %v937, %v936
        %v941 = vpack.c.b16 %v939, %v938
        %944 = vmatprep.subr.bf16.mxu0 0
        %945 = vmatpush1.bf16.msra.mxu0 0
        %946 = vmatprep.subr.bf16.mxu0 0
        %947 = vmatpush1.bf16.msra.mxu0 0
        %948 = vmatprep.subr.bf16.mxu0 0
        %949 = vmatpush1.bf16.msra.mxu0 0
        %950 = vmatprep.subr.bf16.mxu0 0
        %951 = vmatpush1.bf16.msra.mxu0 0
        %952 = vmatprep.subr.bf16.mxu0 0
        %953 = vmatpush1.bf16.msra.mxu0 0
        %954 = vmatprep.subr.bf16.mxu0 0
        %955 = vmatpush1.bf16.msra.mxu0 0
        %956 = vmatprep.subr.bf16.mxu0 0
        %957 = vmatpush1.bf16.msra.mxu0 %v941
        %958 = vmatprep.subr.bf16.mxu0 0
        %959 = vmatpush1.bf16.msra.mxu0 %v940
        %960 = vmatprep.subr.bf16.mxu0 0
        %961 = vmatpush2.bf16.msra.mxu0 0
        %962 = vmatprep.subr.bf16.mxu0 0
        %963 = vmatpush2.bf16.msra.mxu0 0
        %964 = vmatprep.subr.bf16.mxu0 0
        %965 = vmatpush2.bf16.msra.mxu0 0
        %966 = vmatprep.subr.bf16.mxu0 0
        %967 = vmatpush2.bf16.msra.mxu0 0
        %968 = vmatprep.subr.bf16.mxu0 0
        %969 = vmatpush2.bf16.msra.mxu0 0
        %970 = vmatprep.subr.bf16.mxu0 0
        %971 = vmatpush2.bf16.msra.mxu0 0
        %972 = vmatprep.subr.bf16.mxu0 0
        %973 = vmatpush2.bf16.msra.mxu0 0
        %974 = vmatprep.subr.bf16.mxu0 0
        %975 = vmatpush2.bf16.msra.mxu0 0
        %976 = vmatprep.mubr.bf16.mxu0 0
        %977 = vmatmul.mubr.bf16.gmra.mxu0 %v890
        %v978 = vpop.f32.mrf.mxu0
        %v979 = vadd.f32 %v874, %v978
        %v980 = vpop.f32.mrf.mxu0
        %v981 = vpop.f32.mrf.mxu0
        %v982 = vpop.f32.mrf.mxu0
        %983 = vdwg.mxu0
        %v984 = vld [vmem:[%s7] sm:$0xf]
        %v985 = vld [vmem:[%s7 + $0x4] sm:$0xf]
        %v986 = vld [vmem:[%s7 + $0x8] sm:$0xf]
        %v987 = vld [vmem:[%s7 + $0xc] sm:$0xf]
        %v988 = vld [vmem:[%s7 + $0x10] sm:$0xf]
        %v989 = vld [vmem:[%s7 + $0x14] sm:$0xf]
        %v990 = vld [vmem:[%s7 + $0x18] sm:$0xf]
        %v991 = vld [vmem:[%s7 + $0x1c] sm:$0xf]
        %v992 = vld [vmem:[%s8] sm:$0x1]
        %v993 = vld [vmem:[%s8 + $0x1] sm:$0x1]
        %v996 = vlaneseq
        %v997 = vshrl.u32 %v996, 7
        %v998 = vsub.s32 0, %v997
        %v999 = vrot.slane %v992, %v998
        %v1000 = vlaneseq
        %v1001 = vshrl.u32 %v1000, 7
        %v1002 = vsub.s32 0, %v1001
        %v1003 = vrot.slane %v993, %v1002
        %v1010 = vunpack.c.l.b16 %v984
        %v1011 = vunpack.c.l.b16 %v985
        %v1012 = vunpack.c.l.b16 %v986
        %v1013 = vunpack.c.l.b16 %v987
        %v1014 = vpack.c.b16 %v1011, %v1010
        %v1015 = vpack.c.b16 %v1013, %v1012
        %1018 = vmatprep.subr.bf16.mxu0 0
        %1019 = vmatpush1.bf16.msra.mxu0 0
        %1020 = vmatprep.subr.bf16.mxu0 0
        %1021 = vmatpush1.bf16.msra.mxu0 0
        %1022 = vmatprep.subr.bf16.mxu0 0
        %1023 = vmatpush1.bf16.msra.mxu0 0
        %1024 = vmatprep.subr.bf16.mxu0 0
        %1025 = vmatpush1.bf16.msra.mxu0 0
        %1026 = vmatprep.subr.bf16.mxu0 0
        %1027 = vmatpush1.bf16.msra.mxu0 0
        %1028 = vmatprep.subr.bf16.mxu0 0
        %1029 = vmatpush1.bf16.msra.mxu0 0
        %1030 = vmatprep.subr.bf16.mxu0 0
        %1031 = vmatpush1.bf16.msra.mxu0 %v1015
        %1032 = vmatprep.subr.bf16.mxu0 0
        %1033 = vmatpush1.bf16.msra.mxu0 %v1014
        %1034 = vmatprep.subr.bf16.mxu0 0
        %1035 = vmatpush2.bf16.msra.mxu0 0
        %1036 = vmatprep.subr.bf16.mxu0 0
        %1037 = vmatpush2.bf16.msra.mxu0 0
        %1038 = vmatprep.subr.bf16.mxu0 0
        %1039 = vmatpush2.bf16.msra.mxu0 0
        %1040 = vmatprep.subr.bf16.mxu0 0
        %1041 = vmatpush2.bf16.msra.mxu0 0
        %1042 = vmatprep.subr.bf16.mxu0 0
        %1043 = vmatpush2.bf16.msra.mxu0 0
        %1044 = vmatprep.subr.bf16.mxu0 0
        %1045 = vmatpush2.bf16.msra.mxu0 0
        %1046 = vmatprep.subr.bf16.mxu0 0
        %1047 = vmatpush2.bf16.msra.mxu0 0
        %1048 = vmatprep.subr.bf16.mxu0 0
        %1049 = vmatpush2.bf16.msra.mxu0 0
        %1050 = vmatprep.mubr.bf16.mxu0 0
        %1051 = vmatmul.mubr.bf16.gmra.mxu0 %v890
        %v1052 = vpop.f32.mrf.mxu0
        %v1053 = vadd.f32 %v999, %v1052
        %v1054 = vpop.f32.mrf.mxu0
        %v1055 = vpop.f32.mrf.mxu0
        %v1056 = vpop.f32.mrf.mxu0
        %1057 = vdwg.mxu0
        %v1062 = vunpack.c.l.b16 %v988
        %v1063 = vunpack.c.l.b16 %v989
        %v1064 = vunpack.c.l.b16 %v990
        %v1065 = vunpack.c.l.b16 %v991
        %v1066 = vpack.c.b16 %v1063, %v1062
        %v1067 = vpack.c.b16 %v1065, %v1064
        %1070 = vmatprep.subr.bf16.mxu0 0
        %1071 = vmatpush1.bf16.msra.mxu0 0
        %1072 = vmatprep.subr.bf16.mxu0 0
        %1073 = vmatpush1.bf16.msra.mxu0 0
        %1074 = vmatprep.subr.bf16.mxu0 0
        %1075 = vmatpush1.bf16.msra.mxu0 0
        %1076 = vmatprep.subr.bf16.mxu0 0
        %1077 = vmatpush1.bf16.msra.mxu0 0
        %1078 = vmatprep.subr.bf16.mxu0 0
        %1079 = vmatpush1.bf16.msra.mxu0 0
        %1080 = vmatprep.subr.bf16.mxu0 0
        %1081 = vmatpush1.bf16.msra.mxu0 0
        %1082 = vmatprep.subr.bf16.mxu0 0
        %1083 = vmatpush1.bf16.msra.mxu0 %v1067
        %1084 = vmatprep.subr.bf16.mxu0 0
        %1085 = vmatpush1.bf16.msra.mxu0 %v1066
        %1086 = vmatprep.subr.bf16.mxu0 0
        %1087 = vmatpush2.bf16.msra.mxu0 0
        %1088 = vmatprep.subr.bf16.mxu0 0
        %1089 = vmatpush2.bf16.msra.mxu0 0
        %1090 = vmatprep.subr.bf16.mxu0 0
        %1091 = vmatpush2.bf16.msra.mxu0 0
        %1092 = vmatprep.subr.bf16.mxu0 0
        %1093 = vmatpush2.bf16.msra.mxu0 0
        %1094 = vmatprep.subr.bf16.mxu0 0
        %1095 = vmatpush2.bf16.msra.mxu0 0
        %1096 = vmatprep.subr.bf16.mxu0 0
        %1097 = vmatpush2.bf16.msra.mxu0 0
        %1098 = vmatprep.subr.bf16.mxu0 0
        %1099 = vmatpush2.bf16.msra.mxu0 0
        %1100 = vmatprep.subr.bf16.mxu0 0
        %1101 = vmatpush2.bf16.msra.mxu0 0
        %1102 = vmatprep.mubr.bf16.mxu0 0
        %1103 = vmatmul.mubr.bf16.gmra.mxu0 %v890
        %v1104 = vpop.f32.mrf.mxu0
        %v1105 = vadd.f32 %v1003, %v1104
        %v1106 = vpop.f32.mrf.mxu0
        %v1107 = vpop.f32.mrf.mxu0
        %v1108 = vpop.f32.mrf.mxu0
        %1109 = vdwg.mxu0
        %v1110 = vpack.c.bf16 %v798, %v798
        %v1111 = vpack.c.bf16 %v850, %v850
        %v1112 = vpack.c.bf16 %v927, %v927
        %v1113 = vpack.c.bf16 %v979, %v979
        %vm1114 = vcmask 130048
        %v1116 = vsel %vm1114, %v1110, 0
        %v1119 = vsel %vm1114, %v1112, 0
        %1121 = vmatprep.subr.bf16.mxu0 0
        %1122 = vmatpush1.bf16.xpose.msra.mxu0 0
        %1123 = vmatprep.subr.bf16.mxu0 0
        %1124 = vmatpush1.bf16.xpose.msra.mxu0 0
        %1125 = vmatprep.subr.bf16.mxu0 0
        %1126 = vmatpush1.bf16.xpose.msra.mxu0 0
        %1127 = vmatprep.subr.bf16.mxu0 0
        %1128 = vmatpush1.bf16.xpose.msra.mxu0 0
        %1129 = vmatprep.subr.bf16.mxu0 0
        %1130 = vmatpush1.bf16.xpose.msra.mxu0 0
        %1131 = vmatprep.subr.bf16.mxu0 0
        %1132 = vmatpush1.bf16.xpose.msra.mxu0 0
        %1133 = vmatprep.subr.bf16.mxu0 0
        %1134 = vmatpush1.bf16.xpose.msra.mxu0 0
        %1135 = vmatprep.subr.bf16.mxu0 0
        %1136 = vmatpush1.bf16.xpose.msra.mxu0 %v1119
        %1137 = vmatprep.subr.bf16.mxu0 0
        %1138 = vmatpush2.bf16.xpose.msra.mxu0 0
        %1139 = vmatprep.subr.bf16.mxu0 0
        %1140 = vmatpush2.bf16.xpose.msra.mxu0 0
        %1141 = vmatprep.subr.bf16.mxu0 0
        %1142 = vmatpush2.bf16.xpose.msra.mxu0 0
        %1143 = vmatprep.subr.bf16.mxu0 0
        %1144 = vmatpush2.bf16.xpose.msra.mxu0 0
        %1145 = vmatprep.subr.bf16.mxu0 0
        %1146 = vmatpush2.bf16.xpose.msra.mxu0 0
        %1147 = vmatprep.subr.bf16.mxu0 0
        %1148 = vmatpush2.bf16.xpose.msra.mxu0 0
        %1149 = vmatprep.subr.bf16.mxu0 0
        %1150 = vmatpush2.bf16.xpose.msra.mxu0 0
        %1151 = vmatprep.subr.bf16.mxu0 0
        %1152 = vmatpush2.bf16.xpose.msra.mxu0 0
        %1153 = vmatprep.mubr.bf16.mxu0 0
        %1154 = vmatmul.mubr.bf16.gmra.mxu0 %v1116
        %v1155 = vpop.f32.mrf.mxu0
        %v1156 = vadd.f32 0.0, %v1155
        %v1157 = vpop.f32.mrf.mxu0
        %v1158 = vpop.f32.mrf.mxu0
        %v1159 = vpop.f32.mrf.mxu0
        %1160 = vdwg.mxu0
        %v1162 = vsel %vm1114, %v1111, 0
        %v1165 = vsel %vm1114, %v1113, 0
        %1167 = vmatprep.subr.bf16.mxu0 0
        %1168 = vmatpush1.bf16.xpose.msra.mxu0 0
        %1169 = vmatprep.subr.bf16.mxu0 0
        %1170 = vmatpush1.bf16.xpose.msra.mxu0 0
        %1171 = vmatprep.subr.bf16.mxu0 0
        %1172 = vmatpush1.bf16.xpose.msra.mxu0 0
        %1173 = vmatprep.subr.bf16.mxu0 0
        %1174 = vmatpush1.bf16.xpose.msra.mxu0 0
        %1175 = vmatprep.subr.bf16.mxu0 0
        %1176 = vmatpush1.bf16.xpose.msra.mxu0 0
        %1177 = vmatprep.subr.bf16.mxu0 0
        %1178 = vmatpush1.bf16.xpose.msra.mxu0 0
        %1179 = vmatprep.subr.bf16.mxu0 0
        %1180 = vmatpush1.bf16.xpose.msra.mxu0 0
        %1181 = vmatprep.subr.bf16.mxu0 0
        %1182 = vmatpush1.bf16.xpose.msra.mxu0 %v1165
        %1183 = vmatprep.subr.bf16.mxu0 0
        %1184 = vmatpush2.bf16.xpose.msra.mxu0 0
        %1185 = vmatprep.subr.bf16.mxu0 0
        %1186 = vmatpush2.bf16.xpose.msra.mxu0 0
        %1187 = vmatprep.subr.bf16.mxu0 0
        %1188 = vmatpush2.bf16.xpose.msra.mxu0 0
        %1189 = vmatprep.subr.bf16.mxu0 0
        %1190 = vmatpush2.bf16.xpose.msra.mxu0 0
        %1191 = vmatprep.subr.bf16.mxu0 0
        %1192 = vmatpush2.bf16.xpose.msra.mxu0 0
        %1193 = vmatprep.subr.bf16.mxu0 0
        %1194 = vmatpush2.bf16.xpose.msra.mxu0 0
        %1195 = vmatprep.subr.bf16.mxu0 0
        %1196 = vmatpush2.bf16.xpose.msra.mxu0 0
        %1197 = vmatprep.subr.bf16.mxu0 0
        %1198 = vmatpush2.bf16.xpose.msra.mxu0 0
        %1199 = vmatprep.mubr.bf16.mxu0 0
        %1200 = vmatmul.mubr.bf16.gmra.mxu0 %v1162
        %v1201 = vpop.f32.mrf.mxu0
        %v1202 = vadd.f32 0.0, %v1201
        %v1203 = vpop.f32.mrf.mxu0
        %v1204 = vpop.f32.mrf.mxu0
        %v1205 = vpop.f32.mrf.mxu0
        %1206 = vdwg.mxu0
        %v1207 = vsel %vm722, 1, 0
        %vm1208 = vcmp.eq.s32.totalorder %v1207, 1
        %v1209 = vsel %vm1208, -1e+30, %v1156
        %v1210 = vsel %vm1208, -1e+30, %v1202
        %vm1211 = vcmask 64512
        %v1212 = vsel %vm1211, %v1209, -inf
        %1213 = vmax.xlane.f32.xlu0 %v1212
        %v1214 = vpop.xlane.xlu0 %1213
        %v1215 = vsel %vm1211, %v1210, -inf
        %1216 = vmax.xlane.f32.xlu0 %v1215
        %v1217 = vpop.xlane.xlu0 %1216
        %v1218 = vsub.f32 %v1209, %v1214
        %v1219 = vsub.f32 %v1210, %v1217
        %v1220 = vmul.f32 %v1218, 1.442695
        %v1221 = vpow.pop %v1220
        %v1222 = vmul.f32 %v1219, 1.442695
        %v1223 = vpow.pop %v1222
        %v1224 = vsel %vm1211, %v1221, 0.0
        %1225 = vadd.xlane.f32.xlu0 %v1224
        %v1226 = vpop.xlane.xlu0 %1225
        %v1227 = vsel %vm1211, %v1223, 0.0
        %1228 = vadd.xlane.f32.xlu0 %v1227
        %v1229 = vpop.xlane.xlu0 %1228
        %v1230 = vrcp.pop %v1226
        %v1231 = vrcp.pop %v1229
        %v1232 = vmul.f32 %v1221, %v1230
        %v1233 = vmul.f32 %v1223, %v1231
        %v1234 = vpack.c.bf16 %v1232, %v1232
        %v1235 = vpack.c.bf16 %v1233, %v1233
        %v1236 = vpack.c.bf16 %v1053, %v1053
        %v1237 = vpack.c.bf16 %v1105, %v1105
        %v1239 = vsel %vm1211, %v1234, 0
        %vm1241 = vcmask 1043456
        %v1243 = vsel %vm1241, %v1236, 0
        %1245 = vmatprep.subr.bf16.mxu0 0
        %1246 = vmatpush1.bf16.msra.mxu0 0
        %1247 = vmatprep.subr.bf16.mxu0 0
        %1248 = vmatpush1.bf16.msra.mxu0 0
        %1249 = vmatprep.subr.bf16.mxu0 0
        %1250 = vmatpush1.bf16.msra.mxu0 0
        %1251 = vmatprep.subr.bf16.mxu0 0
        %1252 = vmatpush1.bf16.msra.mxu0 0
        %1253 = vmatprep.subr.bf16.mxu0 0
        %1254 = vmatpush1.bf16.msra.mxu0 0
        %1255 = vmatprep.subr.bf16.mxu0 0
        %1256 = vmatpush1.bf16.msra.mxu0 0
        %1257 = vmatprep.subr.bf16.mxu0 0
        %1258 = vmatpush1.bf16.msra.mxu0 0
        %1259 = vmatprep.subr.bf16.mxu0 0
        %1260 = vmatpush1.bf16.msra.mxu0 %v1243
        %1261 = vmatprep.subr.bf16.mxu0 0
        %1262 = vmatpush2.bf16.msra.mxu0 0
        %1263 = vmatprep.subr.bf16.mxu0 0
        %1264 = vmatpush2.bf16.msra.mxu0 0
        %1265 = vmatprep.subr.bf16.mxu0 0
        %1266 = vmatpush2.bf16.msra.mxu0 0
        %1267 = vmatprep.subr.bf16.mxu0 0
        %1268 = vmatpush2.bf16.msra.mxu0 0
        %1269 = vmatprep.subr.bf16.mxu0 0
        %1270 = vmatpush2.bf16.msra.mxu0 0
        %1271 = vmatprep.subr.bf16.mxu0 0
        %1272 = vmatpush2.bf16.msra.mxu0 0
        %1273 = vmatprep.subr.bf16.mxu0 0
        %1274 = vmatpush2.bf16.msra.mxu0 0
        %1275 = vmatprep.subr.bf16.mxu0 0
        %1276 = vmatpush2.bf16.msra.mxu0 0
        %1277 = vmatprep.mubr.bf16.mxu0 0
        %1278 = vmatmul.mubr.bf16.gmra.mxu0 %v1239
        %v1279 = vpop.f32.mrf.mxu0
        %v1280 = vadd.f32 0.0, %v1279
        %v1281 = vpop.f32.mrf.mxu0
        %v1282 = vpop.f32.mrf.mxu0
        %v1283 = vpop.f32.mrf.mxu0
        %1284 = vdwg.mxu0
        %v1286 = vsel %vm1211, %v1235, 0
        %v1289 = vsel %vm1241, %v1237, 0
        %1291 = vmatprep.subr.bf16.mxu0 0
        %1292 = vmatpush1.bf16.msra.mxu0 0
        %1293 = vmatprep.subr.bf16.mxu0 0
        %1294 = vmatpush1.bf16.msra.mxu0 0
        %1295 = vmatprep.subr.bf16.mxu0 0
        %1296 = vmatpush1.bf16.msra.mxu0 0
        %1297 = vmatprep.subr.bf16.mxu0 0
        %1298 = vmatpush1.bf16.msra.mxu0 0
        %1299 = vmatprep.subr.bf16.mxu0 0
        %1300 = vmatpush1.bf16.msra.mxu0 0
        %1301 = vmatprep.subr.bf16.mxu0 0
        %1302 = vmatpush1.bf16.msra.mxu0 0
        %1303 = vmatprep.subr.bf16.mxu0 0
        %1304 = vmatpush1.bf16.msra.mxu0 0
        %1305 = vmatprep.subr.bf16.mxu0 0
        %1306 = vmatpush1.bf16.msra.mxu0 %v1289
        %1307 = vmatprep.subr.bf16.mxu0 0
        %1308 = vmatpush2.bf16.msra.mxu0 0
        %1309 = vmatprep.subr.bf16.mxu0 0
        %1310 = vmatpush2.bf16.msra.mxu0 0
        %1311 = vmatprep.subr.bf16.mxu0 0
        %1312 = vmatpush2.bf16.msra.mxu0 0
        %1313 = vmatprep.subr.bf16.mxu0 0
        %1314 = vmatpush2.bf16.msra.mxu0 0
        %1315 = vmatprep.subr.bf16.mxu0 0
        %1316 = vmatpush2.bf16.msra.mxu0 0
        %1317 = vmatprep.subr.bf16.mxu0 0
        %1318 = vmatpush2.bf16.msra.mxu0 0
        %1319 = vmatprep.subr.bf16.mxu0 0
        %1320 = vmatpush2.bf16.msra.mxu0 0
        %1321 = vmatprep.subr.bf16.mxu0 0
        %1322 = vmatpush2.bf16.msra.mxu0 0
        %1323 = vmatprep.mubr.bf16.mxu0 0
        %1324 = vmatmul.mubr.bf16.gmra.mxu0 %v1286
        %v1325 = vpop.f32.mrf.mxu0
        %v1326 = vadd.f32 0.0, %v1325
        %v1327 = vpop.f32.mrf.mxu0
        %v1328 = vpop.f32.mrf.mxu0
        %v1329 = vpop.f32.mrf.mxu0
        %1330 = vdwg.mxu0
        %v1331 = vpack.c.bf16 %v1280, %v1280
        %v1332 = vpack.c.bf16 %v1326, %v1326
        %v1333 = vld [vmem:[%s9] sm:$0xf]
        %v1334 = vld [vmem:[%s9 + $0x4] sm:$0xf]
        %v1335 = vld [vmem:[%s9 + $0x8] sm:$0xf]
        %v1336 = vld [vmem:[%s9 + $0xc] sm:$0xf]
        %v1339 = vunpack.c.l.b16 %v1333
        %v1340 = vunpack.c.l.b16 %v1334
        %v1341 = vpack.c.b16 %v1340, %v1339
        %v1344 = vsel %vm1114, %v1331, 0
        %1346 = vmatprep.subr.bf16.mxu0 0
        %1347 = vmatpush1.bf16.msra.mxu0 0
        %1348 = vmatprep.subr.bf16.mxu0 0
        %1349 = vmatpush1.bf16.msra.mxu0 0
        %1350 = vmatprep.subr.bf16.mxu0 0
        %1351 = vmatpush1.bf16.msra.mxu0 0
        %1352 = vmatprep.subr.bf16.mxu0 0
        %1353 = vmatpush1.bf16.msra.mxu0 0
        %1354 = vmatprep.subr.bf16.mxu0 0
        %1355 = vmatpush1.bf16.msra.mxu0 0
        %1356 = vmatprep.subr.bf16.mxu0 0
        %1357 = vmatpush1.bf16.msra.mxu0 0
        %1358 = vmatprep.subr.bf16.mxu0 0
        %1359 = vmatpush1.bf16.msra.mxu0 0
        %1360 = vmatprep.subr.bf16.mxu0 0
        %1361 = vmatpush1.bf16.msra.mxu0 %v1341
        %1362 = vmatprep.subr.bf16.mxu0 0
        %1363 = vmatpush2.bf16.msra.mxu0 0
        %1364 = vmatprep.subr.bf16.mxu0 0
        %1365 = vmatpush2.bf16.msra.mxu0 0
        %1366 = vmatprep.subr.bf16.mxu0 0
        %1367 = vmatpush2.bf16.msra.mxu0 0
        %1368 = vmatprep.subr.bf16.mxu0 0
        %1369 = vmatpush2.bf16.msra.mxu0 0
        %1370 = vmatprep.subr.bf16.mxu0 0
        %1371 = vmatpush2.bf16.msra.mxu0 0
        %1372 = vmatprep.subr.bf16.mxu0 0
        %1373 = vmatpush2.bf16.msra.mxu0 0
        %1374 = vmatprep.subr.bf16.mxu0 0
        %1375 = vmatpush2.bf16.msra.mxu0 0
        %1376 = vmatprep.subr.bf16.mxu0 0
        %1377 = vmatpush2.bf16.msra.mxu0 0
        %1378 = vmatprep.mubr.bf16.mxu0 0
        %1379 = vmatmul.mubr.bf16.gmra.mxu0 %v1344
        %v1380 = vpop.f32.mrf.mxu0
        %v1381 = vadd.f32 0.0, %v1380
        %v1382 = vpop.f32.mrf.mxu0
        %v1383 = vpop.f32.mrf.mxu0
        %v1384 = vpop.f32.mrf.mxu0
        %1385 = vdwg.mxu0
        %v1388 = vunpack.c.l.b16 %v1335
        %v1389 = vunpack.c.l.b16 %v1336
        %v1390 = vpack.c.b16 %v1389, %v1388
        %v1393 = vsel %vm1114, %v1332, 0
        %1395 = vmatprep.subr.bf16.mxu0 0
        %1396 = vmatpush1.bf16.msra.mxu0 0
        %1397 = vmatprep.subr.bf16.mxu0 0
        %1398 = vmatpush1.bf16.msra.mxu0 0
        %1399 = vmatprep.subr.bf16.mxu0 0
        %1400 = vmatpush1.bf16.msra.mxu0 0
        %1401 = vmatprep.subr.bf16.mxu0 0
        %1402 = vmatpush1.bf16.msra.mxu0 0
        %1403 = vmatprep.subr.bf16.mxu0 0
        %1404 = vmatpush1.bf16.msra.mxu0 0
        %1405 = vmatprep.subr.bf16.mxu0 0
        %1406 = vmatpush1.bf16.msra.mxu0 0
        %1407 = vmatprep.subr.bf16.mxu0 0
        %1408 = vmatpush1.bf16.msra.mxu0 0
        %1409 = vmatprep.subr.bf16.mxu0 0
        %1410 = vmatpush1.bf16.msra.mxu0 %v1390
        %1411 = vmatprep.subr.bf16.mxu0 0
        %1412 = vmatpush2.bf16.msra.mxu0 0
        %1413 = vmatprep.subr.bf16.mxu0 0
        %1414 = vmatpush2.bf16.msra.mxu0 0
        %1415 = vmatprep.subr.bf16.mxu0 0
        %1416 = vmatpush2.bf16.msra.mxu0 0
        %1417 = vmatprep.subr.bf16.mxu0 0
        %1418 = vmatpush2.bf16.msra.mxu0 0
        %1419 = vmatprep.subr.bf16.mxu0 0
        %1420 = vmatpush2.bf16.msra.mxu0 0
        %1421 = vmatprep.subr.bf16.mxu0 0
        %1422 = vmatpush2.bf16.msra.mxu0 0
        %1423 = vmatprep.subr.bf16.mxu0 0
        %1424 = vmatpush2.bf16.msra.mxu0 0
        %1425 = vmatprep.subr.bf16.mxu0 0
        %1426 = vmatpush2.bf16.msra.mxu0 0
        %1427 = vmatprep.mubr.bf16.mxu0 0
        %1428 = vmatmul.mubr.bf16.gmra.mxu0 %v1393
        %v1429 = vpop.f32.mrf.mxu0
        %v1430 = vadd.f32 0.0, %v1429
        %v1431 = vpop.f32.mrf.mxu0
        %v1432 = vpop.f32.mrf.mxu0
        %v1433 = vpop.f32.mrf.mxu0
        %1434 = vdwg.mxu0
        %v1435 = vadd.f32 %v1381, %v1430
        %v1436 = vadd.f32 %v712, %v1435
        %v1437 = vld [vmem:[%s20] sm:$0x1]
        %v1438 = vlaneseq
        %v1439 = vshrl.u32 %v1438, 7
        %v1440 = vsub.s32 0, %v1439
        %v1441 = vrot.slane %v1437, %v1440
        %v1442 = vadd.f32 %v1436, %v1441
        %v1443 = vld [vmem:[%s20 + $0x1] sm:$0x1]
        %v1444 = vld [vmem:[%s20 + $0x2] sm:$0x1]
        %v1445 = vsel %vm759, %v1442, 0.0
        %1446 = vadd.xlane.f32.xlu0 %v1445
        %v1447 = vpop.xlane.xlu0 %1446
        %v1448 = vrcp.pop 32.0
        %v1449 = vmul.f32 %v1447, %v1448
        %v1450 = vsub.f32 %v1442, %v1449
        %v1451 = vmul.f32 %v1450, %v1450
        %v1452 = vsel %vm759, %v1451, 0.0
        %1453 = vadd.xlane.f32.xlu0 %v1452
        %v1454 = vpop.xlane.xlu0 %1453
        %v1455 = vmul.f32 %v1454, %v1448
        %v1456 = vadd.f32 %v1455, 1e-05
        %v1457 = vrsqrt.pop %v1456
        %v1458 = vmul.f32 %v1450, %v1457
        %v1459 = vlaneseq
        %v1460 = vshrl.u32 %v1459, 7
        %v1461 = vsub.s32 0, %v1460
        %v1462 = vrot.slane %v1443, %v1461
        %v1463 = vmul.f32 %v1458, %v1462
        %v1464 = vlaneseq
        %v1465 = vshrl.u32 %v1464, 7
        %v1466 = vsub.s32 0, %v1465
        %v1467 = vrot.slane %v1444, %v1466
        %v1468 = vadd.f32 %v1463, %v1467
        %v1469 = vpack.c.bf16 %v1468, %v1468
        %v1470 = vld [vmem:[%s10] sm:$0xf]
        %v1471 = vld [vmem:[%s10 + $0x4] sm:$0xf]
        %v1472 = vld [vmem:[%s10 + $0x8] sm:$0xf]
        %v1473 = vld [vmem:[%s10 + $0xc] sm:$0xf]
        %v1474 = vld [vmem:[%s10 + $0x10] sm:$0xf]
        %v1475 = vld [vmem:[%s10 + $0x14] sm:$0xf]
        %v1476 = vld [vmem:[%s10 + $0x18] sm:$0xf]
        %v1477 = vld [vmem:[%s10 + $0x1c] sm:$0xf]
        %v1478 = vld [vmem:[%s11] sm:$0x1]
        %v1479 = vld [vmem:[%s11 + $0x1] sm:$0x1]
        %v1482 = vlaneseq
        %v1483 = vshrl.u32 %v1482, 7
        %v1484 = vsub.s32 0, %v1483
        %v1485 = vrot.slane %v1478, %v1484
        %v1486 = vlaneseq
        %v1487 = vshrl.u32 %v1486, 7
        %v1488 = vsub.s32 0, %v1487
        %v1489 = vrot.slane %v1479, %v1488
        %v1496 = vunpack.c.l.b16 %v1470
        %v1497 = vunpack.c.l.b16 %v1471
        %v1498 = vunpack.c.l.b16 %v1472
        %v1499 = vunpack.c.l.b16 %v1473
        %v1500 = vpack.c.b16 %v1497, %v1496
        %v1501 = vpack.c.b16 %v1499, %v1498
        %v1505 = vsel %vm759, %v1469, 0
        %1507 = vmatprep.subr.bf16.mxu0 0
        %1508 = vmatpush1.bf16.msra.mxu0 0
        %1509 = vmatprep.subr.bf16.mxu0 0
        %1510 = vmatpush1.bf16.msra.mxu0 0
        %1511 = vmatprep.subr.bf16.mxu0 0
        %1512 = vmatpush1.bf16.msra.mxu0 0
        %1513 = vmatprep.subr.bf16.mxu0 0
        %1514 = vmatpush1.bf16.msra.mxu0 0
        %1515 = vmatprep.subr.bf16.mxu0 0
        %1516 = vmatpush1.bf16.msra.mxu0 0
        %1517 = vmatprep.subr.bf16.mxu0 0
        %1518 = vmatpush1.bf16.msra.mxu0 0
        %1519 = vmatprep.subr.bf16.mxu0 0
        %1520 = vmatpush1.bf16.msra.mxu0 %v1501
        %1521 = vmatprep.subr.bf16.mxu0 0
        %1522 = vmatpush1.bf16.msra.mxu0 %v1500
        %1523 = vmatprep.subr.bf16.mxu0 0
        %1524 = vmatpush2.bf16.msra.mxu0 0
        %1525 = vmatprep.subr.bf16.mxu0 0
        %1526 = vmatpush2.bf16.msra.mxu0 0
        %1527 = vmatprep.subr.bf16.mxu0 0
        %1528 = vmatpush2.bf16.msra.mxu0 0
        %1529 = vmatprep.subr.bf16.mxu0 0
        %1530 = vmatpush2.bf16.msra.mxu0 0
        %1531 = vmatprep.subr.bf16.mxu0 0
        %1532 = vmatpush2.bf16.msra.mxu0 0
        %1533 = vmatprep.subr.bf16.mxu0 0
        %1534 = vmatpush2.bf16.msra.mxu0 0
        %1535 = vmatprep.subr.bf16.mxu0 0
        %1536 = vmatpush2.bf16.msra.mxu0 0
        %1537 = vmatprep.subr.bf16.mxu0 0
        %1538 = vmatpush2.bf16.msra.mxu0 0
        %1539 = vmatprep.mubr.bf16.mxu0 0
        %1540 = vmatmul.mubr.bf16.gmra.mxu0 %v1505
        %v1541 = vpop.f32.mrf.mxu0
        %v1542 = vadd.f32 %v1485, %v1541
        %v1543 = vpop.f32.mrf.mxu0
        %v1544 = vpop.f32.mrf.mxu0
        %v1545 = vpop.f32.mrf.mxu0
        %1546 = vdwg.mxu0
        %v1551 = vunpack.c.l.b16 %v1474
        %v1552 = vunpack.c.l.b16 %v1475
        %v1553 = vunpack.c.l.b16 %v1476
        %v1554 = vunpack.c.l.b16 %v1477
        %v1555 = vpack.c.b16 %v1552, %v1551
        %v1556 = vpack.c.b16 %v1554, %v1553
        %1559 = vmatprep.subr.bf16.mxu0 0
        %1560 = vmatpush1.bf16.msra.mxu0 0
        %1561 = vmatprep.subr.bf16.mxu0 0
        %1562 = vmatpush1.bf16.msra.mxu0 0
        %1563 = vmatprep.subr.bf16.mxu0 0
        %1564 = vmatpush1.bf16.msra.mxu0 0
        %1565 = vmatprep.subr.bf16.mxu0 0
        %1566 = vmatpush1.bf16.msra.mxu0 0
        %1567 = vmatprep.subr.bf16.mxu0 0
        %1568 = vmatpush1.bf16.msra.mxu0 0
        %1569 = vmatprep.subr.bf16.mxu0 0
        %1570 = vmatpush1.bf16.msra.mxu0 0
        %1571 = vmatprep.subr.bf16.mxu0 0
        %1572 = vmatpush1.bf16.msra.mxu0 %v1556
        %1573 = vmatprep.subr.bf16.mxu0 0
        %1574 = vmatpush1.bf16.msra.mxu0 %v1555
        %1575 = vmatprep.subr.bf16.mxu0 0
        %1576 = vmatpush2.bf16.msra.mxu0 0
        %1577 = vmatprep.subr.bf16.mxu0 0
        %1578 = vmatpush2.bf16.msra.mxu0 0
        %1579 = vmatprep.subr.bf16.mxu0 0
        %1580 = vmatpush2.bf16.msra.mxu0 0
        %1581 = vmatprep.subr.bf16.mxu0 0
        %1582 = vmatpush2.bf16.msra.mxu0 0
        %1583 = vmatprep.subr.bf16.mxu0 0
        %1584 = vmatpush2.bf16.msra.mxu0 0
        %1585 = vmatprep.subr.bf16.mxu0 0
        %1586 = vmatpush2.bf16.msra.mxu0 0
        %1587 = vmatprep.subr.bf16.mxu0 0
        %1588 = vmatpush2.bf16.msra.mxu0 0
        %1589 = vmatprep.subr.bf16.mxu0 0
        %1590 = vmatpush2.bf16.msra.mxu0 0
        %1591 = vmatprep.mubr.bf16.mxu0 0
        %1592 = vmatmul.mubr.bf16.gmra.mxu0 %v1505
        %v1593 = vpop.f32.mrf.mxu0
        %v1594 = vadd.f32 %v1489, %v1593
        %v1595 = vpop.f32.mrf.mxu0
        %v1596 = vpop.f32.mrf.mxu0
        %v1597 = vpop.f32.mrf.mxu0
        %1598 = vdwg.mxu0
        %v1599 = vld [vmem:[%s12] sm:$0xf]
        %v1600 = vld [vmem:[%s12 + $0x4] sm:$0xf]
        %v1601 = vld [vmem:[%s12 + $0x8] sm:$0xf]
        %v1602 = vld [vmem:[%s12 + $0xc] sm:$0xf]
        %v1603 = vld [vmem:[%s12 + $0x10] sm:$0xf]
        %v1604 = vld [vmem:[%s12 + $0x14] sm:$0xf]
        %v1605 = vld [vmem:[%s12 + $0x18] sm:$0xf]
        %v1606 = vld [vmem:[%s12 + $0x1c] sm:$0xf]
        %v1607 = vld [vmem:[%s13] sm:$0x1]
        %v1608 = vld [vmem:[%s13 + $0x1] sm:$0x1]
        %v1611 = vlaneseq
        %v1612 = vshrl.u32 %v1611, 7
        %v1613 = vsub.s32 0, %v1612
        %v1614 = vrot.slane %v1607, %v1613
        %v1615 = vlaneseq
        %v1616 = vshrl.u32 %v1615, 7
        %v1617 = vsub.s32 0, %v1616
        %v1618 = vrot.slane %v1608, %v1617
        %v1625 = vunpack.c.l.b16 %v1599
        %v1626 = vunpack.c.l.b16 %v1600
        %v1627 = vunpack.c.l.b16 %v1601
        %v1628 = vunpack.c.l.b16 %v1602
        %v1629 = vpack.c.b16 %v1626, %v1625
        %v1630 = vpack.c.b16 %v1628, %v1627
        %v1634 = vsel %vm759, %v714, 0
        %1636 = vmatprep.subr.bf16.mxu0 0
        %1637 = vmatpush1.bf16.msra.mxu0 0
        %1638 = vmatprep.subr.bf16.mxu0 0
        %1639 = vmatpush1.bf16.msra.mxu0 0
        %1640 = vmatprep.subr.bf16.mxu0 0
        %1641 = vmatpush1.bf16.msra.mxu0 0
        %1642 = vmatprep.subr.bf16.mxu0 0
        %1643 = vmatpush1.bf16.msra.mxu0 0
        %1644 = vmatprep.subr.bf16.mxu0 0
        %1645 = vmatpush1.bf16.msra.mxu0 0
        %1646 = vmatprep.subr.bf16.mxu0 0
        %1647 = vmatpush1.bf16.msra.mxu0 0
        %1648 = vmatprep.subr.bf16.mxu0 0
        %1649 = vmatpush1.bf16.msra.mxu0 %v1630
        %1650 = vmatprep.subr.bf16.mxu0 0
        %1651 = vmatpush1.bf16.msra.mxu0 %v1629
        %1652 = vmatprep.subr.bf16.mxu0 0
        %1653 = vmatpush2.bf16.msra.mxu0 0
        %1654 = vmatprep.subr.bf16.mxu0 0
        %1655 = vmatpush2.bf16.msra.mxu0 0
        %1656 = vmatprep.subr.bf16.mxu0 0
        %1657 = vmatpush2.bf16.msra.mxu0 0
        %1658 = vmatprep.subr.bf16.mxu0 0
        %1659 = vmatpush2.bf16.msra.mxu0 0
        %1660 = vmatprep.subr.bf16.mxu0 0
        %1661 = vmatpush2.bf16.msra.mxu0 0
        %1662 = vmatprep.subr.bf16.mxu0 0
        %1663 = vmatpush2.bf16.msra.mxu0 0
        %1664 = vmatprep.subr.bf16.mxu0 0
        %1665 = vmatpush2.bf16.msra.mxu0 0
        %1666 = vmatprep.subr.bf16.mxu0 0
        %1667 = vmatpush2.bf16.msra.mxu0 0
        %1668 = vmatprep.mubr.bf16.mxu0 0
        %1669 = vmatmul.mubr.bf16.gmra.mxu0 %v1634
        %v1670 = vpop.f32.mrf.mxu0
        %v1671 = vadd.f32 %v1614, %v1670
        %v1672 = vpop.f32.mrf.mxu0
        %v1673 = vpop.f32.mrf.mxu0
        %v1674 = vpop.f32.mrf.mxu0
        %1675 = vdwg.mxu0
        %v1680 = vunpack.c.l.b16 %v1603
        %v1681 = vunpack.c.l.b16 %v1604
        %v1682 = vunpack.c.l.b16 %v1605
        %v1683 = vunpack.c.l.b16 %v1606
        %v1684 = vpack.c.b16 %v1681, %v1680
        %v1685 = vpack.c.b16 %v1683, %v1682
        %1688 = vmatprep.subr.bf16.mxu0 0
        %1689 = vmatpush1.bf16.msra.mxu0 0
        %1690 = vmatprep.subr.bf16.mxu0 0
        %1691 = vmatpush1.bf16.msra.mxu0 0
        %1692 = vmatprep.subr.bf16.mxu0 0
        %1693 = vmatpush1.bf16.msra.mxu0 0
        %1694 = vmatprep.subr.bf16.mxu0 0
        %1695 = vmatpush1.bf16.msra.mxu0 0
        %1696 = vmatprep.subr.bf16.mxu0 0
        %1697 = vmatpush1.bf16.msra.mxu0 0
        %1698 = vmatprep.subr.bf16.mxu0 0
        %1699 = vmatpush1.bf16.msra.mxu0 0
        %1700 = vmatprep.subr.bf16.mxu0 0
        %1701 = vmatpush1.bf16.msra.mxu0 %v1685
        %1702 = vmatprep.subr.bf16.mxu0 0
        %1703 = vmatpush1.bf16.msra.mxu0 %v1684
        %1704 = vmatprep.subr.bf16.mxu0 0
        %1705 = vmatpush2.bf16.msra.mxu0 0
        %1706 = vmatprep.subr.bf16.mxu0 0
        %1707 = vmatpush2.bf16.msra.mxu0 0
        %1708 = vmatprep.subr.bf16.mxu0 0
        %1709 = vmatpush2.bf16.msra.mxu0 0
        %1710 = vmatprep.subr.bf16.mxu0 0
        %1711 = vmatpush2.bf16.msra.mxu0 0
        %1712 = vmatprep.subr.bf16.mxu0 0
        %1713 = vmatpush2.bf16.msra.mxu0 0
        %1714 = vmatprep.subr.bf16.mxu0 0
        %1715 = vmatpush2.bf16.msra.mxu0 0
        %1716 = vmatprep.subr.bf16.mxu0 0
        %1717 = vmatpush2.bf16.msra.mxu0 0
        %1718 = vmatprep.subr.bf16.mxu0 0
        %1719 = vmatpush2.bf16.msra.mxu0 0
        %1720 = vmatprep.mubr.bf16.mxu0 0
        %1721 = vmatmul.mubr.bf16.gmra.mxu0 %v1634
        %v1722 = vpop.f32.mrf.mxu0
        %v1723 = vadd.f32 %v1618, %v1722
        %v1724 = vpop.f32.mrf.mxu0
        %v1725 = vpop.f32.mrf.mxu0
        %v1726 = vpop.f32.mrf.mxu0
        %1727 = vdwg.mxu0
        %v1728 = vld [vmem:[%s14] sm:$0xf]
        %v1729 = vld [vmem:[%s14 + $0x4] sm:$0xf]
        %v1730 = vld [vmem:[%s14 + $0x8] sm:$0xf]
        %v1731 = vld [vmem:[%s14 + $0xc] sm:$0xf]
        %v1732 = vld [vmem:[%s14 + $0x10] sm:$0xf]
        %v1733 = vld [vmem:[%s14 + $0x14] sm:$0xf]
        %v1734 = vld [vmem:[%s14 + $0x18] sm:$0xf]
        %v1735 = vld [vmem:[%s14 + $0x1c] sm:$0xf]
        %v1736 = vld [vmem:[%s15] sm:$0x1]
        %v1737 = vld [vmem:[%s15 + $0x1] sm:$0x1]
        %v1740 = vlaneseq
        %v1741 = vshrl.u32 %v1740, 7
        %v1742 = vsub.s32 0, %v1741
        %v1743 = vrot.slane %v1736, %v1742
        %v1744 = vlaneseq
        %v1745 = vshrl.u32 %v1744, 7
        %v1746 = vsub.s32 0, %v1745
        %v1747 = vrot.slane %v1737, %v1746
        %v1754 = vunpack.c.l.b16 %v1728
        %v1755 = vunpack.c.l.b16 %v1729
        %v1756 = vunpack.c.l.b16 %v1730
        %v1757 = vunpack.c.l.b16 %v1731
        %v1758 = vpack.c.b16 %v1755, %v1754
        %v1759 = vpack.c.b16 %v1757, %v1756
        %1762 = vmatprep.subr.bf16.mxu0 0
        %1763 = vmatpush1.bf16.msra.mxu0 0
        %1764 = vmatprep.subr.bf16.mxu0 0
        %1765 = vmatpush1.bf16.msra.mxu0 0
        %1766 = vmatprep.subr.bf16.mxu0 0
        %1767 = vmatpush1.bf16.msra.mxu0 0
        %1768 = vmatprep.subr.bf16.mxu0 0
        %1769 = vmatpush1.bf16.msra.mxu0 0
        %1770 = vmatprep.subr.bf16.mxu0 0
        %1771 = vmatpush1.bf16.msra.mxu0 0
        %1772 = vmatprep.subr.bf16.mxu0 0
        %1773 = vmatpush1.bf16.msra.mxu0 0
        %1774 = vmatprep.subr.bf16.mxu0 0
        %1775 = vmatpush1.bf16.msra.mxu0 %v1759
        %1776 = vmatprep.subr.bf16.mxu0 0
        %1777 = vmatpush1.bf16.msra.mxu0 %v1758
        %1778 = vmatprep.subr.bf16.mxu0 0
        %1779 = vmatpush2.bf16.msra.mxu0 0
        %1780 = vmatprep.subr.bf16.mxu0 0
        %1781 = vmatpush2.bf16.msra.mxu0 0
        %1782 = vmatprep.subr.bf16.mxu0 0
        %1783 = vmatpush2.bf16.msra.mxu0 0
        %1784 = vmatprep.subr.bf16.mxu0 0
        %1785 = vmatpush2.bf16.msra.mxu0 0
        %1786 = vmatprep.subr.bf16.mxu0 0
        %1787 = vmatpush2.bf16.msra.mxu0 0
        %1788 = vmatprep.subr.bf16.mxu0 0
        %1789 = vmatpush2.bf16.msra.mxu0 0
        %1790 = vmatprep.subr.bf16.mxu0 0
        %1791 = vmatpush2.bf16.msra.mxu0 0
        %1792 = vmatprep.subr.bf16.mxu0 0
        %1793 = vmatpush2.bf16.msra.mxu0 0
        %1794 = vmatprep.mubr.bf16.mxu0 0
        %1795 = vmatmul.mubr.bf16.gmra.mxu0 %v1634
        %v1796 = vpop.f32.mrf.mxu0
        %v1797 = vadd.f32 %v1743, %v1796
        %v1798 = vpop.f32.mrf.mxu0
        %v1799 = vpop.f32.mrf.mxu0
        %v1800 = vpop.f32.mrf.mxu0
        %1801 = vdwg.mxu0
        %v1806 = vunpack.c.l.b16 %v1732
        %v1807 = vunpack.c.l.b16 %v1733
        %v1808 = vunpack.c.l.b16 %v1734
        %v1809 = vunpack.c.l.b16 %v1735
        %v1810 = vpack.c.b16 %v1807, %v1806
        %v1811 = vpack.c.b16 %v1809, %v1808
        %1814 = vmatprep.subr.bf16.mxu0 0
        %1815 = vmatpush1.bf16.msra.mxu0 0
        %1816 = vmatprep.subr.bf16.mxu0 0
        %1817 = vmatpush1.bf16.msra.mxu0 0
        %1818 = vmatprep.subr.bf16.mxu0 0
        %1819 = vmatpush1.bf16.msra.mxu0 0
        %1820 = vmatprep.subr.bf16.mxu0 0
        %1821 = vmatpush1.bf16.msra.mxu0 0
        %1822 = vmatprep.subr.bf16.mxu0 0
        %1823 = vmatpush1.bf16.msra.mxu0 0
        %1824 = vmatprep.subr.bf16.mxu0 0
        %1825 = vmatpush1.bf16.msra.mxu0 0
        %1826 = vmatprep.subr.bf16.mxu0 0
        %1827 = vmatpush1.bf16.msra.mxu0 %v1811
        %1828 = vmatprep.subr.bf16.mxu0 0
        %1829 = vmatpush1.bf16.msra.mxu0 %v1810
        %1830 = vmatprep.subr.bf16.mxu0 0
        %1831 = vmatpush2.bf16.msra.mxu0 0
        %1832 = vmatprep.subr.bf16.mxu0 0
        %1833 = vmatpush2.bf16.msra.mxu0 0
        %1834 = vmatprep.subr.bf16.mxu0 0
        %1835 = vmatpush2.bf16.msra.mxu0 0
        %1836 = vmatprep.subr.bf16.mxu0 0
        %1837 = vmatpush2.bf16.msra.mxu0 0
        %1838 = vmatprep.subr.bf16.mxu0 0
        %1839 = vmatpush2.bf16.msra.mxu0 0
        %1840 = vmatprep.subr.bf16.mxu0 0
        %1841 = vmatpush2.bf16.msra.mxu0 0
        %1842 = vmatprep.subr.bf16.mxu0 0
        %1843 = vmatpush2.bf16.msra.mxu0 0
        %1844 = vmatprep.subr.bf16.mxu0 0
        %1845 = vmatpush2.bf16.msra.mxu0 0
        %1846 = vmatprep.mubr.bf16.mxu0 0
        %1847 = vmatmul.mubr.bf16.gmra.mxu0 %v1634
        %v1848 = vpop.f32.mrf.mxu0
        %v1849 = vadd.f32 %v1747, %v1848
        %v1850 = vpop.f32.mrf.mxu0
        %v1851 = vpop.f32.mrf.mxu0
        %v1852 = vpop.f32.mrf.mxu0
        %1853 = vdwg.mxu0
        %v1854 = vpack.c.bf16 %v1542, %v1542
        %v1855 = vpack.c.bf16 %v1594, %v1594
        %v1856 = vpack.c.bf16 %v1671, %v1671
        %v1857 = vpack.c.bf16 %v1723, %v1723
        %v1859 = vsel %vm1114, %v1854, 0
        %v1862 = vsel %vm1114, %v1856, 0
        %1864 = vmatprep.subr.bf16.mxu0 0
        %1865 = vmatpush1.bf16.xpose.msra.mxu0 0
        %1866 = vmatprep.subr.bf16.mxu0 0
        %1867 = vmatpush1.bf16.xpose.msra.mxu0 0
        %1868 = vmatprep.subr.bf16.mxu0 0
        %1869 = vmatpush1.bf16.xpose.msra.mxu0 0
        %1870 = vmatprep.subr.bf16.mxu0 0
        %1871 = vmatpush1.bf16.xpose.msra.mxu0 0
        %1872 = vmatprep.subr.bf16.mxu0 0
        %1873 = vmatpush1.bf16.xpose.msra.mxu0 0
        %1874 = vmatprep.subr.bf16.mxu0 0
        %1875 = vmatpush1.bf16.xpose.msra.mxu0 0
        %1876 = vmatprep.subr.bf16.mxu0 0
        %1877 = vmatpush1.bf16.xpose.msra.mxu0 0
        %1878 = vmatprep.subr.bf16.mxu0 0
        %1879 = vmatpush1.bf16.xpose.msra.mxu0 %v1862
        %1880 = vmatprep.subr.bf16.mxu0 0
        %1881 = vmatpush2.bf16.xpose.msra.mxu0 0
        %1882 = vmatprep.subr.bf16.mxu0 0
        %1883 = vmatpush2.bf16.xpose.msra.mxu0 0
        %1884 = vmatprep.subr.bf16.mxu0 0
        %1885 = vmatpush2.bf16.xpose.msra.mxu0 0
        %1886 = vmatprep.subr.bf16.mxu0 0
        %1887 = vmatpush2.bf16.xpose.msra.mxu0 0
        %1888 = vmatprep.subr.bf16.mxu0 0
        %1889 = vmatpush2.bf16.xpose.msra.mxu0 0
        %1890 = vmatprep.subr.bf16.mxu0 0
        %1891 = vmatpush2.bf16.xpose.msra.mxu0 0
        %1892 = vmatprep.subr.bf16.mxu0 0
        %1893 = vmatpush2.bf16.xpose.msra.mxu0 0
        %1894 = vmatprep.subr.bf16.mxu0 0
        %1895 = vmatpush2.bf16.xpose.msra.mxu0 0
        %1896 = vmatprep.mubr.bf16.mxu0 0
        %1897 = vmatmul.mubr.bf16.gmra.mxu0 %v1859
        %v1898 = vpop.f32.mrf.mxu0
        %v1899 = vadd.f32 0.0, %v1898
        %v1900 = vpop.f32.mrf.mxu0
        %v1901 = vpop.f32.mrf.mxu0
        %v1902 = vpop.f32.mrf.mxu0
        %1903 = vdwg.mxu0
        %v1905 = vsel %vm1114, %v1855, 0
        %v1908 = vsel %vm1114, %v1857, 0
        %1910 = vmatprep.subr.bf16.mxu0 0
        %1911 = vmatpush1.bf16.xpose.msra.mxu0 0
        %1912 = vmatprep.subr.bf16.mxu0 0
        %1913 = vmatpush1.bf16.xpose.msra.mxu0 0
        %1914 = vmatprep.subr.bf16.mxu0 0
        %1915 = vmatpush1.bf16.xpose.msra.mxu0 0
        %1916 = vmatprep.subr.bf16.mxu0 0
        %1917 = vmatpush1.bf16.xpose.msra.mxu0 0
        %1918 = vmatprep.subr.bf16.mxu0 0
        %1919 = vmatpush1.bf16.xpose.msra.mxu0 0
        %1920 = vmatprep.subr.bf16.mxu0 0
        %1921 = vmatpush1.bf16.xpose.msra.mxu0 0
        %1922 = vmatprep.subr.bf16.mxu0 0
        %1923 = vmatpush1.bf16.xpose.msra.mxu0 0
        %1924 = vmatprep.subr.bf16.mxu0 0
        %1925 = vmatpush1.bf16.xpose.msra.mxu0 %v1908
        %1926 = vmatprep.subr.bf16.mxu0 0
        %1927 = vmatpush2.bf16.xpose.msra.mxu0 0
        %1928 = vmatprep.subr.bf16.mxu0 0
        %1929 = vmatpush2.bf16.xpose.msra.mxu0 0
        %1930 = vmatprep.subr.bf16.mxu0 0
        %1931 = vmatpush2.bf16.xpose.msra.mxu0 0
        %1932 = vmatprep.subr.bf16.mxu0 0
        %1933 = vmatpush2.bf16.xpose.msra.mxu0 0
        %1934 = vmatprep.subr.bf16.mxu0 0
        %1935 = vmatpush2.bf16.xpose.msra.mxu0 0
        %1936 = vmatprep.subr.bf16.mxu0 0
        %1937 = vmatpush2.bf16.xpose.msra.mxu0 0
        %1938 = vmatprep.subr.bf16.mxu0 0
        %1939 = vmatpush2.bf16.xpose.msra.mxu0 0
        %1940 = vmatprep.subr.bf16.mxu0 0
        %1941 = vmatpush2.bf16.xpose.msra.mxu0 0
        %1942 = vmatprep.mubr.bf16.mxu0 0
        %1943 = vmatmul.mubr.bf16.gmra.mxu0 %v1905
        %v1944 = vpop.f32.mrf.mxu0
        %v1945 = vadd.f32 0.0, %v1944
        %v1946 = vpop.f32.mrf.mxu0
        %v1947 = vpop.f32.mrf.mxu0
        %v1948 = vpop.f32.mrf.mxu0
        %1949 = vdwg.mxu0
        %v1950 = vsel %vm1211, %v1899, -inf
        %1951 = vmax.xlane.f32.xlu0 %v1950
        %v1952 = vpop.xlane.xlu0 %1951
        %v1953 = vsel %vm1211, %v1945, -inf
        %1954 = vmax.xlane.f32.xlu0 %v1953
        %v1955 = vpop.xlane.xlu0 %1954
        %v1956 = vsub.f32 %v1899, %v1952
        %v1957 = vsub.f32 %v1945, %v1955
        %v1958 = vmul.f32 %v1956, 1.442695
        %v1959 = vpow.pop %v1958
        %v1960 = vmul.f32 %v1957, 1.442695
        %v1961 = vpow.pop %v1960
        %v1962 = vsel %vm1211, %v1959, 0.0
        %1963 = vadd.xlane.f32.xlu0 %v1962
        %v1964 = vpop.xlane.xlu0 %1963
        %v1965 = vsel %vm1211, %v1961, 0.0
        %1966 = vadd.xlane.f32.xlu0 %v1965
        %v1967 = vpop.xlane.xlu0 %1966
        %v1968 = vrcp.pop %v1964
        %v1969 = vrcp.pop %v1967
        %v1970 = vmul.f32 %v1959, %v1968
        %v1971 = vmul.f32 %v1961, %v1969
        %v1972 = vpack.c.bf16 %v1970, %v1970
        %v1973 = vpack.c.bf16 %v1971, %v1971
        %v1974 = vpack.c.bf16 %v1797, %v1797
        %v1975 = vpack.c.bf16 %v1849, %v1849
        %v1977 = vsel %vm1211, %v1972, 0
        %v1980 = vsel %vm1241, %v1974, 0
        %1982 = vmatprep.subr.bf16.mxu0 0
        %1983 = vmatpush1.bf16.msra.mxu0 0
        %1984 = vmatprep.subr.bf16.mxu0 0
        %1985 = vmatpush1.bf16.msra.mxu0 0
        %1986 = vmatprep.subr.bf16.mxu0 0
        %1987 = vmatpush1.bf16.msra.mxu0 0
        %1988 = vmatprep.subr.bf16.mxu0 0
        %1989 = vmatpush1.bf16.msra.mxu0 0
        %1990 = vmatprep.subr.bf16.mxu0 0
        %1991 = vmatpush1.bf16.msra.mxu0 0
        %1992 = vmatprep.subr.bf16.mxu0 0
        %1993 = vmatpush1.bf16.msra.mxu0 0
        %1994 = vmatprep.subr.bf16.mxu0 0
        %1995 = vmatpush1.bf16.msra.mxu0 0
        %1996 = vmatprep.subr.bf16.mxu0 0
        %1997 = vmatpush1.bf16.msra.mxu0 %v1980
        %1998 = vmatprep.subr.bf16.mxu0 0
        %1999 = vmatpush2.bf16.msra.mxu0 0
        %2000 = vmatprep.subr.bf16.mxu0 0
        %2001 = vmatpush2.bf16.msra.mxu0 0
        %2002 = vmatprep.subr.bf16.mxu0 0
        %2003 = vmatpush2.bf16.msra.mxu0 0
        %2004 = vmatprep.subr.bf16.mxu0 0
        %2005 = vmatpush2.bf16.msra.mxu0 0
        %2006 = vmatprep.subr.bf16.mxu0 0
        %2007 = vmatpush2.bf16.msra.mxu0 0
        %2008 = vmatprep.subr.bf16.mxu0 0
        %2009 = vmatpush2.bf16.msra.mxu0 0
        %2010 = vmatprep.subr.bf16.mxu0 0
        %2011 = vmatpush2.bf16.msra.mxu0 0
        %2012 = vmatprep.subr.bf16.mxu0 0
        %2013 = vmatpush2.bf16.msra.mxu0 0
        %2014 = vmatprep.mubr.bf16.mxu0 0
        %2015 = vmatmul.mubr.bf16.gmra.mxu0 %v1977
        %v2016 = vpop.f32.mrf.mxu0
        %v2017 = vadd.f32 0.0, %v2016
        %v2018 = vpop.f32.mrf.mxu0
        %v2019 = vpop.f32.mrf.mxu0
        %v2020 = vpop.f32.mrf.mxu0
        %2021 = vdwg.mxu0
        %v2023 = vsel %vm1211, %v1973, 0
        %v2026 = vsel %vm1241, %v1975, 0
        %2028 = vmatprep.subr.bf16.mxu0 0
        %2029 = vmatpush1.bf16.msra.mxu0 0
        %2030 = vmatprep.subr.bf16.mxu0 0
        %2031 = vmatpush1.bf16.msra.mxu0 0
        %2032 = vmatprep.subr.bf16.mxu0 0
        %2033 = vmatpush1.bf16.msra.mxu0 0
        %2034 = vmatprep.subr.bf16.mxu0 0
        %2035 = vmatpush1.bf16.msra.mxu0 0
        %2036 = vmatprep.subr.bf16.mxu0 0
        %2037 = vmatpush1.bf16.msra.mxu0 0
        %2038 = vmatprep.subr.bf16.mxu0 0
        %2039 = vmatpush1.bf16.msra.mxu0 0
        %2040 = vmatprep.subr.bf16.mxu0 0
        %2041 = vmatpush1.bf16.msra.mxu0 0
        %2042 = vmatprep.subr.bf16.mxu0 0
        %2043 = vmatpush1.bf16.msra.mxu0 %v2026
        %2044 = vmatprep.subr.bf16.mxu0 0
        %2045 = vmatpush2.bf16.msra.mxu0 0
        %2046 = vmatprep.subr.bf16.mxu0 0
        %2047 = vmatpush2.bf16.msra.mxu0 0
        %2048 = vmatprep.subr.bf16.mxu0 0
        %2049 = vmatpush2.bf16.msra.mxu0 0
        %2050 = vmatprep.subr.bf16.mxu0 0
        %2051 = vmatpush2.bf16.msra.mxu0 0
        %2052 = vmatprep.subr.bf16.mxu0 0
        %2053 = vmatpush2.bf16.msra.mxu0 0
        %2054 = vmatprep.subr.bf16.mxu0 0
        %2055 = vmatpush2.bf16.msra.mxu0 0
        %2056 = vmatprep.subr.bf16.mxu0 0
        %2057 = vmatpush2.bf16.msra.mxu0 0
        %2058 = vmatprep.subr.bf16.mxu0 0
        %2059 = vmatpush2.bf16.msra.mxu0 0
        %2060 = vmatprep.mubr.bf16.mxu0 0
        %2061 = vmatmul.mubr.bf16.gmra.mxu0 %v2023
        %v2062 = vpop.f32.mrf.mxu0
        %v2063 = vadd.f32 0.0, %v2062
        %v2064 = vpop.f32.mrf.mxu0
        %v2065 = vpop.f32.mrf.mxu0
        %v2066 = vpop.f32.mrf.mxu0
        %2067 = vdwg.mxu0
        %v2068 = vpack.c.bf16 %v2017, %v2017
        %v2069 = vpack.c.bf16 %v2063, %v2063
        %v2070 = vld [vmem:[%s16] sm:$0xf]
        %v2071 = vld [vmem:[%s16 + $0x4] sm:$0xf]
        %v2072 = vld [vmem:[%s16 + $0x8] sm:$0xf]
        %v2073 = vld [vmem:[%s16 + $0xc] sm:$0xf]
        %v2076 = vunpack.c.l.b16 %v2070
        %v2077 = vunpack.c.l.b16 %v2071
        %v2078 = vpack.c.b16 %v2077, %v2076
        %v2081 = vsel %vm1114, %v2068, 0
        %2083 = vmatprep.subr.bf16.mxu0 0
        %2084 = vmatpush1.bf16.msra.mxu0 0
        %2085 = vmatprep.subr.bf16.mxu0 0
        %2086 = vmatpush1.bf16.msra.mxu0 0
        %2087 = vmatprep.subr.bf16.mxu0 0
        %2088 = vmatpush1.bf16.msra.mxu0 0
        %2089 = vmatprep.subr.bf16.mxu0 0
        %2090 = vmatpush1.bf16.msra.mxu0 0
        %2091 = vmatprep.subr.bf16.mxu0 0
        %2092 = vmatpush1.bf16.msra.mxu0 0
        %2093 = vmatprep.subr.bf16.mxu0 0
        %2094 = vmatpush1.bf16.msra.mxu0 0
        %2095 = vmatprep.subr.bf16.mxu0 0
        %2096 = vmatpush1.bf16.msra.mxu0 0
        %2097 = vmatprep.subr.bf16.mxu0 0
        %2098 = vmatpush1.bf16.msra.mxu0 %v2078
        %2099 = vmatprep.subr.bf16.mxu0 0
        %2100 = vmatpush2.bf16.msra.mxu0 0
        %2101 = vmatprep.subr.bf16.mxu0 0
        %2102 = vmatpush2.bf16.msra.mxu0 0
        %2103 = vmatprep.subr.bf16.mxu0 0
        %2104 = vmatpush2.bf16.msra.mxu0 0
        %2105 = vmatprep.subr.bf16.mxu0 0
        %2106 = vmatpush2.bf16.msra.mxu0 0
        %2107 = vmatprep.subr.bf16.mxu0 0
        %2108 = vmatpush2.bf16.msra.mxu0 0
        %2109 = vmatprep.subr.bf16.mxu0 0
        %2110 = vmatpush2.bf16.msra.mxu0 0
        %2111 = vmatprep.subr.bf16.mxu0 0
        %2112 = vmatpush2.bf16.msra.mxu0 0
        %2113 = vmatprep.subr.bf16.mxu0 0
        %2114 = vmatpush2.bf16.msra.mxu0 0
        %2115 = vmatprep.mubr.bf16.mxu0 0
        %2116 = vmatmul.mubr.bf16.gmra.mxu0 %v2081
        %v2117 = vpop.f32.mrf.mxu0
        %v2118 = vadd.f32 0.0, %v2117
        %v2119 = vpop.f32.mrf.mxu0
        %v2120 = vpop.f32.mrf.mxu0
        %v2121 = vpop.f32.mrf.mxu0
        %2122 = vdwg.mxu0
        %v2125 = vunpack.c.l.b16 %v2072
        %v2126 = vunpack.c.l.b16 %v2073
        %v2127 = vpack.c.b16 %v2126, %v2125
        %v2130 = vsel %vm1114, %v2069, 0
        %2132 = vmatprep.subr.bf16.mxu0 0
        %2133 = vmatpush1.bf16.msra.mxu0 0
        %2134 = vmatprep.subr.bf16.mxu0 0
        %2135 = vmatpush1.bf16.msra.mxu0 0
        %2136 = vmatprep.subr.bf16.mxu0 0
        %2137 = vmatpush1.bf16.msra.mxu0 0
        %2138 = vmatprep.subr.bf16.mxu0 0
        %2139 = vmatpush1.bf16.msra.mxu0 0
        %2140 = vmatprep.subr.bf16.mxu0 0
        %2141 = vmatpush1.bf16.msra.mxu0 0
        %2142 = vmatprep.subr.bf16.mxu0 0
        %2143 = vmatpush1.bf16.msra.mxu0 0
        %2144 = vmatprep.subr.bf16.mxu0 0
        %2145 = vmatpush1.bf16.msra.mxu0 0
        %2146 = vmatprep.subr.bf16.mxu0 0
        %2147 = vmatpush1.bf16.msra.mxu0 %v2127
        %2148 = vmatprep.subr.bf16.mxu0 0
        %2149 = vmatpush2.bf16.msra.mxu0 0
        %2150 = vmatprep.subr.bf16.mxu0 0
        %2151 = vmatpush2.bf16.msra.mxu0 0
        %2152 = vmatprep.subr.bf16.mxu0 0
        %2153 = vmatpush2.bf16.msra.mxu0 0
        %2154 = vmatprep.subr.bf16.mxu0 0
        %2155 = vmatpush2.bf16.msra.mxu0 0
        %2156 = vmatprep.subr.bf16.mxu0 0
        %2157 = vmatpush2.bf16.msra.mxu0 0
        %2158 = vmatprep.subr.bf16.mxu0 0
        %2159 = vmatpush2.bf16.msra.mxu0 0
        %2160 = vmatprep.subr.bf16.mxu0 0
        %2161 = vmatpush2.bf16.msra.mxu0 0
        %2162 = vmatprep.subr.bf16.mxu0 0
        %2163 = vmatpush2.bf16.msra.mxu0 0
        %2164 = vmatprep.mubr.bf16.mxu0 0
        %2165 = vmatmul.mubr.bf16.gmra.mxu0 %v2130
        %v2166 = vpop.f32.mrf.mxu0
        %v2167 = vadd.f32 0.0, %v2166
        %v2168 = vpop.f32.mrf.mxu0
        %v2169 = vpop.f32.mrf.mxu0
        %v2170 = vpop.f32.mrf.mxu0
        %2171 = vdwg.mxu0
        %v2172 = vadd.f32 %v2118, %v2167
        %v2173 = vadd.f32 %v1468, %v2172
        %v2174 = vld [vmem:[%s20 + $0x3] sm:$0x1]
        %v2175 = vlaneseq
        %v2176 = vshrl.u32 %v2175, 7
        %v2177 = vsub.s32 0, %v2176
        %v2178 = vrot.slane %v2174, %v2177
        %v2179 = vadd.f32 %v2173, %v2178
        %v2180 = vld [vmem:[%s20 + $0x4] sm:$0x1]
        %v2181 = vld [vmem:[%s20 + $0x5] sm:$0x1]
        %v2182 = vsel %vm759, %v2179, 0.0
        %2183 = vadd.xlane.f32.xlu0 %v2182
        %v2184 = vpop.xlane.xlu0 %2183
        %v2185 = vmul.f32 %v2184, %v1448
        %v2186 = vsub.f32 %v2179, %v2185
        %v2187 = vmul.f32 %v2186, %v2186
        %v2188 = vsel %vm759, %v2187, 0.0
        %2189 = vadd.xlane.f32.xlu0 %v2188
        %v2190 = vpop.xlane.xlu0 %2189
        %v2191 = vmul.f32 %v2190, %v1448
        %v2192 = vadd.f32 %v2191, 1e-05
        %v2193 = vrsqrt.pop %v2192
        %v2194 = vmul.f32 %v2186, %v2193
        %v2195 = vlaneseq
        %v2196 = vshrl.u32 %v2195, 7
        %v2197 = vsub.s32 0, %v2196
        %v2198 = vrot.slane %v2180, %v2197
        %v2199 = vmul.f32 %v2194, %v2198
        %v2200 = vlaneseq
        %v2201 = vshrl.u32 %v2200, 7
        %v2202 = vsub.s32 0, %v2201
        %v2203 = vrot.slane %v2181, %v2202
        %v2204 = vadd.f32 %v2199, %v2203
        %v2205 = vpack.c.bf16 %v2204, %v2204
        %v2206 = vld [vmem:[%s17] sm:$0xf]
        %v2207 = vld [vmem:[%s17 + $0x4] sm:$0xf]
        %v2208 = vld [vmem:[%s17 + $0x8] sm:$0xf]
        %v2209 = vld [vmem:[%s17 + $0xc] sm:$0xf]
        %v2210 = vld [vmem:[%s18] sm:$0x1]
        %v2212 = vlaneseq
        %v2213 = vshrl.u32 %v2212, 7
        %v2214 = vsub.s32 0, %v2213
        %v2215 = vrot.slane %v2210, %v2214
        %v2221 = vunpack.c.l.b16 %v2206
        %v2222 = vunpack.c.l.b16 %v2207
        %v2223 = vunpack.c.l.b16 %v2208
        %v2224 = vunpack.c.l.b16 %v2209
        %v2225 = vpack.c.b16 %v2222, %v2221
        %v2226 = vpack.c.b16 %v2224, %v2223
        %v2230 = vsel %vm759, %v2205, 0
        %2232 = vmatprep.subr.bf16.mxu0 0
        %2233 = vmatpush1.bf16.msra.mxu0 0
        %2234 = vmatprep.subr.bf16.mxu0 0
        %2235 = vmatpush1.bf16.msra.mxu0 0
        %2236 = vmatprep.subr.bf16.mxu0 0
        %2237 = vmatpush1.bf16.msra.mxu0 0
        %2238 = vmatprep.subr.bf16.mxu0 0
        %2239 = vmatpush1.bf16.msra.mxu0 0
        %2240 = vmatprep.subr.bf16.mxu0 0
        %2241 = vmatpush1.bf16.msra.mxu0 0
        %2242 = vmatprep.subr.bf16.mxu0 0
        %2243 = vmatpush1.bf16.msra.mxu0 0
        %2244 = vmatprep.subr.bf16.mxu0 0
        %2245 = vmatpush1.bf16.msra.mxu0 %v2226
        %2246 = vmatprep.subr.bf16.mxu0 0
        %2247 = vmatpush1.bf16.msra.mxu0 %v2225
        %2248 = vmatprep.subr.bf16.mxu0 0
        %2249 = vmatpush2.bf16.msra.mxu0 0
        %2250 = vmatprep.subr.bf16.mxu0 0
        %2251 = vmatpush2.bf16.msra.mxu0 0
        %2252 = vmatprep.subr.bf16.mxu0 0
        %2253 = vmatpush2.bf16.msra.mxu0 0
        %2254 = vmatprep.subr.bf16.mxu0 0
        %2255 = vmatpush2.bf16.msra.mxu0 0
        %2256 = vmatprep.subr.bf16.mxu0 0
        %2257 = vmatpush2.bf16.msra.mxu0 0
        %2258 = vmatprep.subr.bf16.mxu0 0
        %2259 = vmatpush2.bf16.msra.mxu0 0
        %2260 = vmatprep.subr.bf16.mxu0 0
        %2261 = vmatpush2.bf16.msra.mxu0 0
        %2262 = vmatprep.subr.bf16.mxu0 0
        %2263 = vmatpush2.bf16.msra.mxu0 0
        %2264 = vmatprep.mubr.bf16.mxu0 0
        %2265 = vmatmul.mubr.bf16.gmra.mxu0 %v2230
        %v2266 = vpop.f32.mrf.mxu0
        %v2267 = vadd.f32 %v2215, %v2266
        %v2268 = vpop.f32.mrf.mxu0
        %v2269 = vpop.f32.mrf.mxu0
        %v2270 = vpop.f32.mrf.mxu0
        %2271 = vdwg.mxu0
        %v2272 = vmax.f32 %v2267, 0.0
        %v2273 = vpack.c.bf16 %v2272, %v2272
        %v2274 = vld [vmem:[%s19] sm:$0xf]
        %v2275 = vld [vmem:[%s19 + $0x4] sm:$0xf]
        %v2276 = vld [vmem:[%s19 + $0x8] sm:$0xf]
        %v2277 = vld [vmem:[%s19 + $0xc] sm:$0xf]
        %v2278 = vld [vmem:[%s19 + $0x10] sm:$0xf]
        %v2279 = vld [vmem:[%s19 + $0x14] sm:$0xf]
        %v2280 = vld [vmem:[%s19 + $0x18] sm:$0xf]
        %v2281 = vld [vmem:[%s19 + $0x1c] sm:$0xf]
        %v2282 = vld [vmem:[%s19 + $0x20] sm:$0xf]
        %v2283 = vld [vmem:[%s19 + $0x24] sm:$0xf]
        %v2284 = vld [vmem:[%s19 + $0x28] sm:$0xf]
        %v2285 = vld [vmem:[%s19 + $0x2c] sm:$0xf]
        %v2286 = vld [vmem:[%s19 + $0x30] sm:$0xf]
        %v2287 = vld [vmem:[%s19 + $0x34] sm:$0xf]
        %v2288 = vld [vmem:[%s19 + $0x38] sm:$0xf]
        %v2289 = vld [vmem:[%s19 + $0x3c] sm:$0xf]
        %v2290 = vld [vmem:[%s20 + $0x6] sm:$0x1]
        %v2291 = vlaneseq
        %v2292 = vshrl.u32 %v2291, 7
        %v2293 = vsub.s32 0, %v2292
        %v2294 = vrot.slane %v2290, %v2293
        %v2311 = vunpack.c.l.b16 %v2274
        %v2312 = vunpack.c.l.b16 %v2275
        %v2313 = vunpack.c.l.b16 %v2276
        %v2314 = vunpack.c.l.b16 %v2277
        %v2315 = vunpack.c.l.b16 %v2278
        %v2316 = vunpack.c.l.b16 %v2279
        %v2317 = vunpack.c.l.b16 %v2280
        %v2318 = vunpack.c.l.b16 %v2281
        %v2319 = vunpack.c.l.b16 %v2282
        %v2320 = vunpack.c.l.b16 %v2283
        %v2321 = vunpack.c.l.b16 %v2284
        %v2322 = vunpack.c.l.b16 %v2285
        %v2323 = vunpack.c.l.b16 %v2286
        %v2324 = vunpack.c.l.b16 %v2287
        %v2325 = vunpack.c.l.b16 %v2288
        %v2326 = vunpack.c.l.b16 %v2289
        %v2327 = vpack.c.b16 %v2312, %v2311
        %v2328 = vpack.c.b16 %v2314, %v2313
        %v2329 = vpack.c.b16 %v2316, %v2315
        %v2330 = vpack.c.b16 %v2318, %v2317
        %v2331 = vpack.c.b16 %v2320, %v2319
        %v2332 = vpack.c.b16 %v2322, %v2321
        %v2333 = vpack.c.b16 %v2324, %v2323
        %v2334 = vpack.c.b16 %v2326, %v2325
        %2343 = vmatprep.subr.bf16.mxu0 0
        %2344 = vmatpush1.bf16.msra.mxu0 %v2334
        %2345 = vmatprep.subr.bf16.mxu0 0
        %2346 = vmatpush1.bf16.msra.mxu0 %v2333
        %2347 = vmatprep.subr.bf16.mxu0 0
        %2348 = vmatpush1.bf16.msra.mxu0 %v2332
        %2349 = vmatprep.subr.bf16.mxu0 0
        %2350 = vmatpush1.bf16.msra.mxu0 %v2331
        %2351 = vmatprep.subr.bf16.mxu0 0
        %2352 = vmatpush1.bf16.msra.mxu0 %v2330
        %2353 = vmatprep.subr.bf16.mxu0 0
        %2354 = vmatpush1.bf16.msra.mxu0 %v2329
        %2355 = vmatprep.subr.bf16.mxu0 0
        %2356 = vmatpush1.bf16.msra.mxu0 %v2328
        %2357 = vmatprep.subr.bf16.mxu0 0
        %2358 = vmatpush1.bf16.msra.mxu0 %v2327
        %2359 = vmatprep.subr.bf16.mxu0 0
        %2360 = vmatpush2.bf16.msra.mxu0 0
        %2361 = vmatprep.subr.bf16.mxu0 0
        %2362 = vmatpush2.bf16.msra.mxu0 0
        %2363 = vmatprep.subr.bf16.mxu0 0
        %2364 = vmatpush2.bf16.msra.mxu0 0
        %2365 = vmatprep.subr.bf16.mxu0 0
        %2366 = vmatpush2.bf16.msra.mxu0 0
        %2367 = vmatprep.subr.bf16.mxu0 0
        %2368 = vmatpush2.bf16.msra.mxu0 0
        %2369 = vmatprep.subr.bf16.mxu0 0
        %2370 = vmatpush2.bf16.msra.mxu0 0
        %2371 = vmatprep.subr.bf16.mxu0 0
        %2372 = vmatpush2.bf16.msra.mxu0 0
        %2373 = vmatprep.subr.bf16.mxu0 0
        %2374 = vmatpush2.bf16.msra.mxu0 0
        %2375 = vmatprep.mubr.bf16.mxu0 0
        %2376 = vmatmul.mubr.bf16.gmra.mxu0 %v2273
        %v2377 = vpop.f32.mrf.mxu0
        %v2378 = vadd.f32 %v2294, %v2377
        %v2379 = vpop.f32.mrf.mxu0
        %v2380 = vpop.f32.mrf.mxu0
        %v2381 = vpop.f32.mrf.mxu0
        %2382 = vdwg.mxu0
        %v2383 = vadd.f32 %v2204, %v2378
        %v2384 = vld [vmem:[%s20 + $0x7] sm:$0x1]
        %v2385 = vld [vmem:[%s20 + $0x8] sm:$0x1]
        %v2386 = vsel %vm759, %v2383, 0.0
        %2387 = vadd.xlane.f32.xlu0 %v2386
        %v2388 = vpop.xlane.xlu0 %2387
        %v2389 = vmul.f32 %v2388, %v1448
        %v2390 = vsub.f32 %v2383, %v2389
        %v2391 = vmul.f32 %v2390, %v2390
        %v2392 = vsel %vm759, %v2391, 0.0
        %2393 = vadd.xlane.f32.xlu0 %v2392
        %v2394 = vpop.xlane.xlu0 %2393
        %v2395 = vmul.f32 %v2394, %v1448
        %v2396 = vadd.f32 %v2395, 1e-05
        %v2397 = vrsqrt.pop %v2396
        %v2398 = vmul.f32 %v2390, %v2397
        %v2399 = vlaneseq
        %v2400 = vshrl.u32 %v2399, 7
        %v2401 = vsub.s32 0, %v2400
        %v2402 = vrot.slane %v2384, %v2401
        %v2403 = vmul.f32 %v2398, %v2402
        %v2404 = vlaneseq
        %v2405 = vshrl.u32 %v2404, 7
        %v2406 = vsub.s32 0, %v2405
        %v2407 = vrot.slane %v2385, %v2406
        %v2408 = vadd.f32 %v2403, %v2407
        %2409 = vst.msk [vmem:[%s695] sm:$0xff] %vm759, %v2408
        %s2410 = sand.u32 %s515, 1
        %s2411 = scalar_lea.sflag [#allocation3], %s2410
        %s2412 = sand.u32 %s515, 1
        %s2413 = smul.addr %s2412, 8
        %s2414 = scalar_lea.vmem [#allocation2], %s2413
        // Predicated region
        $region105: #{tpu_custom_call.1} parent=103 // pred_check
          %p2415 = pneg %p525
        $region106: #{tpu_custom_call.1} parent=103 // pred_check_branch
          %2417 = sbr.rel (%p2415) target = $region108
        $region107: #{tpu_custom_call.1} parent=103 // pred_region
          %s2419 = ssub.s32 128, 128
          %2420 = vsyncadd %s2411, %s2419
          %s2421 = sadd.s32 %s40, %s39
          %s2422 = smul.addr %s2421, 128
          %s2423 = scalar_lea.hbm %s21, %s2422
          %s2425 = sshll.u32 %s2414, 4
          %s2426 = int_to_ptr.vmem [resolvable:$true] %s2425
          %2428 = dma.vmem_to_hbm [thread:$0]  %s2426, 128, %s2423, %s2411
        $region108: #{tpu_custom_call.1} parent=103 // pred_fallthru
          _
      $region104: #{tpu_custom_call.1} parent=5 // pred_fallthru
        _
      %p2429 = scmp.le.s32.totalorder 2, %s30
      // Predicated region
      $region109: #{tpu_custom_call.1} parent=5 // pred_check
        %p2430 = pneg %p2429
      $region110: #{tpu_custom_call.1} parent=5 // pred_check_branch
        %2432 = sbr.rel (%p2430) target = $region112
      $region111: #{tpu_custom_call.1} parent=5 // pred_region
        %s2433 = ssub.s32 %s30, 2
        // Predicated region
        $region113: #{tpu_custom_call.1} parent=111 // pred_check
          %p2434 = pneg %p531
        $region114: #{tpu_custom_call.1} parent=111 // pred_check_branch
          %2436 = sbr.rel (%p2434) target = $region116
        $region115: #{tpu_custom_call.1} parent=111 // pred_region
          %s2437 = sand.u32 %s516, 1
          %s2438 = scalar_lea.sflag [#allocation3], %s2437
          %s2439 = sand.u32 %s516, 1
          %s2440 = smul.addr %s2439, 8
          %s2441 = scalar_lea.vmem [#allocation2], %s2440
          %2442 = dma.done %s2438, 128
        $region116: #{tpu_custom_call.1} parent=111 // pred_fallthru
          _
      $region112: #{tpu_custom_call.1} parent=5 // pred_fallthru
        _
    $region6: #{tpu_custom_call.1} parent=1 // loop_footer
      %s34 = sadd.s32 1, %s30
    $region7: #{tpu_custom_call.1} parent=1 // loop_footer_branch
      %29 = sbr.rel target = $region3
    $region8: #{tpu_custom_call.1} parent=1 // loop_exit
      _
    %2443 = vsyncpa [#allocation3], 1
    %s2444 = scalar_lea.sflag [#allocation3], 1
    %2445 = vsyncpa %s2444, 1

// kernel: tpu_custom_call.1
$region0: #{tpu_custom_call.1}
  #allocation0 [shape = 'u32[]', space=smem, size = 0x4, offset = 0x4, fixed_abs, tag = 'smem constant byte address 0x4 - core index']
  #allocation1 [shape = 'u32[144,128]{1,0:T(1,128)}', space=vmem, size = 0x12000, scoped, tag = 'internal scratch']
  %s0 = inlined_call_operand.vmem [shape: f32[2,8,32], index: 0, kind: input, shape index: {}]
  %s1 = inlined_call_operand.vmem [shape: f32[2,8,32], index: 1, kind: input, shape index: {}]
  %s2 = inlined_call_operand.vmem [shape: bf16[2,8,32], index: 2, kind: input, shape index: {}]
  %s3 = inlined_call_operand.vmem [shape: bf16[2,32,16], index: 3, kind: input, shape index: {}]
  %s4 = inlined_call_operand.vmem [shape: f32[2,1,16], index: 4, kind: input, shape index: {}]
  %s5 = inlined_call_operand.vmem [shape: bf16[2,32,16], index: 5, kind: input, shape index: {}]
  %s6 = inlined_call_operand.vmem [shape: f32[2,1,16], index: 6, kind: input, shape index: {}]
  %s7 = inlined_call_operand.vmem [shape: bf16[2,32,16], index: 7, kind: input, shape index: {}]
  %s8 = inlined_call_operand.vmem [shape: f32[2,1,16], index: 8, kind: input, shape index: {}]
  %s9 = inlined_call_operand.vmem [shape: bf16[2,16,32], index: 9, kind: input, shape index: {}]
  %s10 = inlined_call_operand.vmem [shape: bf16[2,32,16], index: 10, kind: input, shape index: {}]
  %s11 = inlined_call_operand.vmem [shape: f32[2,1,16], index: 11, kind: input, shape index: {}]
  %s12 = inlined_call_operand.vmem [shape: bf16[2,32,16], index: 12, kind: input, shape index: {}]
  %s13 = inlined_call_operand.vmem [shape: f32[2,1,16], index: 13, kind: input, shape index: {}]
  %s14 = inlined_call_operand.vmem [shape: bf16[2,32,16], index: 14, kind: input, shape index: {}]
  %s15 = inlined_call_operand.vmem [shape: f32[2,1,16], index: 15, kind: input, shape index: {}]
  %s16 = inlined_call_operand.vmem [shape: bf16[2,16,32], index: 16, kind: input, shape index: {}]
  %s17 = inlined_call_operand.vmem [shape: bf16[32,128], index: 17, kind: input, shape index: {}]
  %s18 = inlined_call_operand.vmem [shape: f32[1,128], index: 18, kind: input, shape index: {}]
  %s19 = inlined_call_operand.vmem [shape: bf16[128,32], index: 19, kind: input, shape index: {}]
  %s20 = inlined_call_operand.vmem [shape: f32[9,32], index: 20, kind: input, shape index: {}]
  %s21 = inlined_call_operand.hbm [shape: f32[2,8,32], index: 21, kind: output, shape index: {}]
  %s22 = sld [smem:[#allocation0]]
  $region117: #{tpu_custom_call.1} parent=0
    _
  %s24 = ssub.s32 1, %s22
  %s25 = scalar_select 0, %s24, %s22
  $region1: #{tpu_custom_call.1} parent=0
    #allocation2 [shape = 'u8[8192]{0}', space=vmem, size = 0x2000, scoped, tag = 'output window, operand 0']
    #allocation3 [shape = 's32[2]{0}', space=sflag, size = 0x8, scoped, tag = 'scoped memory for tpu_custom_call.1']
    %26 = vsyncpa [#allocation3], 0
    %s27 = scalar_lea.sflag [#allocation3], 1
    %28 = vsyncpa %s27, 0
    loop: start=0, step=1, limit=4
    $region2: #{tpu_custom_call.1} parent=1 // loop_pre_header
      _
    $region3: #{tpu_custom_call.1} parent=1 // loop_header
      %s30 = sphi 0, %s34
      %p31 = scmp.ge.s32.totalorder %s30, 4
      %s37 = sphi 0, %s49
      %s38 = sphi 0, %s45
      %s39 = sphi 0, %s37
      %s40 = sphi 0, %s38
      %s41 = sphi 0, %s39
      %s42 = sphi 0, %s40
      %s54 = sphi 0, %s56
      %s57 = sphi 0, %s54
      %s58 = sphi 0, %s57
      %s74 = sphi 0, %s58
      %s80 = sphi 0, %s82
      %s83 = sphi 0, %s80
      %s84 = sphi 0, %s83
      %s100 = sphi 0, %s84
      %s106 = sphi 0, %s108
      %s109 = sphi 0, %s106
      %s110 = sphi 0, %s109
      %s126 = sphi 0, %s110
      %s130 = sphi 0, %s130
      %s132 = sphi 0, %s130
      %s133 = sphi 0, %s132
      %s147 = sphi 0, %s133
      %s151 = sphi 0, %s151
      %s153 = sphi 0, %s151
      %s154 = sphi 0, %s153
      %s168 = sphi 0, %s154
      %s172 = sphi 0, %s172
      %s174 = sphi 0, %s172
      %s175 = sphi 0, %s174
      %s189 = sphi 0, %s175
      %s193 = sphi 0, %s193
      %s195 = sphi 0, %s193
      %s196 = sphi 0, %s195
      %s210 = sphi 0, %s196
      %s214 = sphi 0, %s214
      %s216 = sphi 0, %s214
      %s217 = sphi 0, %s216
      %s231 = sphi 0, %s217
      %s235 = sphi 0, %s235
      %s237 = sphi 0, %s235
      %s238 = sphi 0, %s237
      %s252 = sphi 0, %s238
      %s256 = sphi 0, %s256
      %s258 = sphi 0, %s256
      %s259 = sphi 0, %s258
      %s273 = sphi 0, %s259
      %s277 = sphi 0, %s277
      %s279 = sphi 0, %s277
      %s280 = sphi 0, %s279
      %s294 = sphi 0, %s280
      %s298 = sphi 0, %s298
      %s300 = sphi 0, %s298
      %s301 = sphi 0, %s300
      %s315 = sphi 0, %s301
      %s319 = sphi 0, %s319
      %s321 = sphi 0, %s319
      %s322 = sphi 0, %s321
      %s336 = sphi 0, %s322
      %s340 = sphi 0, %s340
      %s342 = sphi 0, %s340
      %s343 = sphi 0, %s342
      %s357 = sphi 0, %s343
      %s361 = sphi 0, %s361
      %s363 = sphi 0, %s361
      %s364 = sphi 0, %s363
      %s378 = sphi 0, %s364
      %s382 = sphi 0, %s382
      %s384 = sphi 0, %s382
      %s385 = sphi 0, %s384
      %s399 = sphi 0, %s385
      %s403 = sphi 0, %s403
      %s405 = sphi 0, %s403
      %s406 = sphi 0, %s405
      %s420 = sphi 0, %s406
      %s424 = sphi 0, %s424
      %s426 = sphi 0, %s424
      %s427 = sphi 0, %s426
      %s441 = sphi 0, %s427
      %s445 = sphi 0, %s445
      %s447 = sphi 0, %s445
      %s448 = sphi 0, %s447
      %s462 = sphi 0, %s448
      %s466 = sphi 0, %s466
      %s468 = sphi 0, %s466
      %s469 = sphi 0, %s468
      %s483 = sphi 0, %s469
      %s487 = sphi 0, %s487
      %s489 = sphi 0, %s487
      %s490 = sphi 0, %s489
      %s504 = sphi 0, %s490
      %s512 = sphi 0, %s514
      %s515 = sphi 0, %s512
      %s516 = sphi 0, %s515
      %s532 = sphi 0, %s516
    $region4: #{tpu_custom_call.1} parent=1 // loop_header_branch
      %33 = sbr.rel (%p31) target = $region8
    $region5: #{tpu_custom_call.1} parent=1 // loop_body
      %s35 = ssub.s32 %s30, 1
      %s36 = ssub.s32 %s30, 2
      %s43 = sadd.s32 1, %s38
      %p44 = scmp.ge.s32.totalorder %s43, 1
      %s45 = scalar_select %p44, 0, %s43
      %s46 = sadd.s32 1, %s37
      %s47 = scalar_select %p44, %s46, %s37
      %p48 = scmp.ge.s32.totalorder %s47, 2
      %s49 = scalar_select %p48, 0, %s47
      %s50 = ssub.s32 %s37, %s49
      %s51 = ssub.s32 %s38, %s45
      %s52 = sor.u32 %s50, %s51
      %p53 = scmp.eq.s32.totalorder %s52, 0
      %s55 = sadd.s32 %s54, 1
      %s56 = scalar_select %p53, %s54, %s55
      %p59 = pneg %p53
      %p60 = scmp.eq.s32.totalorder %s30, 1
      %p61 = por %p59, %p60
      %p62 = scmp.ne.s32.totalorder %s54, %s57
      %p63 = scmp.eq.s32.totalorder %s30, 0
      %p64 = por %p62, %p63
      %p65 = scmp.ne.s32.totalorder %s54, %s57
      %p66 = scmp.eq.s32.totalorder %s35, 1
      %p67 = por %p65, %p66
      %p68 = scmp.ne.s32.totalorder %s57, %s58
      %p69 = scmp.eq.s32.totalorder %s35, 0
      %p70 = por %p68, %p69
      %p71 = scmp.ne.s32.totalorder %s57, %s58
      %p72 = scmp.eq.s32.totalorder %s36, 1
      %p73 = por %p71, %p72
      %p75 = scmp.ne.s32.totalorder %s58, %s74
      %p76 = scmp.eq.s32.totalorder %s36, 0
      %p77 = por %p75, %p76
      %s78 = ssub.s32 %s37, %s49
      %p79 = scmp.eq.s32.totalorder %s78, 0
      %s81 = sadd.s32 %s80, 1
      %s82 = scalar_select %p79, %s80, %s81
      %p85 = pneg %p79
      %p86 = scmp.eq.s32.totalorder %s30, 1
      %p87 = por %p85, %p86
      %p88 = scmp.ne.s32.totalorder %s80, %s83
      %p89 = scmp.eq.s32.totalorder %s30, 0
      %p90 = por %p88, %p89
      %p91 = scmp.ne.s32.totalorder %s80, %s83
      %p92 = scmp.eq.s32.totalorder %s35, 1
      %p93 = por %p91, %p92
      %p94 = scmp.ne.s32.totalorder %s83, %s84
      %p95 = scmp.eq.s32.totalorder %s35, 0
      %p96 = por %p94, %p95
      %p97 = scmp.ne.s32.totalorder %s83, %s84
      %p98 = scmp.eq.s32.totalorder %s36, 1
      %p99 = por %p97, %p98
      %p101 = scmp.ne.s32.totalorder %s84, %s100
      %p102 = scmp.eq.s32.totalorder %s36, 0
      %p103 = por %p101, %p102
      %s104 = ssub.s32 %s37, %s49
      %p105 = scmp.eq.s32.totalorder %s104, 0
      %s107 = sadd.s32 %s106, 1
      %s108 = scalar_select %p105, %s106, %s107
      %p111 = pneg %p105
      %p112 = scmp.eq.s32.totalorder %s30, 1
      %p113 = por %p111, %p112
      %p114 = scmp.ne.s32.totalorder %s106, %s109
      %p115 = scmp.eq.s32.totalorder %s30, 0
      %p116 = por %p114, %p115
      %p117 = scmp.ne.s32.totalorder %s106, %s109
      %p118 = scmp.eq.s32.totalorder %s35, 1
      %p119 = por %p117, %p118
      %p120 = scmp.ne.s32.totalorder %s109, %s110
      %p121 = scmp.eq.s32.totalorder %s35, 0
      %p122 = por %p120, %p121
      %p123 = scmp.ne.s32.totalorder %s109, %s110
      %p124 = scmp.eq.s32.totalorder %s36, 1
      %p125 = por %p123, %p124
      %p127 = scmp.ne.s32.totalorder %s110, %s126
      %p128 = scmp.eq.s32.totalorder %s36, 0
      %p129 = por %p127, %p128
      %s131 = sadd.s32 %s130, 1
      %p134 = scmp.eq.s32.totalorder %s30, 1
      %p135 = scmp.ne.s32.totalorder %s130, %s132
      %p136 = scmp.eq.s32.totalorder %s30, 0
      %p137 = por %p135, %p136
      %p138 = scmp.ne.s32.totalorder %s130, %s132
      %p139 = scmp.eq.s32.totalorder %s35, 1
      %p140 = por %p138, %p139
      %p141 = scmp.ne.s32.totalorder %s132, %s133
      %p142 = scmp.eq.s32.totalorder %s35, 0
      %p143 = por %p141, %p142
      %p144 = scmp.ne.s32.totalorder %s132, %s133
      %p145 = scmp.eq.s32.totalorder %s36, 1
      %p146 = por %p144, %p145
      %p148 = scmp.ne.s32.totalorder %s133, %s147
      %p149 = scmp.eq.s32.totalorder %s36, 0
      %p150 = por %p148, %p149
      %s152 = sadd.s32 %s151, 1
      %p155 = scmp.eq.s32.totalorder %s30, 1
      %p156 = scmp.ne.s32.totalorder %s151, %s153
      %p157 = scmp.eq.s32.totalorder %s30, 0
      %p158 = por %p156, %p157
      %p159 = scmp.ne.s32.totalorder %s151, %s153
      %p160 = scmp.eq.s32.totalorder %s35, 1
      %p161 = por %p159, %p160
      %p162 = scmp.ne.s32.totalorder %s153, %s154
      %p163 = scmp.eq.s32.totalorder %s35, 0
      %p164 = por %p162, %p163
      %p165 = scmp.ne.s32.totalorder %s153, %s154
      %p166 = scmp.eq.s32.totalorder %s36, 1
      %p167 = por %p165, %p166
      %p169 = scmp.ne.s32.totalorder %s154, %s168
      %p170 = scmp.eq.s32.totalorder %s36, 0
      %p171 = por %p169, %p170
      %s173 = sadd.s32 %s172, 1
      %p176 = scmp.eq.s32.totalorder %s30, 1
      %p177 = scmp.ne.s32.totalorder %s172, %s174
      %p178 = scmp.eq.s32.totalorder %s30, 0
      %p179 = por %p177, %p178
      %p180 = scmp.ne.s32.totalorder %s172, %s174
      %p181 = scmp.eq.s32.totalorder %s35, 1
      %p182 = por %p180, %p181
      %p183 = scmp.ne.s32.totalorder %s174, %s175
      %p184 = scmp.eq.s32.totalorder %s35, 0
      %p185 = por %p183, %p184
      %p186 = scmp.ne.s32.totalorder %s174, %s175
      %p187 = scmp.eq.s32.totalorder %s36, 1
      %p188 = por %p186, %p187
      %p190 = scmp.ne.s32.totalorder %s175, %s189
      %p191 = scmp.eq.s32.totalorder %s36, 0
      %p192 = por %p190, %p191
      %s194 = sadd.s32 %s193, 1
      %p197 = scmp.eq.s32.totalorder %s30, 1
      %p198 = scmp.ne.s32.totalorder %s193, %s195
      %p199 = scmp.eq.s32.totalorder %s30, 0
      %p200 = por %p198, %p199
      %p201 = scmp.ne.s32.totalorder %s193, %s195
      %p202 = scmp.eq.s32.totalorder %s35, 1
      %p203 = por %p201, %p202
      %p204 = scmp.ne.s32.totalorder %s195, %s196
      %p205 = scmp.eq.s32.totalorder %s35, 0
      %p206 = por %p204, %p205
      %p207 = scmp.ne.s32.totalorder %s195, %s196
      %p208 = scmp.eq.s32.totalorder %s36, 1
      %p209 = por %p207, %p208
      %p211 = scmp.ne.s32.totalorder %s196, %s210
      %p212 = scmp.eq.s32.totalorder %s36, 0
      %p213 = por %p211, %p212
      %s215 = sadd.s32 %s214, 1
      %p218 = scmp.eq.s32.totalorder %s30, 1
      %p219 = scmp.ne.s32.totalorder %s214, %s216
      %p220 = scmp.eq.s32.totalorder %s30, 0
      %p221 = por %p219, %p220
      %p222 = scmp.ne.s32.totalorder %s214, %s216
      %p223 = scmp.eq.s32.totalorder %s35, 1
      %p224 = por %p222, %p223
      %p225 = scmp.ne.s32.totalorder %s216, %s217
      %p226 = scmp.eq.s32.totalorder %s35, 0
      %p227 = por %p225, %p226
      %p228 = scmp.ne.s32.totalorder %s216, %s217
      %p229 = scmp.eq.s32.totalorder %s36, 1
      %p230 = por %p228, %p229
      %p232 = scmp.ne.s32.totalorder %s217, %s231
      %p233 = scmp.eq.s32.totalorder %s36, 0
      %p234 = por %p232, %p233
      %s236 = sadd.s32 %s235, 1
      %p239 = scmp.eq.s32.totalorder %s30, 1
      %p240 = scmp.ne.s32.totalorder %s235, %s237
      %p241 = scmp.eq.s32.totalorder %s30, 0
      %p242 = por %p240, %p241
      %p243 = scmp.ne.s32.totalorder %s235, %s237
      %p244 = scmp.eq.s32.totalorder %s35, 1
      %p245 = por %p243, %p244
      %p246 = scmp.ne.s32.totalorder %s237, %s238
      %p247 = scmp.eq.s32.totalorder %s35, 0
      %p248 = por %p246, %p247
      %p249 = scmp.ne.s32.totalorder %s237, %s238
      %p250 = scmp.eq.s32.totalorder %s36, 1
      %p251 = por %p249, %p250
      %p253 = scmp.ne.s32.totalorder %s238, %s252
      %p254 = scmp.eq.s32.totalorder %s36, 0
      %p255 = por %p253, %p254
      %s257 = sadd.s32 %s256, 1
      %p260 = scmp.eq.s32.totalorder %s30, 1
      %p261 = scmp.ne.s32.totalorder %s256, %s258
      %p262 = scmp.eq.s32.totalorder %s30, 0
      %p263 = por %p261, %p262
      %p264 = scmp.ne.s32.totalorder %s256, %s258
      %p265 = scmp.eq.s32.totalorder %s35, 1
      %p266 = por %p264, %p265
      %p267 = scmp.ne.s32.totalorder %s258, %s259
      %p268 = scmp.eq.s32.totalorder %s35, 0
      %p269 = por %p267, %p268
      %p270 = scmp.ne.s32.totalorder %s258, %s259
      %p271 = scmp.eq.s32.totalorder %s36, 1
      %p272 = por %p270, %p271
      %p274 = scmp.ne.s32.totalorder %s259, %s273
      %p275 = scmp.eq.s32.totalorder %s36, 0
      %p276 = por %p274, %p275
      %s278 = sadd.s32 %s277, 1
      %p281 = scmp.eq.s32.totalorder %s30, 1
      %p282 = scmp.ne.s32.totalorder %s277, %s279
      %p283 = scmp.eq.s32.totalorder %s30, 0
      %p284 = por %p282, %p283
      %p285 = scmp.ne.s32.totalorder %s277, %s279
      %p286 = scmp.eq.s32.totalorder %s35, 1
      %p287 = por %p285, %p286
      %p288 = scmp.ne.s32.totalorder %s279, %s280
      %p289 = scmp.eq.s32.totalorder %s35, 0
      %p290 = por %p288, %p289
      %p291 = scmp.ne.s32.totalorder %s279, %s280
      %p292 = scmp.eq.s32.totalorder %s36, 1
      %p293 = por %p291, %p292
      %p295 = scmp.ne.s32.totalorder %s280, %s294
      %p296 = scmp.eq.s32.totalorder %s36, 0
      %p297 = por %p295, %p296
      %s299 = sadd.s32 %s298, 1
      %p302 = scmp.eq.s32.totalorder %s30, 1
      %p303 = scmp.ne.s32.totalorder %s298, %s300
      %p304 = scmp.eq.s32.totalorder %s30, 0
      %p305 = por %p303, %p304
      %p306 = scmp.ne.s32.totalorder %s298, %s300
      %p307 = scmp.eq.s32.totalorder %s35, 1
      %p308 = por %p306, %p307
      %p309 = scmp.ne.s32.totalorder %s300, %s301
      %p310 = scmp.eq.s32.totalorder %s35, 0
      %p311 = por %p309, %p310
      %p312 = scmp.ne.s32.totalorder %s300, %s301
      %p313 = scmp.eq.s32.totalorder %s36, 1
      %p314 = por %p312, %p313
      %p316 = scmp.ne.s32.totalorder %s301, %s315
      %p317 = scmp.eq.s32.totalorder %s36, 0
      %p318 = por %p316, %p317
      %s320 = sadd.s32 %s319, 1
      %p323 = scmp.eq.s32.totalorder %s30, 1
      %p324 = scmp.ne.s32.totalorder %s319, %s321
      %p325 = scmp.eq.s32.totalorder %s30, 0
      %p326 = por %p324, %p325
      %p327 = scmp.ne.s32.totalorder %s319, %s321
      %p328 = scmp.eq.s32.totalorder %s35, 1
      %p329 = por %p327, %p328
      %p330 = scmp.ne.s32.totalorder %s321, %s322
      %p331 = scmp.eq.s32.totalorder %s35, 0
      %p332 = por %p330, %p331
      %p333 = scmp.ne.s32.totalorder %s321, %s322
      %p334 = scmp.eq.s32.totalorder %s36, 1
      %p335 = por %p333, %p334
      %p337 = scmp.ne.s32.totalorder %s322, %s336
      %p338 = scmp.eq.s32.totalorder %s36, 0
      %p339 = por %p337, %p338
      %s341 = sadd.s32 %s340, 1
      %p344 = scmp.eq.s32.totalorder %s30, 1
      %p345 = scmp.ne.s32.totalorder %s340, %s342
      %p346 = scmp.eq.s32.totalorder %s30, 0
      %p347 = por %p345, %p346
      %p348 = scmp.ne.s32.totalorder %s340, %s342
      %p349 = scmp.eq.s32.totalorder %s35, 1
      %p350 = por %p348, %p349
      %p351 = scmp.ne.s32.totalorder %s342, %s343
      %p352 = scmp.eq.s32.totalorder %s35, 0
      %p353 = por %p351, %p352
      %p354 = scmp.ne.s32.totalorder %s342, %s343
      %p355 = scmp.eq.s32.totalorder %s36, 1
      %p356 = por %p354, %p355
      %p358 = scmp.ne.s32.totalorder %s343, %s357
      %p359 = scmp.eq.s32.totalorder %s36, 0
      %p360 = por %p358, %p359
      %s362 = sadd.s32 %s361, 1
      %p365 = scmp.eq.s32.totalorder %s30, 1
      %p366 = scmp.ne.s32.totalorder %s361, %s363
      %p367 = scmp.eq.s32.totalorder %s30, 0
      %p368 = por %p366, %p367
      %p369 = scmp.ne.s32.totalorder %s361, %s363
      %p370 = scmp.eq.s32.totalorder %s35, 1
      %p371 = por %p369, %p370
      %p372 = scmp.ne.s32.totalorder %s363, %s364
      %p373 = scmp.eq.s32.totalorder %s35, 0
      %p374 = por %p372, %p373
      %p375 = scmp.ne.s32.totalorder %s363, %s364
      %p376 = scmp.eq.s32.totalorder %s36, 1
      %p377 = por %p375, %p376
      %p379 = scmp.ne.s32.totalorder %s364, %s378
      %p380 = scmp.eq.s32.totalorder %s36, 0
      %p381 = por %p379, %p380
      %s383 = sadd.s32 %s382, 1
      %p386 = scmp.eq.s32.totalorder %s30, 1
      %p387 = scmp.ne.s32.totalorder %s382, %s384
      %p388 = scmp.eq.s32.totalorder %s30, 0
      %p389 = por %p387, %p388
      %p390 = scmp.ne.s32.totalorder %s382, %s384
      %p391 = scmp.eq.s32.totalorder %s35, 1
      %p392 = por %p390, %p391
      %p393 = scmp.ne.s32.totalorder %s384, %s385
      %p394 = scmp.eq.s32.totalorder %s35, 0
      %p395 = por %p393, %p394
      %p396 = scmp.ne.s32.totalorder %s384, %s385
      %p397 = scmp.eq.s32.totalorder %s36, 1
      %p398 = por %p396, %p397
      %p400 = scmp.ne.s32.totalorder %s385, %s399
      %p401 = scmp.eq.s32.totalorder %s36, 0
      %p402 = por %p400, %p401
      %s404 = sadd.s32 %s403, 1
      %p407 = scmp.eq.s32.totalorder %s30, 1
      %p408 = scmp.ne.s32.totalorder %s403, %s405
      %p409 = scmp.eq.s32.totalorder %s30, 0
      %p410 = por %p408, %p409
      %p411 = scmp.ne.s32.totalorder %s403, %s405
      %p412 = scmp.eq.s32.totalorder %s35, 1
      %p413 = por %p411, %p412
      %p414 = scmp.ne.s32.totalorder %s405, %s406
      %p415 = scmp.eq.s32.totalorder %s35, 0
      %p416 = por %p414, %p415
      %p417 = scmp.ne.s32.totalorder %s405, %s406
      %p418 = scmp.eq.s32.totalorder %s36, 1
      %p419 = por %p417, %p418
      %p421 = scmp.ne.s32.totalorder %s406, %s420
      %p422 = scmp.eq.s32.totalorder %s36, 0
      %p423 = por %p421, %p422
      %s425 = sadd.s32 %s424, 1
      %p428 = scmp.eq.s32.totalorder %s30, 1
      %p429 = scmp.ne.s32.totalorder %s424, %s426
      %p430 = scmp.eq.s32.totalorder %s30, 0
      %p431 = por %p429, %p430
      %p432 = scmp.ne.s32.totalorder %s424, %s426
      %p433 = scmp.eq.s32.totalorder %s35, 1
      %p434 = por %p432, %p433
      %p435 = scmp.ne.s32.totalorder %s426, %s427
      %p436 = scmp.eq.s32.totalorder %s35, 0
      %p437 = por %p435, %p436
      %p438 = scmp.ne.s32.totalorder %s426, %s427
      %p439 = scmp.eq.s32.totalorder %s36, 1
      %p440 = por %p438, %p439
      %p442 = scmp.ne.s32.totalorder %s427, %s441
      %p443 = scmp.eq.s32.totalorder %s36, 0
      %p444 = por %p442, %p443
      %s446 = sadd.s32 %s445, 1
      %p449 = scmp.eq.s32.totalorder %s30, 1
      %p450 = scmp.ne.s32.totalorder %s445, %s447
      %p451 = scmp.eq.s32.totalorder %s30, 0
      %p452 = por %p450, %p451
      %p453 = scmp.ne.s32.totalorder %s445, %s447
      %p454 = scmp.eq.s32.totalorder %s35, 1
      %p455 = por %p453, %p454
      %p456 = scmp.ne.s32.totalorder %s447, %s448
      %p457 = scmp.eq.s32.totalorder %s35, 0
      %p458 = por %p456, %p457
      %p459 = scmp.ne.s32.totalorder %s447, %s448
      %p460 = scmp.eq.s32.totalorder %s36, 1
      %p461 = por %p459, %p460
      %p463 = scmp.ne.s32.totalorder %s448, %s462
      %p464 = scmp.eq.s32.totalorder %s36, 0
      %p465 = por %p463, %p464
      %s467 = sadd.s32 %s466, 1
      %p470 = scmp.eq.s32.totalorder %s30, 1
      %p471 = scmp.ne.s32.totalorder %s466, %s468
      %p472 = scmp.eq.s32.totalorder %s30, 0
      %p473 = por %p471, %p472
      %p474 = scmp.ne.s32.totalorder %s466, %s468
      %p475 = scmp.eq.s32.totalorder %s35, 1
      %p476 = por %p474, %p475
      %p477 = scmp.ne.s32.totalorder %s468, %s469
      %p478 = scmp.eq.s32.totalorder %s35, 0
      %p479 = por %p477, %p478
      %p480 = scmp.ne.s32.totalorder %s468, %s469
      %p481 = scmp.eq.s32.totalorder %s36, 1
      %p482 = por %p480, %p481
      %p484 = scmp.ne.s32.totalorder %s469, %s483
      %p485 = scmp.eq.s32.totalorder %s36, 0
      %p486 = por %p484, %p485
      %s488 = sadd.s32 %s487, 1
      %p491 = scmp.eq.s32.totalorder %s30, 1
      %p492 = scmp.ne.s32.totalorder %s487, %s489
      %p493 = scmp.eq.s32.totalorder %s30, 0
      %p494 = por %p492, %p493
      %p495 = scmp.ne.s32.totalorder %s487, %s489
      %p496 = scmp.eq.s32.totalorder %s35, 1
      %p497 = por %p495, %p496
      %p498 = scmp.ne.s32.totalorder %s489, %s490
      %p499 = scmp.eq.s32.totalorder %s35, 0
      %p500 = por %p498, %p499
      %p501 = scmp.ne.s32.totalorder %s489, %s490
      %p502 = scmp.eq.s32.totalorder %s36, 1
      %p503 = por %p501, %p502
      %p505 = scmp.ne.s32.totalorder %s490, %s504
      %p506 = scmp.eq.s32.totalorder %s36, 0
      %p507 = por %p505, %p506
      %s508 = ssub.s32 %s37, %s49
      %s509 = ssub.s32 %s38, %s45
      %s510 = sor.u32 %s508, %s509
      %p511 = scmp.eq.s32.totalorder %s510, 0
      %s513 = sadd.s32 %s512, 1
      %s514 = scalar_select %p511, %s512, %s513
      %p517 = pneg %p511
      %p518 = scmp.eq.s32.totalorder %s30, 1
      %p519 = por %p517, %p518
      %p520 = scmp.ne.s32.totalorder %s512, %s515
      %p521 = scmp.eq.s32.totalorder %s30, 0
      %p522 = por %p520, %p521
      %p523 = scmp.ne.s32.totalorder %s512, %s515
      %p524 = scmp.eq.s32.totalorder %s35, 1
      %p525 = por %p523, %p524
      %p526 = scmp.ne.s32.totalorder %s515, %s516
      %p527 = scmp.eq.s32.totalorder %s35, 0
      %p528 = por %p526, %p527
      %p529 = scmp.ne.s32.totalorder %s515, %s516
      %p530 = scmp.eq.s32.totalorder %s36, 1
      %p531 = por %p529, %p530
      %p533 = scmp.ne.s32.totalorder %s516, %s532
      %p534 = scmp.eq.s32.totalorder %s36, 0
      %p535 = por %p533, %p534
      %p536 = scmp.le.s32.totalorder 1, %s30
      %p537 = scmp.lt.s32.totalorder %s30, 3
      %p538 = pnand %p536, %p537
      %p539 = pneg %p538
      // Predicated region
      $region9: #{tpu_custom_call.1} parent=5 // pred_check
        _
      $region10: #{tpu_custom_call.1} parent=5 // pred_check_branch
        %541 = sbr.rel (%p538) target = $region12
      $region11: #{tpu_custom_call.1} parent=5 // pred_region
        %s542 = ssub.s32 %s30, 1
        // Predicated region
        $region13: #{tpu_custom_call.1} parent=11 // pred_check
          %p543 = pneg %p143
        $region14: #{tpu_custom_call.1} parent=11 // pred_check_branch
          %545 = sbr.rel (%p543) target = $region16
        $region15: #{tpu_custom_call.1} parent=11 // pred_region
          _
        $region16: #{tpu_custom_call.1} parent=11 // pred_fallthru
          _
        // Predicated region
        $region17: #{tpu_custom_call.1} parent=11 // pred_check
          %p546 = pneg %p164
        $region18: #{tpu_custom_call.1} parent=11 // pred_check_branch
          %548 = sbr.rel (%p546) target = $region20
        $region19: #{tpu_custom_call.1} parent=11 // pred_region
          _
        $region20: #{tpu_custom_call.1} parent=11 // pred_fallthru
          _
        // Predicated region
        $region21: #{tpu_custom_call.1} parent=11 // pred_check
          %p549 = pneg %p185
        $region22: #{tpu_custom_call.1} parent=11 // pred_check_branch
          %551 = sbr.rel (%p549) target = $region24
        $region23: #{tpu_custom_call.1} parent=11 // pred_region
          _
        $region24: #{tpu_custom_call.1} parent=11 // pred_fallthru
          _
        // Predicated region
        $region25: #{tpu_custom_call.1} parent=11 // pred_check
          %p552 = pneg %p206
        $region26: #{tpu_custom_call.1} parent=11 // pred_check_branch
          %554 = sbr.rel (%p552) target = $region28
        $region27: #{tpu_custom_call.1} parent=11 // pred_region
          _
        $region28: #{tpu_custom_call.1} parent=11 // pred_fallthru
          _
        // Predicated region
        $region29: #{tpu_custom_call.1} parent=11 // pred_check
          %p555 = pneg %p227
        $region30: #{tpu_custom_call.1} parent=11 // pred_check_branch
          %557 = sbr.rel (%p555) target = $region32
        $region31: #{tpu_custom_call.1} parent=11 // pred_region
          _
        $region32: #{tpu_custom_call.1} parent=11 // pred_fallthru
          _
        // Predicated region
        $region33: #{tpu_custom_call.1} parent=11 // pred_check
          %p558 = pneg %p248
        $region34: #{tpu_custom_call.1} parent=11 // pred_check_branch
          %560 = sbr.rel (%p558) target = $region36
        $region35: #{tpu_custom_call.1} parent=11 // pred_region
          _
        $region36: #{tpu_custom_call.1} parent=11 // pred_fallthru
          _
        // Predicated region
        $region37: #{tpu_custom_call.1} parent=11 // pred_check
          %p561 = pneg %p269
        $region38: #{tpu_custom_call.1} parent=11 // pred_check_branch
          %563 = sbr.rel (%p561) target = $region40
        $region39: #{tpu_custom_call.1} parent=11 // pred_region
          _
        $region40: #{tpu_custom_call.1} parent=11 // pred_fallthru
          _
        // Predicated region
        $region41: #{tpu_custom_call.1} parent=11 // pred_check
          %p564 = pneg %p290
        $region42: #{tpu_custom_call.1} parent=11 // pred_check_branch
          %566 = sbr.rel (%p564) target = $region44
        $region43: #{tpu_custom_call.1} parent=11 // pred_region
          _
        $region44: #{tpu_custom_call.1} parent=11 // pred_fallthru
          _
        // Predicated region
        $region45: #{tpu_custom_call.1} parent=11 // pred_check
          %p567 = pneg %p311
        $region46: #{tpu_custom_call.1} parent=11 // pred_check_branch
          %569 = sbr.rel (%p567) target = $region48
        $region47: #{tpu_custom_call.1} parent=11 // pred_region
          _
        $region48: #{tpu_custom_call.1} parent=11 // pred_fallthru
          _
        // Predicated region
        $region49: #{tpu_custom_call.1} parent=11 // pred_check
          %p570 = pneg %p332
        $region50: #{tpu_custom_call.1} parent=11 // pred_check_branch
          %572 = sbr.rel (%p570) target = $region52
        $region51: #{tpu_custom_call.1} parent=11 // pred_region
          _
        $region52: #{tpu_custom_call.1} parent=11 // pred_fallthru
          _
        // Predicated region
        $region53: #{tpu_custom_call.1} parent=11 // pred_check
          %p573 = pneg %p353
        $region54: #{tpu_custom_call.1} parent=11 // pred_check_branch
          %575 = sbr.rel (%p573) target = $region56
        $region55: #{tpu_custom_call.1} parent=11 // pred_region
          _
        $region56: #{tpu_custom_call.1} parent=11 // pred_fallthru
          _
        // Predicated region
        $region57: #{tpu_custom_call.1} parent=11 // pred_check
          %p576 = pneg %p374
        $region58: #{tpu_custom_call.1} parent=11 // pred_check_branch
          %578 = sbr.rel (%p576) target = $region60
        $region59: #{tpu_custom_call.1} parent=11 // pred_region
          _
        $region60: #{tpu_custom_call.1} parent=11 // pred_fallthru
          _
        // Predicated region
        $region61: #{tpu_custom_call.1} parent=11 // pred_check
          %p579 = pneg %p395
        $region62: #{tpu_custom_call.1} parent=11 // pred_check_branch
          %581 = sbr.rel (%p579) target = $region64
        $region63: #{tpu_custom_call.1} parent=11 // pred_region
          _
        $region64: #{tpu_custom_call.1} parent=11 // pred_fallthru
          _
        // Predicated region
        $region65: #{tpu_custom_call.1} parent=11 // pred_check
          %p582 = pneg %p416
        $region66: #{tpu_custom_call.1} parent=11 // pred_check_branch
          %584 = sbr.rel (%p582) target = $region68
        $region67: #{tpu_custom_call.1} parent=11 // pred_region
          _
        $region68: #{tpu_custom_call.1} parent=11 // pred_fallthru
          _
        // Predicated region
        $region69: #{tpu_custom_call.1} parent=11 // pred_check
          %p585 = pneg %p437
        $region70: #{tpu_custom_call.1} parent=11 // pred_check_branch
          %587 = sbr.rel (%p585) target = $region72
        $region71: #{tpu_custom_call.1} parent=11 // pred_region
          _
        $region72: #{tpu_custom_call.1} parent=11 // pred_fallthru
          _
        // Predicated region
        $region73: #{tpu_custom_call.1} parent=11 // pred_check
          %p588 = pneg %p458
        $region74: #{tpu_custom_call.1} parent=11 // pred_check_branch
          %590 = sbr.rel (%p588) target = $region76
        $region75: #{tpu_custom_call.1} parent=11 // pred_region
          _
        $region76: #{tpu_custom_call.1} parent=11 // pred_fallthru
          _
        // Predicated region
        $region77: #{tpu_custom_call.1} parent=11 // pred_check
          %p591 = pneg %p479
        $region78: #{tpu_custom_call.1} parent=11 // pred_check_branch
          %593 = sbr.rel (%p591) target = $region80
        $region79: #{tpu_custom_call.1} parent=11 // pred_region
          _
        $region80: #{tpu_custom_call.1} parent=11 // pred_fallthru
          _
        // Predicated region
        $region81: #{tpu_custom_call.1} parent=11 // pred_check
          %p594 = pneg %p500
        $region82: #{tpu_custom_call.1} parent=11 // pred_check_branch
          %596 = sbr.rel (%p594) target = $region84
        $region83: #{tpu_custom_call.1} parent=11 // pred_region
          _
        $region84: #{tpu_custom_call.1} parent=11 // pred_fallthru
          _
      $region12: #{tpu_custom_call.1} parent=5 // pred_fallthru
        _
      %p597 = scmp.lt.s32.totalorder %s30, 2
      // Predicated region
      $region85: #{tpu_custom_call.1} parent=5 // pred_check
        %p598 = pneg %p597
      $region86: #{tpu_custom_call.1} parent=5 // pred_check_branch
        %600 = sbr.rel (%p598) target = $region88
      $region87: #{tpu_custom_call.1} parent=5 // pred_region
        // Predicated region
        $region89: #{tpu_custom_call.1} parent=87 // pred_check
          %p601 = pneg %p64
        $region90: #{tpu_custom_call.1} parent=87 // pred_check_branch
          %603 = sbr.rel (%p601) target = $region92
        $region91: #{tpu_custom_call.1} parent=87 // pred_region
          %p604 = scmp.lt.s32.totalorder %s37, 1
          %s605 = scalar_select %p604, %s37, 1
          %p606 = scmp.lt.s32.totalorder %s38, 0
          %s607 = scalar_select %p606, %s38, 0
          %s608 = sadd.s32 %s607, %s605
          %s609 = smul.addr %s608, 8
          %s610 = scalar_lea.vmem %s0, %s609
        $region92: #{tpu_custom_call.1} parent=87 // pred_fallthru
          _
        // Predicated region
        $region93: #{tpu_custom_call.1} parent=87 // pred_check
          %p611 = pneg %p90
        $region94: #{tpu_custom_call.1} parent=87 // pred_check_branch
          %613 = sbr.rel (%p611) target = $region96
        $region95: #{tpu_custom_call.1} parent=87 // pred_region
          %p614 = scmp.lt.s32.totalorder %s37, 1
          %s615 = scalar_select %p614, %s37, 1
          %s616 = smul.addr %s615, 8
          %s617 = scalar_lea.vmem %s1, %s616
        $region96: #{tpu_custom_call.1} parent=87 // pred_fallthru
          _
        // Predicated region
        $region97: #{tpu_custom_call.1} parent=87 // pred_check
          %p618 = pneg %p116
        $region98: #{tpu_custom_call.1} parent=87 // pred_check_branch
          %620 = sbr.rel (%p618) target = $region100
        $region99: #{tpu_custom_call.1} parent=87 // pred_region
          %p621 = scmp.lt.s32.totalorder %s37, 1
          %s622 = scalar_select %p621, %s37, 1
          %s623 = smul.addr %s622, 4
          %s624 = scalar_lea.vmem %s2, %s623
        $region100: #{tpu_custom_call.1} parent=87 // pred_fallthru
          _
      $region88: #{tpu_custom_call.1} parent=5 // pred_fallthru
        _
      %p625 = scmp.le.s32.totalorder 1, %s30
      %p626 = scmp.lt.s32.totalorder %s30, 3
      %p627 = pnand %p625, %p626
      %p628 = pneg %p627
      // Predicated region
      $region101: #{tpu_custom_call.1} parent=5 // pred_check
        _
      $region102: #{tpu_custom_call.1} parent=5 // pred_check_branch
        %630 = sbr.rel (%p627) target = $region104
      $region103: #{tpu_custom_call.1} parent=5 // pred_region
        %s631 = ssub.s32 %s30, 1
        %p632 = scmp.lt.s32.totalorder %s39, 1
        %s633 = scalar_select %p632, %s39, 1
        %p634 = scmp.lt.s32.totalorder %s40, 0
        %s635 = scalar_select %p634, %s40, 0
        %s636 = sadd.s32 %s635, %s633
        %s637 = smul.addr %s636, 8
        %s638 = scalar_lea.vmem %s0, %s637
        %p639 = pneg %p70
        %p640 = pneg %p67
        %p641 = scmp.lt.s32.totalorder %s39, 1
        %s642 = scalar_select %p641, %s39, 1
        %s643 = smul.addr %s642, 8
        %s644 = scalar_lea.vmem %s1, %s643
        %p645 = pneg %p96
        %p646 = pneg %p93
        %p647 = scmp.lt.s32.totalorder %s39, 1
        %s648 = scalar_select %p647, %s39, 1
        %s649 = smul.addr %s648, 4
        %s650 = scalar_lea.vmem %s2, %s649
        %p651 = pneg %p122
        %p652 = pneg %p119
        %p653 = pneg %p143
        %p654 = pneg %p140
        %p655 = pneg %p164
        %p656 = pneg %p161
        %p657 = pneg %p185
        %p658 = pneg %p182
        %p659 = pneg %p206
        %p660 = pneg %p203
        %p661 = pneg %p227
        %p662 = pneg %p224
        %p663 = pneg %p248
        %p664 = pneg %p245
        %p665 = pneg %p269
        %p666 = pneg %p266
        %p667 = pneg %p290
        %p668 = pneg %p287
        %p669 = pneg %p311
        %p670 = pneg %p308
        %p671 = pneg %p332
        %p672 = pneg %p329
        %p673 = pneg %p353
        %p674 = pneg %p350
        %p675 = pneg %p374
        %p676 = pneg %p371
        %p677 = pneg %p395
        %p678 = pneg %p392
        %p679 = pneg %p416
        %p680 = pneg %p413
        %p681 = pneg %p437
        %p682 = pneg %p434
        %p683 = pneg %p458
        %p684 = pneg %p455
        %p685 = pneg %p479
        %p686 = pneg %p476
        %p687 = pneg %p500
        %p688 = pneg %p497
        %p689 = pneg %p528
        %p690 = pneg %p525
        %s691 = sand.u32 %s515, 1
        %s692 = scalar_lea.sflag [#allocation3], %s691
        %s693 = sand.u32 %s515, 1
        %s694 = smul.addr %s693, 8
        %s695 = scalar_lea.vmem [#allocation2], %s694
        %p696 = scmp.lt.s32.totalorder %s39, 1
        %s697 = scalar_select %p696, %s39, 1
        %p698 = scmp.lt.s32.totalorder %s40, 0
        %s699 = scalar_select %p698, %s40, 0
        %s700 = sadd.s32 %s699, %s697
        %s701 = smul.addr %s700, 8
        %s702 = scalar_lea.vmem %s0, %s701
        %p703 = scmp.lt.s32.totalorder %s39, 1
        %s704 = scalar_select %p703, %s39, 1
        %s705 = smul.addr %s704, 8
        %s706 = scalar_lea.vmem %s1, %s705
        %p707 = scmp.lt.s32.totalorder %s39, 1
        %s708 = scalar_select %p707, %s39, 1
        %s709 = smul.addr %s708, 4
        %s710 = scalar_lea.vmem %s2, %s709
        %v712 = vld [vmem:[%s702] sm:$0xff]
        %v713 = vld [vmem:[%s706] sm:$0xff]
        %v714 = vld [vmem:[%s710] sm:$0xf]
        %s715 = smul.u32 %s40, 8
        %v716 = vlaneseq
        %v717 = vshrl.u32 %v716, 7
        %v718 = vstv %s715
        %v719 = vadd.s32 %v718, %v717
        %v720 = vlaneseq
        %v721 = vand.u32 %v720, 127
        %vm722 = vcmp.gt.s32.totalorder %v721, %v719
        %v723 = vpack.c.bf16 %v712, %v712
        %v724 = vpack.c.bf16 %v713, %v713
        %v725 = vld [vmem:[%s3] sm:$0xf]
        %v726 = vld [vmem:[%s3 + $0x4] sm:$0xf]
        %v727 = vld [vmem:[%s3 + $0x8] sm:$0xf]
        %v728 = vld [vmem:[%s3 + $0xc] sm:$0xf]
        %v729 = vld [vmem:[%s3 + $0x10] sm:$0xf]
        %v730 = vld [vmem:[%s3 + $0x14] sm:$0xf]
        %v731 = vld [vmem:[%s3 + $0x18] sm:$0xf]
        %v732 = vld [vmem:[%s3 + $0x1c] sm:$0xf]
        %v733 = vld [vmem:[%s4] sm:$0x1]
        %v734 = vld [vmem:[%s4 + $0x1] sm:$0x1]
        %v737 = vlaneseq
        %v738 = vshrl.u32 %v737, 7
        %v739 = vsub.s32 0, %v738
        %v740 = vrot.slane %v733, %v739
        %v741 = vlaneseq
        %v742 = vshrl.u32 %v741, 7
        %v743 = vsub.s32 0, %v742
        %v744 = vrot.slane %v734, %v743
        %v751 = vunpack.c.l.b16 %v725
        %v752 = vunpack.c.l.b16 %v726
        %v753 = vunpack.c.l.b16 %v727
        %v754 = vunpack.c.l.b16 %v728
        %v755 = vpack.c.b16 %v752, %v751
        %v756 = vpack.c.b16 %v754, %v753
        %vm759 = vcmask 261120
        %v761 = vsel %vm759, %v723, 0
        %763 = vmatprep.subr.bf16.mxu0 0
        %764 = vmatpush1.bf16.msra.mxu0 0
        %765 = vmatprep.subr.bf16.mxu0 0
        %766 = vmatpush1.bf16.msra.mxu0 0
        %767 = vmatprep.subr.bf16.mxu0 0
        %768 = vmatpush1.bf16.msra.mxu0 0
        %769 = vmatprep.subr.bf16.mxu0 0
        %770 = vmatpush1.bf16.msra.mxu0 0
        %771 = vmatprep.subr.bf16.mxu0 0
        %772 = vmatpush1.bf16.msra.mxu0 0
        %773 = vmatprep.subr.bf16.mxu0 0
        %774 = vmatpush1.bf16.msra.mxu0 0
        %775 = vmatprep.subr.bf16.mxu0 0
        %776 = vmatpush1.bf16.msra.mxu0 %v756
        %777 = vmatprep.subr.bf16.mxu0 0
        %778 = vmatpush1.bf16.msra.mxu0 %v755
        %779 = vmatprep.subr.bf16.mxu0 0
        %780 = vmatpush2.bf16.msra.mxu0 0
        %781 = vmatprep.subr.bf16.mxu0 0
        %782 = vmatpush2.bf16.msra.mxu0 0
        %783 = vmatprep.subr.bf16.mxu0 0
        %784 = vmatpush2.bf16.msra.mxu0 0
        %785 = vmatprep.subr.bf16.mxu0 0
        %786 = vmatpush2.bf16.msra.mxu0 0
        %787 = vmatprep.subr.bf16.mxu0 0
        %788 = vmatpush2.bf16.msra.mxu0 0
        %789 = vmatprep.subr.bf16.mxu0 0
        %790 = vmatpush2.bf16.msra.mxu0 0
        %791 = vmatprep.subr.bf16.mxu0 0
        %792 = vmatpush2.bf16.msra.mxu0 0
        %793 = vmatprep.subr.bf16.mxu0 0
        %794 = vmatpush2.bf16.msra.mxu0 0
        %795 = vmatprep.mubr.bf16.mxu0 0
        %796 = vmatmul.mubr.bf16.gmra.mxu0 %v761
        %v797 = vpop.f32.mrf.mxu0
        %v798 = vadd.f32 %v740, %v797
        %v799 = vpop.f32.mrf.mxu0
        %v800 = vpop.f32.mrf.mxu0
        %v801 = vpop.f32.mrf.mxu0
        %802 = vdwg.mxu0
        %v807 = vunpack.c.l.b16 %v729
        %v808 = vunpack.c.l.b16 %v730
        %v809 = vunpack.c.l.b16 %v731
        %v810 = vunpack.c.l.b16 %v732
        %v811 = vpack.c.b16 %v808, %v807
        %v812 = vpack.c.b16 %v810, %v809
        %815 = vmatprep.subr.bf16.mxu0 0
        %816 = vmatpush1.bf16.msra.mxu0 0
        %817 = vmatprep.subr.bf16.mxu0 0
        %818 = vmatpush1.bf16.msra.mxu0 0
        %819 = vmatprep.subr.bf16.mxu0 0
        %820 = vmatpush1.bf16.msra.mxu0 0
        %821 = vmatprep.subr.bf16.mxu0 0
        %822 = vmatpush1.bf16.msra.mxu0 0
        %823 = vmatprep.subr.bf16.mxu0 0
        %824 = vmatpush1.bf16.msra.mxu0 0
        %825 = vmatprep.subr.bf16.mxu0 0
        %826 = vmatpush1.bf16.msra.mxu0 0
        %827 = vmatprep.subr.bf16.mxu0 0
        %828 = vmatpush1.bf16.msra.mxu0 %v812
        %829 = vmatprep.subr.bf16.mxu0 0
        %830 = vmatpush1.bf16.msra.mxu0 %v811
        %831 = vmatprep.subr.bf16.mxu0 0
        %832 = vmatpush2.bf16.msra.mxu0 0
        %833 = vmatprep.subr.bf16.mxu0 0
        %834 = vmatpush2.bf16.msra.mxu0 0
        %835 = vmatprep.subr.bf16.mxu0 0
        %836 = vmatpush2.bf16.msra.mxu0 0
        %837 = vmatprep.subr.bf16.mxu0 0
        %838 = vmatpush2.bf16.msra.mxu0 0
        %839 = vmatprep.subr.bf16.mxu0 0
        %840 = vmatpush2.bf16.msra.mxu0 0
        %841 = vmatprep.subr.bf16.mxu0 0
        %842 = vmatpush2.bf16.msra.mxu0 0
        %843 = vmatprep.subr.bf16.mxu0 0
        %844 = vmatpush2.bf16.msra.mxu0 0
        %845 = vmatprep.subr.bf16.mxu0 0
        %846 = vmatpush2.bf16.msra.mxu0 0
        %847 = vmatprep.mubr.bf16.mxu0 0
        %848 = vmatmul.mubr.bf16.gmra.mxu0 %v761
        %v849 = vpop.f32.mrf.mxu0
        %v850 = vadd.f32 %v744, %v849
        %v851 = vpop.f32.mrf.mxu0
        %v852 = vpop.f32.mrf.mxu0
        %v853 = vpop.f32.mrf.mxu0
        %854 = vdwg.mxu0
        %v855 = vld [vmem:[%s5] sm:$0xf]
        %v856 = vld [vmem:[%s5 + $0x4] sm:$0xf]
        %v857 = vld [vmem:[%s5 + $0x8] sm:$0xf]
        %v858 = vld [vmem:[%s5 + $0xc] sm:$0xf]
        %v859 = vld [vmem:[%s5 + $0x10] sm:$0xf]
        %v860 = vld [vmem:[%s5 + $0x14] sm:$0xf]
        %v861 = vld [vmem:[%s5 + $0x18] sm:$0xf]
        %v862 = vld [vmem:[%s5 + $0x1c] sm:$0xf]
        %v863 = vld [vmem:[%s6] sm:$0x1]
        %v864 = vld [vmem:[%s6 + $0x1] sm:$0x1]
        %v867 = vlaneseq
        %v868 = vshrl.u32 %v867, 7
        %v869 = vsub.s32 0, %v868
        %v870 = vrot.slane %v863, %v869
        %v871 = vlaneseq
        %v872 = vshrl.u32 %v871, 7
        %v873 = vsub.s32 0, %v872
        %v874 = vrot.slane %v864, %v873
        %v881 = vunpack.c.l.b16 %v855
        %v882 = vunpack.c.l.b16 %v856
        %v883 = vunpack.c.l.b16 %v857
        %v884 = vunpack.c.l.b16 %v858
        %v885 = vpack.c.b16 %v882, %v881
        %v886 = vpack.c.b16 %v884, %v883
        %v890 = vsel %vm759, %v724, 0
        %892 = vmatprep.subr.bf16.mxu0 0
        %893 = vmatpush1.bf16.msra.mxu0 0
        %894 = vmatprep.subr.bf16.mxu0 0
        %895 = vmatpush1.bf16.msra.mxu0 0
        %896 = vmatprep.subr.bf16.mxu0 0
        %897 = vmatpush1.bf16.msra.mxu0 0
        %898 = vmatprep.subr.bf16.mxu0 0
        %899 = vmatpush1.bf16.msra.mxu0 0
        %900 = vmatprep.subr.bf16.mxu0 0
        %901 = vmatpush1.bf16.msra.mxu0 0
        %902 = vmatprep.subr.bf16.mxu0 0
        %903 = vmatpush1.bf16.msra.mxu0 0
        %904 = vmatprep.subr.bf16.mxu0 0
        %905 = vmatpush1.bf16.msra.mxu0 %v886
        %906 = vmatprep.subr.bf16.mxu0 0
        %907 = vmatpush1.bf16.msra.mxu0 %v885
        %908 = vmatprep.subr.bf16.mxu0 0
        %909 = vmatpush2.bf16.msra.mxu0 0
        %910 = vmatprep.subr.bf16.mxu0 0
        %911 = vmatpush2.bf16.msra.mxu0 0
        %912 = vmatprep.subr.bf16.mxu0 0
        %913 = vmatpush2.bf16.msra.mxu0 0
        %914 = vmatprep.subr.bf16.mxu0 0
        %915 = vmatpush2.bf16.msra.mxu0 0
        %916 = vmatprep.subr.bf16.mxu0 0
        %917 = vmatpush2.bf16.msra.mxu0 0
        %918 = vmatprep.subr.bf16.mxu0 0
        %919 = vmatpush2.bf16.msra.mxu0 0
        %920 = vmatprep.subr.bf16.mxu0 0
        %921 = vmatpush2.bf16.msra.mxu0 0
        %922 = vmatprep.subr.bf16.mxu0 0
        %923 = vmatpush2.bf16.msra.mxu0 0
        %924 = vmatprep.mubr.bf16.mxu0 0
        %925 = vmatmul.mubr.bf16.gmra.mxu0 %v890
        %v926 = vpop.f32.mrf.mxu0
        %v927 = vadd.f32 %v870, %v926
        %v928 = vpop.f32.mrf.mxu0
        %v929 = vpop.f32.mrf.mxu0
        %v930 = vpop.f32.mrf.mxu0
        %931 = vdwg.mxu0
        %v936 = vunpack.c.l.b16 %v859
        %v937 = vunpack.c.l.b16 %v860
        %v938 = vunpack.c.l.b16 %v861
        %v939 = vunpack.c.l.b16 %v862
        %v940 = vpack.c.b16 %v937, %v936
        %v941 = vpack.c.b16 %v939, %v938
        %944 = vmatprep.subr.bf16.mxu0 0
        %945 = vmatpush1.bf16.msra.mxu0 0
        %946 = vmatprep.subr.bf16.mxu0 0
        %947 = vmatpush1.bf16.msra.mxu0 0
        %948 = vmatprep.subr.bf16.mxu0 0
        %949 = vmatpush1.bf16.msra.mxu0 0
        %950 = vmatprep.subr.bf16.mxu0 0
        %951 = vmatpush1.bf16.msra.mxu0 0
        %952 = vmatprep.subr.bf16.mxu0 0
        %953 = vmatpush1.bf16.msra.mxu0 0
        %954 = vmatprep.subr.bf16.mxu0 0
        %955 = vmatpush1.bf16.msra.mxu0 0
        %956 = vmatprep.subr.bf16.mxu0 0
        %957 = vmatpush1.bf16.msra.mxu0 %v941
        %958 = vmatprep.subr.bf16.mxu0 0
        %959 = vmatpush1.bf16.msra.mxu0 %v940
        %960 = vmatprep.subr.bf16.mxu0 0
        %961 = vmatpush2.bf16.msra.mxu0 0
        %962 = vmatprep.subr.bf16.mxu0 0
        %963 = vmatpush2.bf16.msra.mxu0 0
        %964 = vmatprep.subr.bf16.mxu0 0
        %965 = vmatpush2.bf16.msra.mxu0 0
        %966 = vmatprep.subr.bf16.mxu0 0
        %967 = vmatpush2.bf16.msra.mxu0 0
        %968 = vmatprep.subr.bf16.mxu0 0
        %969 = vmatpush2.bf16.msra.mxu0 0
        %970 = vmatprep.subr.bf16.mxu0 0
        %971 = vmatpush2.bf16.msra.mxu0 0
        %972 = vmatprep.subr.bf16.mxu0 0
        %973 = vmatpush2.bf16.msra.mxu0 0
        %974 = vmatprep.subr.bf16.mxu0 0
        %975 = vmatpush2.bf16.msra.mxu0 0
        %976 = vmatprep.mubr.bf16.mxu0 0
        %977 = vmatmul.mubr.bf16.gmra.mxu0 %v890
        %v978 = vpop.f32.mrf.mxu0
        %v979 = vadd.f32 %v874, %v978
        %v980 = vpop.f32.mrf.mxu0
        %v981 = vpop.f32.mrf.mxu0
        %v982 = vpop.f32.mrf.mxu0
        %983 = vdwg.mxu0
        %v984 = vld [vmem:[%s7] sm:$0xf]
        %v985 = vld [vmem:[%s7 + $0x4] sm:$0xf]
        %v986 = vld [vmem:[%s7 + $0x8] sm:$0xf]
        %v987 = vld [vmem:[%s7 + $0xc] sm:$0xf]
        %v988 = vld [vmem:[%s7 + $0x10] sm:$0xf]
        %v989 = vld [vmem:[%s7 + $0x14] sm:$0xf]
        %v990 = vld [vmem:[%s7 + $0x18] sm:$0xf]
        %v991 = vld [vmem:[%s7 + $0x1c] sm:$0xf]
        %v992 = vld [vmem:[%s8] sm:$0x1]
        %v993 = vld [vmem:[%s8 + $0x1] sm:$0x1]
        %v996 = vlaneseq
        %v997 = vshrl.u32 %v996, 7
        %v998 = vsub.s32 0, %v997
        %v999 = vrot.slane %v992, %v998
        %v1000 = vlaneseq
        %v1001 = vshrl.u32 %v1000, 7
        %v1002 = vsub.s32 0, %v1001
        %v1003 = vrot.slane %v993, %v1002
        %v1010 = vunpack.c.l.b16 %v984
        %v1011 = vunpack.c.l.b16 %v985
        %v1012 = vunpack.c.l.b16 %v986
        %v1013 = vunpack.c.l.b16 %v987
        %v1014 = vpack.c.b16 %v1011, %v1010
        %v1015 = vpack.c.b16 %v1013, %v1012
        %1018 = vmatprep.subr.bf16.mxu0 0
        %1019 = vmatpush1.bf16.msra.mxu0 0
        %1020 = vmatprep.subr.bf16.mxu0 0
        %1021 = vmatpush1.bf16.msra.mxu0 0
        %1022 = vmatprep.subr.bf16.mxu0 0
        %1023 = vmatpush1.bf16.msra.mxu0 0
        %1024 = vmatprep.subr.bf16.mxu0 0
        %1025 = vmatpush1.bf16.msra.mxu0 0
        %1026 = vmatprep.subr.bf16.mxu0 0
        %1027 = vmatpush1.bf16.msra.mxu0 0
        %1028 = vmatprep.subr.bf16.mxu0 0
        %1029 = vmatpush1.bf16.msra.mxu0 0
        %1030 = vmatprep.subr.bf16.mxu0 0
        %1031 = vmatpush1.bf16.msra.mxu0 %v1015
        %1032 = vmatprep.subr.bf16.mxu0 0
        %1033 = vmatpush1.bf16.msra.mxu0 %v1014
        %1034 = vmatprep.subr.bf16.mxu0 0
        %1035 = vmatpush2.bf16.msra.mxu0 0
        %1036 = vmatprep.subr.bf16.mxu0 0
        %1037 = vmatpush2.bf16.msra.mxu0 0
        %1038 = vmatprep.subr.bf16.mxu0 0
        %1039 = vmatpush2.bf16.msra.mxu0 0
        %1040 = vmatprep.subr.bf16.mxu0 0
        %1041 = vmatpush2.bf16.msra.mxu0 0
        %1042 = vmatprep.subr.bf16.mxu0 0
        %1043 = vmatpush2.bf16.msra.mxu0 0
        %1044 = vmatprep.subr.bf16.mxu0 0
        %1045 = vmatpush2.bf16.msra.mxu0 0
        %1046 = vmatprep.subr.bf16.mxu0 0
        %1047 = vmatpush2.bf16.msra.mxu0 0
        %1048 = vmatprep.subr.bf16.mxu0 0
        %1049 = vmatpush2.bf16.msra.mxu0 0
        %1050 = vmatprep.mubr.bf16.mxu0 0
        %1051 = vmatmul.mubr.bf16.gmra.mxu0 %v890
        %v1052 = vpop.f32.mrf.mxu0
        %v1053 = vadd.f32 %v999, %v1052
        %v1054 = vpop.f32.mrf.mxu0
        %v1055 = vpop.f32.mrf.mxu0
        %v1056 = vpop.f32.mrf.mxu0
        %1057 = vdwg.mxu0
        %v1062 = vunpack.c.l.b16 %v988
        %v1063 = vunpack.c.l.b16 %v989
        %v1064 = vunpack.c.l.b16 %v990
        %v1065 = vunpack.c.l.b16 %v991
        %v1066 = vpack.c.b16 %v1063, %v1062
        %v1067 = vpack.c.b16 %v1065, %v1064
        %1070 = vmatprep.subr.bf16.mxu0 0
        %1071 = vmatpush1.bf16.msra.mxu0 0
        %1072 = vmatprep.subr.bf16.mxu0 0
        %1073 = vmatpush1.bf16.msra.mxu0 0
        %1074 = vmatprep.subr.bf16.mxu0 0
        %1075 = vmatpush1.bf16.msra.mxu0 0
        %1076 = vmatprep.subr.bf16.mxu0 0
        %1077 = vmatpush1.bf16.msra.mxu0 0
        %1078 = vmatprep.subr.bf16.mxu0 0
        %1079 = vmatpush1.bf16.msra.mxu0 0
        %1080 = vmatprep.subr.bf16.mxu0 0
        %1081 = vmatpush1.bf16.msra.mxu0 0
        %1082 = vmatprep.subr.bf16.mxu0 0
        %1083 = vmatpush1.bf16.msra.mxu0 %v1067
        %1084 = vmatprep.subr.bf16.mxu0 0
        %1085 = vmatpush1.bf16.msra.mxu0 %v1066
        %1086 = vmatprep.subr.bf16.mxu0 0
        %1087 = vmatpush2.bf16.msra.mxu0 0
        %1088 = vmatprep.subr.bf16.mxu0 0
        %1089 = vmatpush2.bf16.msra.mxu0 0
        %1090 = vmatprep.subr.bf16.mxu0 0
        %1091 = vmatpush2.bf16.msra.mxu0 0
        %1092 = vmatprep.subr.bf16.mxu0 0
        %1093 = vmatpush2.bf16.msra.mxu0 0
        %1094 = vmatprep.subr.bf16.mxu0 0
        %1095 = vmatpush2.bf16.msra.mxu0 0
        %1096 = vmatprep.subr.bf16.mxu0 0
        %1097 = vmatpush2.bf16.msra.mxu0 0
        %1098 = vmatprep.subr.bf16.mxu0 0
        %1099 = vmatpush2.bf16.msra.mxu0 0
        %1100 = vmatprep.subr.bf16.mxu0 0
        %1101 = vmatpush2.bf16.msra.mxu0 0
        %1102 = vmatprep.mubr.bf16.mxu0 0
        %1103 = vmatmul.mubr.bf16.gmra.mxu0 %v890
        %v1104 = vpop.f32.mrf.mxu0
        %v1105 = vadd.f32 %v1003, %v1104
        %v1106 = vpop.f32.mrf.mxu0
        %v1107 = vpop.f32.mrf.mxu0
        %v1108 = vpop.f32.mrf.mxu0
        %1109 = vdwg.mxu0
        %v1110 = vpack.c.bf16 %v798, %v798
        %v1111 = vpack.c.bf16 %v850, %v850
        %v1112 = vpack.c.bf16 %v927, %v927
        %v1113 = vpack.c.bf16 %v979, %v979
        %vm1114 = vcmask 130048
        %v1116 = vsel %vm1114, %v1110, 0
        %v1119 = vsel %vm1114, %v1112, 0
        %1121 = vmatprep.subr.bf16.mxu0 0
        %1122 = vmatpush1.bf16.xpose.msra.mxu0 0
        %1123 = vmatprep.subr.bf16.mxu0 0
        %1124 = vmatpush1.bf16.xpose.msra.mxu0 0
        %1125 = vmatprep.subr.bf16.mxu0 0
        %1126 = vmatpush1.bf16.xpose.msra.mxu0 0
        %1127 = vmatprep.subr.bf16.mxu0 0
        %1128 = vmatpush1.bf16.xpose.msra.mxu0 0
        %1129 = vmatprep.subr.bf16.mxu0 0
        %1130 = vmatpush1.bf16.xpose.msra.mxu0 0
        %1131 = vmatprep.subr.bf16.mxu0 0
        %1132 = vmatpush1.bf16.xpose.msra.mxu0 0
        %1133 = vmatprep.subr.bf16.mxu0 0
        %1134 = vmatpush1.bf16.xpose.msra.mxu0 0
        %1135 = vmatprep.subr.bf16.mxu0 0
        %1136 = vmatpush1.bf16.xpose.msra.mxu0 %v1119
        %1137 = vmatprep.subr.bf16.mxu0 0
        %1138 = vmatpush2.bf16.xpose.msra.mxu0 0
        %1139 = vmatprep.subr.bf16.mxu0 0
        %1140 = vmatpush2.bf16.xpose.msra.mxu0 0
        %1141 = vmatprep.subr.bf16.mxu0 0
        %1142 = vmatpush2.bf16.xpose.msra.mxu0 0
        %1143 = vmatprep.subr.bf16.mxu0 0
        %1144 = vmatpush2.bf16.xpose.msra.mxu0 0
        %1145 = vmatprep.subr.bf16.mxu0 0
        %1146 = vmatpush2.bf16.xpose.msra.mxu0 0
        %1147 = vmatprep.subr.bf16.mxu0 0
        %1148 = vmatpush2.bf16.xpose.msra.mxu0 0
        %1149 = vmatprep.subr.bf16.mxu0 0
        %1150 = vmatpush2.bf16.xpose.msra.mxu0 0
        %1151 = vmatprep.subr.bf16.mxu0 0
        %1152 = vmatpush2.bf16.xpose.msra.mxu0 0
        %1153 = vmatprep.mubr.bf16.mxu0 0
        %1154 = vmatmul.mubr.bf16.gmra.mxu0 %v1116
        %v1155 = vpop.f32.mrf.mxu0
        %v1156 = vadd.f32 0.0, %v1155
        %v1157 = vpop.f32.mrf.mxu0
        %v1158 = vpop.f32.mrf.mxu0
        %v1159 = vpop.f32.mrf.mxu0
        %1160 = vdwg.mxu0
        %v1162 = vsel %vm1114, %v1111, 0
        %v1165 = vsel %vm1114, %v1113, 0
        %1167 = vmatprep.subr.bf16.mxu0 0
        %1168 = vmatpush1.bf16.xpose.msra.mxu0 0
        %1169 = vmatprep.subr.bf16.mxu0 0
        %1170 = vmatpush1.bf16.xpose.msra.mxu0 0
        %1171 = vmatprep.subr.bf16.mxu0 0
        %1172 = vmatpush1.bf16.xpose.msra.mxu0 0
        %1173 = vmatprep.subr.bf16.mxu0 0
        %1174 = vmatpush1.bf16.xpose.msra.mxu0 0
        %1175 = vmatprep.subr.bf16.mxu0 0
        %1176 = vmatpush1.bf16.xpose.msra.mxu0 0
        %1177 = vmatprep.subr.bf16.mxu0 0
        %1178 = vmatpush1.bf16.xpose.msra.mxu0 0
        %1179 = vmatprep.subr.bf16.mxu0 0
        %1180 = vmatpush1.bf16.xpose.msra.mxu0 0
        %1181 = vmatprep.subr.bf16.mxu0 0
        %1182 = vmatpush1.bf16.xpose.msra.mxu0 %v1165
        %1183 = vmatprep.subr.bf16.mxu0 0
        %1184 = vmatpush2.bf16.xpose.msra.mxu0 0
        %1185 = vmatprep.subr.bf16.mxu0 0
        %1186 = vmatpush2.bf16.xpose.msra.mxu0 0
        %1187 = vmatprep.subr.bf16.mxu0 0
        %1188 = vmatpush2.bf16.xpose.msra.mxu0 0
        %1189 = vmatprep.subr.bf16.mxu0 0
        %1190 = vmatpush2.bf16.xpose.msra.mxu0 0
        %1191 = vmatprep.subr.bf16.mxu0 0
        %1192 = vmatpush2.bf16.xpose.msra.mxu0 0
        %1193 = vmatprep.subr.bf16.mxu0 0
        %1194 = vmatpush2.bf16.xpose.msra.mxu0 0
        %1195 = vmatprep.subr.bf16.mxu0 0
        %1196 = vmatpush2.bf16.xpose.msra.mxu0 0
        %1197 = vmatprep.subr.bf16.mxu0 0
        %1198 = vmatpush2.bf16.xpose.msra.mxu0 0
        %1199 = vmatprep.mubr.bf16.mxu0 0
        %1200 = vmatmul.mubr.bf16.gmra.mxu0 %v1162
        %v1201 = vpop.f32.mrf.mxu0
        %v1202 = vadd.f32 0.0, %v1201
        %v1203 = vpop.f32.mrf.mxu0
        %v1204 = vpop.f32.mrf.mxu0
        %v1205 = vpop.f32.mrf.mxu0
        %1206 = vdwg.mxu0
        %v1207 = vsel %vm722, 1, 0
        %vm1208 = vcmp.eq.s32.totalorder %v1207, 1
        %v1209 = vsel %vm1208, -1e+30, %v1156
        %v1210 = vsel %vm1208, -1e+30, %v1202
        %vm1211 = vcmask 64512
        %v1212 = vsel %vm1211, %v1209, -inf
        %1213 = vmax.xlane.f32.xlu0 %v1212
        %v1214 = vpop.xlane.xlu0 %1213
        %v1215 = vsel %vm1211, %v1210, -inf
        %1216 = vmax.xlane.f32.xlu0 %v1215
        %v1217 = vpop.xlane.xlu0 %1216
        %v1218 = vsub.f32 %v1209, %v1214
        %v1219 = vsub.f32 %v1210, %v1217
        %v1220 = vmul.f32 %v1218, 1.442695
        %v1221 = vpow.pop %v1220
        %v1222 = vmul.f32 %v1219, 1.442695
        %v1223 = vpow.pop %v1222
        %v1224 = vsel %vm1211, %v1221, 0.0
        %1225 = vadd.xlane.f32.xlu0 %v1224
        %v1226 = vpop.xlane.xlu0 %1225
        %v1227 = vsel %vm1211, %v1223, 0.0
        %1228 = vadd.xlane.f32.xlu0 %v1227
        %v1229 = vpop.xlane.xlu0 %1228
        %v1230 = vrcp.pop %v1226
        %v1231 = vrcp.pop %v1229
        %v1232 = vmul.f32 %v1221, %v1230
        %v1233 = vmul.f32 %v1223, %v1231
        %v1234 = vpack.c.bf16 %v1232, %v1232
        %v1235 = vpack.c.bf16 %v1233, %v1233
        %v1236 = vpack.c.bf16 %v1053, %v1053
        %v1237 = vpack.c.bf16 %v1105, %v1105
        %v1239 = vsel %vm1211, %v1234, 0
        %vm1241 = vcmask 1043456
        %v1243 = vsel %vm1241, %v1236, 0
        %1245 = vmatprep.subr.bf16.mxu0 0
        %1246 = vmatpush1.bf16.msra.mxu0 0
        %1247 = vmatprep.subr.bf16.mxu0 0
        %1248 = vmatpush1.bf16.msra.mxu0 0
        %1249 = vmatprep.subr.bf16.mxu0 0
        %1250 = vmatpush1.bf16.msra.mxu0 0
        %1251 = vmatprep.subr.bf16.mxu0 0
        %1252 = vmatpush1.bf16.msra.mxu0 0
        %1253 = vmatprep.subr.bf16.mxu0 0
        %1254 = vmatpush1.bf16.msra.mxu0 0
        %1255 = vmatprep.subr.bf16.mxu0 0
        %1256 = vmatpush1.bf16.msra.mxu0 0
        %1257 = vmatprep.subr.bf16.mxu0 0
        %1258 = vmatpush1.bf16.msra.mxu0 0
        %1259 = vmatprep.subr.bf16.mxu0 0
        %1260 = vmatpush1.bf16.msra.mxu0 %v1243
        %1261 = vmatprep.subr.bf16.mxu0 0
        %1262 = vmatpush2.bf16.msra.mxu0 0
        %1263 = vmatprep.subr.bf16.mxu0 0
        %1264 = vmatpush2.bf16.msra.mxu0 0
        %1265 = vmatprep.subr.bf16.mxu0 0
        %1266 = vmatpush2.bf16.msra.mxu0 0
        %1267 = vmatprep.subr.bf16.mxu0 0
        %1268 = vmatpush2.bf16.msra.mxu0 0
        %1269 = vmatprep.subr.bf16.mxu0 0
        %1270 = vmatpush2.bf16.msra.mxu0 0
        %1271 = vmatprep.subr.bf16.mxu0 0
        %1272 = vmatpush2.bf16.msra.mxu0 0
        %1273 = vmatprep.subr.bf16.mxu0 0
        %1274 = vmatpush2.bf16.msra.mxu0 0
        %1275 = vmatprep.subr.bf16.mxu0 0
        %1276 = vmatpush2.bf16.msra.mxu0 0
        %1277 = vmatprep.mubr.bf16.mxu0 0
        %1278 = vmatmul.mubr.bf16.gmra.mxu0 %v1239
        %v1279 = vpop.f32.mrf.mxu0
        %v1280 = vadd.f32 0.0, %v1279
        %v1281 = vpop.f32.mrf.mxu0
        %v1282 = vpop.f32.mrf.mxu0
        %v1283 = vpop.f32.mrf.mxu0
        %1284 = vdwg.mxu0
        %v1286 = vsel %vm1211, %v1235, 0
        %v1289 = vsel %vm1241, %v1237, 0
        %1291 = vmatprep.subr.bf16.mxu0 0
        %1292 = vmatpush1.bf16.msra.mxu0 0
        %1293 = vmatprep.subr.bf16.mxu0 0
        %1294 = vmatpush1.bf16.msra.mxu0 0
        %1295 = vmatprep.subr.bf16.mxu0 0
        %1296 = vmatpush1.bf16.msra.mxu0 0
        %1297 = vmatprep.subr.bf16.mxu0 0
        %1298 = vmatpush1.bf16.msra.mxu0 0
        %1299 = vmatprep.subr.bf16.mxu0 0
        %1300 = vmatpush1.bf16.msra.mxu0 0
        %1301 = vmatprep.subr.bf16.mxu0 0
        %1302 = vmatpush1.bf16.msra.mxu0 0
        %1303 = vmatprep.subr.bf16.mxu0 0
        %1304 = vmatpush1.bf16.msra.mxu0 0
        %1305 = vmatprep.subr.bf16.mxu0 0
        %1306 = vmatpush1.bf16.msra.mxu0 %v1289
        %1307 = vmatprep.subr.bf16.mxu0 0
        %1308 = vmatpush2.bf16.msra.mxu0 0
        %1309 = vmatprep.subr.bf16.mxu0 0
        %1310 = vmatpush2.bf16.msra.mxu0 0
        %1311 = vmatprep.subr.bf16.mxu0 0
        %1312 = vmatpush2.bf16.msra.mxu0 0
        %1313 = vmatprep.subr.bf16.mxu0 0
        %1314 = vmatpush2.bf16.msra.mxu0 0
        %1315 = vmatprep.subr.bf16.mxu0 0
        %1316 = vmatpush2.bf16.msra.mxu0 0
        %1317 = vmatprep.subr.bf16.mxu0 0
        %1318 = vmatpush2.bf16.msra.mxu0 0
        %1319 = vmatprep.subr.bf16.mxu0 0
        %1320 = vmatpush2.bf16.msra.mxu0 0
        %1321 = vmatprep.subr.bf16.mxu0 0
        %1322 = vmatpush2.bf16.msra.mxu0 0
        %1323 = vmatprep.mubr.bf16.mxu0 0
        %1324 = vmatmul.mubr.bf16.gmra.mxu0 %v1286
        %v1325 = vpop.f32.mrf.mxu0
        %v1326 = vadd.f32 0.0, %v1325
        %v1327 = vpop.f32.mrf.mxu0
        %v1328 = vpop.f32.mrf.mxu0
        %v1329 = vpop.f32.mrf.mxu0
        %1330 = vdwg.mxu0
        %v1331 = vpack.c.bf16 %v1280, %v1280
        %v1332 = vpack.c.bf16 %v1326, %v1326
        %v1333 = vld [vmem:[%s9] sm:$0xf]
        %v1334 = vld [vmem:[%s9 + $0x4] sm:$0xf]
        %v1335 = vld [vmem:[%s9 + $0x8] sm:$0xf]
        %v1336 = vld [vmem:[%s9 + $0xc] sm:$0xf]
        %v1339 = vunpack.c.l.b16 %v1333
        %v1340 = vunpack.c.l.b16 %v1334
        %v1341 = vpack.c.b16 %v1340, %v1339
        %v1344 = vsel %vm1114, %v1331, 0
        %1346 = vmatprep.subr.bf16.mxu0 0
        %1347 = vmatpush1.bf16.msra.mxu0 0
        %1348 = vmatprep.subr.bf16.mxu0 0
        %1349 = vmatpush1.bf16.msra.mxu0 0
        %1350 = vmatprep.subr.bf16.mxu0 0
        %1351 = vmatpush1.bf16.msra.mxu0 0
        %1352 = vmatprep.subr.bf16.mxu0 0
        %1353 = vmatpush1.bf16.msra.mxu0 0
        %1354 = vmatprep.subr.bf16.mxu0 0
        %1355 = vmatpush1.bf16.msra.mxu0 0
        %1356 = vmatprep.subr.bf16.mxu0 0
        %1357 = vmatpush1.bf16.msra.mxu0 0
        %1358 = vmatprep.subr.bf16.mxu0 0
        %1359 = vmatpush1.bf16.msra.mxu0 0
        %1360 = vmatprep.subr.bf16.mxu0 0
        %1361 = vmatpush1.bf16.msra.mxu0 %v1341
        %1362 = vmatprep.subr.bf16.mxu0 0
        %1363 = vmatpush2.bf16.msra.mxu0 0
        %1364 = vmatprep.subr.bf16.mxu0 0
        %1365 = vmatpush2.bf16.msra.mxu0 0
        %1366 = vmatprep.subr.bf16.mxu0 0
        %1367 = vmatpush2.bf16.msra.mxu0 0
        %1368 = vmatprep.subr.bf16.mxu0 0
        %1369 = vmatpush2.bf16.msra.mxu0 0
        %1370 = vmatprep.subr.bf16.mxu0 0
        %1371 = vmatpush2.bf16.msra.mxu0 0
        %1372 = vmatprep.subr.bf16.mxu0 0
        %1373 = vmatpush2.bf16.msra.mxu0 0
        %1374 = vmatprep.subr.bf16.mxu0 0
        %1375 = vmatpush2.bf16.msra.mxu0 0
        %1376 = vmatprep.subr.bf16.mxu0 0
        %1377 = vmatpush2.bf16.msra.mxu0 0
        %1378 = vmatprep.mubr.bf16.mxu0 0
        %1379 = vmatmul.mubr.bf16.gmra.mxu0 %v1344
        %v1380 = vpop.f32.mrf.mxu0
        %v1381 = vadd.f32 0.0, %v1380
        %v1382 = vpop.f32.mrf.mxu0
        %v1383 = vpop.f32.mrf.mxu0
        %v1384 = vpop.f32.mrf.mxu0
        %1385 = vdwg.mxu0
        %v1388 = vunpack.c.l.b16 %v1335
        %v1389 = vunpack.c.l.b16 %v1336
        %v1390 = vpack.c.b16 %v1389, %v1388
        %v1393 = vsel %vm1114, %v1332, 0
        %1395 = vmatprep.subr.bf16.mxu0 0
        %1396 = vmatpush1.bf16.msra.mxu0 0
        %1397 = vmatprep.subr.bf16.mxu0 0
        %1398 = vmatpush1.bf16.msra.mxu0 0
        %1399 = vmatprep.subr.bf16.mxu0 0
        %1400 = vmatpush1.bf16.msra.mxu0 0
        %1401 = vmatprep.subr.bf16.mxu0 0
        %1402 = vmatpush1.bf16.msra.mxu0 0
        %1403 = vmatprep.subr.bf16.mxu0 0
        %1404 = vmatpush1.bf16.msra.mxu0 0
        %1405 = vmatprep.subr.bf16.mxu0 0
        %1406 = vmatpush1.bf16.msra.mxu0 0
        %1407 = vmatprep.subr.bf16.mxu0 0
        %1408 = vmatpush1.bf16.msra.mxu0 0
        %1409 = vmatprep.subr.bf16.mxu0 0
        %1410 = vmatpush1.bf16.msra.mxu0 %v1390
        %1411 = vmatprep.subr.bf16.mxu0 0
        %1412 = vmatpush2.bf16.msra.mxu0 0
        %1413 = vmatprep.subr.bf16.mxu0 0
        %1414 = vmatpush2.bf16.msra.mxu0 0
        %1415 = vmatprep.subr.bf16.mxu0 0
        %1416 = vmatpush2.bf16.msra.mxu0 0
        %1417 = vmatprep.subr.bf16.mxu0 0
        %1418 = vmatpush2.bf16.msra.mxu0 0
        %1419 = vmatprep.subr.bf16.mxu0 0
        %1420 = vmatpush2.bf16.msra.mxu0 0
        %1421 = vmatprep.subr.bf16.mxu0 0
        %1422 = vmatpush2.bf16.msra.mxu0 0
        %1423 = vmatprep.subr.bf16.mxu0 0
        %1424 = vmatpush2.bf16.msra.mxu0 0
        %1425 = vmatprep.subr.bf16.mxu0 0
        %1426 = vmatpush2.bf16.msra.mxu0 0
        %1427 = vmatprep.mubr.bf16.mxu0 0
        %1428 = vmatmul.mubr.bf16.gmra.mxu0 %v1393
        %v1429 = vpop.f32.mrf.mxu0
        %v1430 = vadd.f32 0.0, %v1429
        %v1431 = vpop.f32.mrf.mxu0
        %v1432 = vpop.f32.mrf.mxu0
        %v1433 = vpop.f32.mrf.mxu0
        %1434 = vdwg.mxu0
        %v1435 = vadd.f32 %v1381, %v1430
        %v1436 = vadd.f32 %v712, %v1435
        %v1437 = vld [vmem:[%s20] sm:$0x1]
        %v1438 = vlaneseq
        %v1439 = vshrl.u32 %v1438, 7
        %v1440 = vsub.s32 0, %v1439
        %v1441 = vrot.slane %v1437, %v1440
        %v1442 = vadd.f32 %v1436, %v1441
        %v1443 = vld [vmem:[%s20 + $0x1] sm:$0x1]
        %v1444 = vld [vmem:[%s20 + $0x2] sm:$0x1]
        %v1445 = vsel %vm759, %v1442, 0.0
        %1446 = vadd.xlane.f32.xlu0 %v1445
        %v1447 = vpop.xlane.xlu0 %1446
        %v1448 = vrcp.pop 32.0
        %v1449 = vmul.f32 %v1447, %v1448
        %v1450 = vsub.f32 %v1442, %v1449
        %v1451 = vmul.f32 %v1450, %v1450
        %v1452 = vsel %vm759, %v1451, 0.0
        %1453 = vadd.xlane.f32.xlu0 %v1452
        %v1454 = vpop.xlane.xlu0 %1453
        %v1455 = vmul.f32 %v1454, %v1448
        %v1456 = vadd.f32 %v1455, 1e-05
        %v1457 = vrsqrt.pop %v1456
        %v1458 = vmul.f32 %v1450, %v1457
        %v1459 = vlaneseq
        %v1460 = vshrl.u32 %v1459, 7
        %v1461 = vsub.s32 0, %v1460
        %v1462 = vrot.slane %v1443, %v1461
        %v1463 = vmul.f32 %v1458, %v1462
        %v1464 = vlaneseq
        %v1465 = vshrl.u32 %v1464, 7
        %v1466 = vsub.s32 0, %v1465
        %v1467 = vrot.slane %v1444, %v1466
        %v1468 = vadd.f32 %v1463, %v1467
        %v1469 = vpack.c.bf16 %v1468, %v1468
        %v1470 = vld [vmem:[%s10] sm:$0xf]
        %v1471 = vld [vmem:[%s10 + $0x4] sm:$0xf]
        %v1472 = vld [vmem:[%s10 + $0x8] sm:$0xf]
        %v1473 = vld [vmem:[%s10 + $0xc] sm:$0xf]
        %v1474 = vld [vmem:[%s10 + $0x10] sm:$0xf]
        %v1475 = vld [vmem:[%s10 + $0x14] sm:$0xf]
        %v1476 = vld [vmem:[%s10 + $0x18] sm:$0xf]
        %v1477 = vld [vmem:[%s10 + $0x1c] sm:$0xf]
        %v1478 = vld [vmem:[%s11] sm:$0x1]
        %v1479 = vld [vmem:[%s11 + $0x1] sm:$0x1]
        %v1482 = vlaneseq
        %v1483 = vshrl.u32 %v1482, 7
        %v1484 = vsub.s32 0, %v1483
        %v1485 = vrot.slane %v1478, %v1484
        %v1486 = vlaneseq
        %v1487 = vshrl.u32 %v1486, 7
        %v1488 = vsub.s32 0, %v1487
        %v1489 = vrot.slane %v1479, %v1488
        %v1496 = vunpack.c.l.b16 %v1470
        %v1497 = vunpack.c.l.b16 %v1471
        %v1498 = vunpack.c.l.b16 %v1472
        %v1499 = vunpack.c.l.b16 %v1473
        %v1500 = vpack.c.b16 %v1497, %v1496
        %v1501 = vpack.c.b16 %v1499, %v1498
        %v1505 = vsel %vm759, %v1469, 0
        %1507 = vmatprep.subr.bf16.mxu0 0
        %1508 = vmatpush1.bf16.msra.mxu0 0
        %1509 = vmatprep.subr.bf16.mxu0 0
        %1510 = vmatpush1.bf16.msra.mxu0 0
        %1511 = vmatprep.subr.bf16.mxu0 0
        %1512 = vmatpush1.bf16.msra.mxu0 0
        %1513 = vmatprep.subr.bf16.mxu0 0
        %1514 = vmatpush1.bf16.msra.mxu0 0
        %1515 = vmatprep.subr.bf16.mxu0 0
        %1516 = vmatpush1.bf16.msra.mxu0 0
        %1517 = vmatprep.subr.bf16.mxu0 0
        %1518 = vmatpush1.bf16.msra.mxu0 0
        %1519 = vmatprep.subr.bf16.mxu0 0
        %1520 = vmatpush1.bf16.msra.mxu0 %v1501
        %1521 = vmatprep.subr.bf16.mxu0 0
        %1522 = vmatpush1.bf16.msra.mxu0 %v1500
        %1523 = vmatprep.subr.bf16.mxu0 0
        %1524 = vmatpush2.bf16.msra.mxu0 0
        %1525 = vmatprep.subr.bf16.mxu0 0
        %1526 = vmatpush2.bf16.msra.mxu0 0
        %1527 = vmatprep.subr.bf16.mxu0 0
        %1528 = vmatpush2.bf16.msra.mxu0 0
        %1529 = vmatprep.subr.bf16.mxu0 0
        %1530 = vmatpush2.bf16.msra.mxu0 0
        %1531 = vmatprep.subr.bf16.mxu0 0
        %1532 = vmatpush2.bf16.msra.mxu0 0
        %1533 = vmatprep.subr.bf16.mxu0 0
        %1534 = vmatpush2.bf16.msra.mxu0 0
        %1535 = vmatprep.subr.bf16.mxu0 0
        %1536 = vmatpush2.bf16.msra.mxu0 0
        %1537 = vmatprep.subr.bf16.mxu0 0
        %1538 = vmatpush2.bf16.msra.mxu0 0
        %1539 = vmatprep.mubr.bf16.mxu0 0
        %1540 = vmatmul.mubr.bf16.gmra.mxu0 %v1505
        %v1541 = vpop.f32.mrf.mxu0
        %v1542 = vadd.f32 %v1485, %v1541
        %v1543 = vpop.f32.mrf.mxu0
        %v1544 = vpop.f32.mrf.mxu0
        %v1545 = vpop.f32.mrf.mxu0
        %1546 = vdwg.mxu0
        %v1551 = vunpack.c.l.b16 %v1474
        %v1552 = vunpack.c.l.b16 %v1475
        %v1553 = vunpack.c.l.b16 %v1476
        %v1554 = vunpack.c.l.b16 %v1477
        %v1555 = vpack.c.b16 %v1552, %v1551
        %v1556 = vpack.c.b16 %v1554, %v1553
        %1559 = vmatprep.subr.bf16.mxu0 0
        %1560 = vmatpush1.bf16.msra.mxu0 0
        %1561 = vmatprep.subr.bf16.mxu0 0
        %1562 = vmatpush1.bf16.msra.mxu0 0
        %1563 = vmatprep.subr.bf16.mxu0 0
        %1564 = vmatpush1.bf16.msra.mxu0 0
        %1565 = vmatprep.subr.bf16.mxu0 0
        %1566 = vmatpush1.bf16.msra.mxu0 0
        %1567 = vmatprep.subr.bf16.mxu0 0
        %1568 = vmatpush1.bf16.msra.mxu0 0
        %1569 = vmatprep.subr.bf16.mxu0 0
        %1570 = vmatpush1.bf16.msra.mxu0 0
        %1571 = vmatprep.subr.bf16.mxu0 0
        %1572 = vmatpush1.bf16.msra.mxu0 %v1556
        %1573 = vmatprep.subr.bf16.mxu0 0
        %1574 = vmatpush1.bf16.msra.mxu0 %v1555
        %1575 = vmatprep.subr.bf16.mxu0 0
        %1576 = vmatpush2.bf16.msra.mxu0 0
        %1577 = vmatprep.subr.bf16.mxu0 0
        %1578 = vmatpush2.bf16.msra.mxu0 0
        %1579 = vmatprep.subr.bf16.mxu0 0
        %1580 = vmatpush2.bf16.msra.mxu0 0
        %1581 = vmatprep.subr.bf16.mxu0 0
        %1582 = vmatpush2.bf16.msra.mxu0 0
        %1583 = vmatprep.subr.bf16.mxu0 0
        %1584 = vmatpush2.bf16.msra.mxu0 0
        %1585 = vmatprep.subr.bf16.mxu0 0
        %1586 = vmatpush2.bf16.msra.mxu0 0
        %1587 = vmatprep.subr.bf16.mxu0 0
        %1588 = vmatpush2.bf16.msra.mxu0 0
        %1589 = vmatprep.subr.bf16.mxu0 0
        %1590 = vmatpush2.bf16.msra.mxu0 0
        %1591 = vmatprep.mubr.bf16.mxu0 0
        %1592 = vmatmul.mubr.bf16.gmra.mxu0 %v1505
        %v1593 = vpop.f32.mrf.mxu0
        %v1594 = vadd.f32 %v1489, %v1593
        %v1595 = vpop.f32.mrf.mxu0
        %v1596 = vpop.f32.mrf.mxu0
        %v1597 = vpop.f32.mrf.mxu0
        %1598 = vdwg.mxu0
        %v1599 = vld [vmem:[%s12] sm:$0xf]
        %v1600 = vld [vmem:[%s12 + $0x4] sm:$0xf]
        %v1601 = vld [vmem:[%s12 + $0x8] sm:$0xf]
        %v1602 = vld [vmem:[%s12 + $0xc] sm:$0xf]
        %v1603 = vld [vmem:[%s12 + $0x10] sm:$0xf]
        %v1604 = vld [vmem:[%s12 + $0x14] sm:$0xf]
        %v1605 = vld [vmem:[%s12 + $0x18] sm:$0xf]
        %v1606 = vld [vmem:[%s12 + $0x1c] sm:$0xf]
        %v1607 = vld [vmem:[%s13] sm:$0x1]
        %v1608 = vld [vmem:[%s13 + $0x1] sm:$0x1]
        %v1611 = vlaneseq
        %v1612 = vshrl.u32 %v1611, 7
        %v1613 = vsub.s32 0, %v1612
        %v1614 = vrot.slane %v1607, %v1613
        %v1615 = vlaneseq
        %v1616 = vshrl.u32 %v1615, 7
        %v1617 = vsub.s32 0, %v1616
        %v1618 = vrot.slane %v1608, %v1617
        %v1625 = vunpack.c.l.b16 %v1599
        %v1626 = vunpack.c.l.b16 %v1600
        %v1627 = vunpack.c.l.b16 %v1601
        %v1628 = vunpack.c.l.b16 %v1602
        %v1629 = vpack.c.b16 %v1626, %v1625
        %v1630 = vpack.c.b16 %v1628, %v1627
        %v1634 = vsel %vm759, %v714, 0
        %1636 = vmatprep.subr.bf16.mxu0 0
        %1637 = vmatpush1.bf16.msra.mxu0 0
        %1638 = vmatprep.subr.bf16.mxu0 0
        %1639 = vmatpush1.bf16.msra.mxu0 0
        %1640 = vmatprep.subr.bf16.mxu0 0
        %1641 = vmatpush1.bf16.msra.mxu0 0
        %1642 = vmatprep.subr.bf16.mxu0 0
        %1643 = vmatpush1.bf16.msra.mxu0 0
        %1644 = vmatprep.subr.bf16.mxu0 0
        %1645 = vmatpush1.bf16.msra.mxu0 0
        %1646 = vmatprep.subr.bf16.mxu0 0
        %1647 = vmatpush1.bf16.msra.mxu0 0
        %1648 = vmatprep.subr.bf16.mxu0 0
        %1649 = vmatpush1.bf16.msra.mxu0 %v1630
        %1650 = vmatprep.subr.bf16.mxu0 0
        %1651 = vmatpush1.bf16.msra.mxu0 %v1629
        %1652 = vmatprep.subr.bf16.mxu0 0
        %1653 = vmatpush2.bf16.msra.mxu0 0
        %1654 = vmatprep.subr.bf16.mxu0 0
        %1655 = vmatpush2.bf16.msra.mxu0 0
        %1656 = vmatprep.subr.bf16.mxu0 0
        %1657 = vmatpush2.bf16.msra.mxu0 0
        %1658 = vmatprep.subr.bf16.mxu0 0
        %1659 = vmatpush2.bf16.msra.mxu0 0
        %1660 = vmatprep.subr.bf16.mxu0 0
        %1661 = vmatpush2.bf16.msra.mxu0 0
        %1662 = vmatprep.subr.bf16.mxu0 0
        %1663 = vmatpush2.bf16.msra.mxu0 0
        %1664 = vmatprep.subr.bf16.mxu0 0
        %1665 = vmatpush2.bf16.msra.mxu0 0
        %1666 = vmatprep.subr.bf16.mxu0 0
        %1667 = vmatpush2.bf16.msra.mxu0 0
        %1668 = vmatprep.mubr.bf16.mxu0 0
        %1669 = vmatmul.mubr.bf16.gmra.mxu0 %v1634
        %v1670 = vpop.f32.mrf.mxu0
        %v1671 = vadd.f32 %v1614, %v1670
        %v1672 = vpop.f32.mrf.mxu0
        %v1673 = vpop.f32.mrf.mxu0
        %v1674 = vpop.f32.mrf.mxu0
        %1675 = vdwg.mxu0
        %v1680 = vunpack.c.l.b16 %v1603
        %v1681 = vunpack.c.l.b16 %v1604
        %v1682 = vunpack.c.l.b16 %v1605
        %v1683 = vunpack.c.l.b16 %v1606
        %v1684 = vpack.c.b16 %v1681, %v1680
        %v1685 = vpack.c.b16 %v1683, %v1682
        %1688 = vmatprep.subr.bf16.mxu0 0
        %1689 = vmatpush1.bf16.msra.mxu0 0
        %1690 = vmatprep.subr.bf16.mxu0 0
        %1691 = vmatpush1.bf16.msra.mxu0 0
        %1692 = vmatprep.subr.bf16.mxu0 0
        %1693 = vmatpush1.bf16.msra.mxu0 0
        %1694 = vmatprep.subr.bf16.mxu0 0
        %1695 = vmatpush1.bf16.msra.mxu0 0
        %1696 = vmatprep.subr.bf16.mxu0 0
        %1697 = vmatpush1.bf16.msra.mxu0 0
        %1698 = vmatprep.subr.bf16.mxu0 0
        %1699 = vmatpush1.bf16.msra.mxu0 0
        %1700 = vmatprep.subr.bf16.mxu0 0
        %1701 = vmatpush1.bf16.msra.mxu0 %v1685
        %1702 = vmatprep.subr.bf16.mxu0 0
        %1703 = vmatpush1.bf16.msra.mxu0 %v1684
        %1704 = vmatprep.subr.bf16.mxu0 0
        %1705 = vmatpush2.bf16.msra.mxu0 0
        %1706 = vmatprep.subr.bf16.mxu0 0
        %1707 = vmatpush2.bf16.msra.mxu0 0
        %1708 = vmatprep.subr.bf16.mxu0 0
        %1709 = vmatpush2.bf16.msra.mxu0 0
        %1710 = vmatprep.subr.bf16.mxu0 0
        %1711 = vmatpush2.bf16.msra.mxu0 0
        %1712 = vmatprep.subr.bf16.mxu0 0
        %1713 = vmatpush2.bf16.msra.mxu0 0
        %1714 = vmatprep.subr.bf16.mxu0 0
        %1715 = vmatpush2.bf16.msra.mxu0 0
        %1716 = vmatprep.subr.bf16.mxu0 0
        %1717 = vmatpush2.bf16.msra.mxu0 0
        %1718 = vmatprep.subr.bf16.mxu0 0
        %1719 = vmatpush2.bf16.msra.mxu0 0
        %1720 = vmatprep.mubr.bf16.mxu0 0
        %1721 = vmatmul.mubr.bf16.gmra.mxu0 %v1634
        %v1722 = vpop.f32.mrf.mxu0
        %v1723 = vadd.f32 %v1618, %v1722
        %v1724 = vpop.f32.mrf.mxu0
        %v1725 = vpop.f32.mrf.mxu0
        %v1726 = vpop.f32.mrf.mxu0
        %1727 = vdwg.mxu0
        %v1728 = vld [vmem:[%s14] sm:$0xf]
        %v1729 = vld [vmem:[%s14 + $0x4] sm:$0xf]
        %v1730 = vld [vmem:[%s14 + $0x8] sm:$0xf]
        %v1731 = vld [vmem:[%s14 + $0xc] sm:$0xf]
        %v1732 = vld [vmem:[%s14 + $0x10] sm:$0xf]
        %v1733 = vld [vmem:[%s14 + $0x14] sm:$0xf]
        %v1734 = vld [vmem:[%s14 + $0x18] sm:$0xf]
        %v1735 = vld [vmem:[%s14 + $0x1c] sm:$0xf]
        %v1736 = vld [vmem:[%s15] sm:$0x1]
        %v1737 = vld [vmem:[%s15 + $0x1] sm:$0x1]
        %v1740 = vlaneseq
        %v1741 = vshrl.u32 %v1740, 7
        %v1742 = vsub.s32 0, %v1741
        %v1743 = vrot.slane %v1736, %v1742
        %v1744 = vlaneseq
        %v1745 = vshrl.u32 %v1744, 7
        %v1746 = vsub.s32 0, %v1745
        %v1747 = vrot.slane %v1737, %v1746
        %v1754 = vunpack.c.l.b16 %v1728
        %v1755 = vunpack.c.l.b16 %v1729
        %v1756 = vunpack.c.l.b16 %v1730
        %v1757 = vunpack.c.l.b16 %v1731
        %v1758 = vpack.c.b16 %v1755, %v1754
        %v1759 = vpack.c.b16 %v1757, %v1756
        %1762 = vmatprep.subr.bf16.mxu0 0
        %1763 = vmatpush1.bf16.msra.mxu0 0
        %1764 = vmatprep.subr.bf16.mxu0 0
        %1765 = vmatpush1.bf16.msra.mxu0 0
        %1766 = vmatprep.subr.bf16.mxu0 0
        %1767 = vmatpush1.bf16.msra.mxu0 0
        %1768 = vmatprep.subr.bf16.mxu0 0
        %1769 = vmatpush1.bf16.msra.mxu0 0
        %1770 = vmatprep.subr.bf16.mxu0 0
        %1771 = vmatpush1.bf16.msra.mxu0 0
        %1772 = vmatprep.subr.bf16.mxu0 0
        %1773 = vmatpush1.bf16.msra.mxu0 0
        %1774 = vmatprep.subr.bf16.mxu0 0
        %1775 = vmatpush1.bf16.msra.mxu0 %v1759
        %1776 = vmatprep.subr.bf16.mxu0 0
        %1777 = vmatpush1.bf16.msra.mxu0 %v1758
        %1778 = vmatprep.subr.bf16.mxu0 0
        %1779 = vmatpush2.bf16.msra.mxu0 0
        %1780 = vmatprep.subr.bf16.mxu0 0
        %1781 = vmatpush2.bf16.msra.mxu0 0
        %1782 = vmatprep.subr.bf16.mxu0 0
        %1783 = vmatpush2.bf16.msra.mxu0 0
        %1784 = vmatprep.subr.bf16.mxu0 0
        %1785 = vmatpush2.bf16.msra.mxu0 0
        %1786 = vmatprep.subr.bf16.mxu0 0
        %1787 = vmatpush2.bf16.msra.mxu0 0
        %1788 = vmatprep.subr.bf16.mxu0 0
        %1789 = vmatpush2.bf16.msra.mxu0 0
        %1790 = vmatprep.subr.bf16.mxu0 0
        %1791 = vmatpush2.bf16.msra.mxu0 0
        %1792 = vmatprep.subr.bf16.mxu0 0
        %1793 = vmatpush2.bf16.msra.mxu0 0
        %1794 = vmatprep.mubr.bf16.mxu0 0
        %1795 = vmatmul.mubr.bf16.gmra.mxu0 %v1634
        %v1796 = vpop.f32.mrf.mxu0
        %v1797 = vadd.f32 %v1743, %v1796
        %v1798 = vpop.f32.mrf.mxu0
        %v1799 = vpop.f32.mrf.mxu0
        %v1800 = vpop.f32.mrf.mxu0
        %1801 = vdwg.mxu0
        %v1806 = vunpack.c.l.b16 %v1732
        %v1807 = vunpack.c.l.b16 %v1733
        %v1808 = vunpack.c.l.b16 %v1734
        %v1809 = vunpack.c.l.b16 %v1735
        %v1810 = vpack.c.b16 %v1807, %v1806
        %v1811 = vpack.c.b16 %v1809, %v1808
        %1814 = vmatprep.subr.bf16.mxu0 0
        %1815 = vmatpush1.bf16.msra.mxu0 0
        %1816 = vmatprep.subr.bf16.mxu0 0
        %1817 = vmatpush1.bf16.msra.mxu0 0
        %1818 = vmatprep.subr.bf16.mxu0 0
        %1819 = vmatpush1.bf16.msra.mxu0 0
        %1820 = vmatprep.subr.bf16.mxu0 0
        %1821 = vmatpush1.bf16.msra.mxu0 0
        %1822 = vmatprep.subr.bf16.mxu0 0
        %1823 = vmatpush1.bf16.msra.mxu0 0
        %1824 = vmatprep.subr.bf16.mxu0 0
        %1825 = vmatpush1.bf16.msra.mxu0 0
        %1826 = vmatprep.subr.bf16.mxu0 0
        %1827 = vmatpush1.bf16.msra.mxu0 %v1811
        %1828 = vmatprep.subr.bf16.mxu0 0
        %1829 = vmatpush1.bf16.msra.mxu0 %v1810
        %1830 = vmatprep.subr.bf16.mxu0 0
        %1831 = vmatpush2.bf16.msra.mxu0 0
        %1832 = vmatprep.subr.bf16.mxu0 0
        %1833 = vmatpush2.bf16.msra.mxu0 0
        %1834 = vmatprep.subr.bf16.mxu0 0
        %1835 = vmatpush2.bf16.msra.mxu0 0
        %1836 = vmatprep.subr.bf16.mxu0 0
        %1837 = vmatpush2.bf16.msra.mxu0 0
        %1838 = vmatprep.subr.bf16.mxu0 0
        %1839 = vmatpush2.bf16.msra.mxu0 0
        %1840 = vmatprep.subr.bf16.mxu0 0
        %1841 = vmatpush2.bf16.msra.mxu0 0
        %1842 = vmatprep.subr.bf16.mxu0 0
        %1843 = vmatpush2.bf16.msra.mxu0 0
        %1844 = vmatprep.subr.bf16.mxu0 0
        %1845 = vmatpush2.bf16.msra.mxu0 0
        %1846 = vmatprep.mubr.bf16.mxu0 0
        %1847 = vmatmul.mubr.bf16.gmra.mxu0 %v1634
        %v1848 = vpop.f32.mrf.mxu0
        %v1849 = vadd.f32 %v1747, %v1848
        %v1850 = vpop.f32.mrf.mxu0
        %v1851 = vpop.f32.mrf.mxu0
        %v1852 = vpop.f32.mrf.mxu0
        %1853 = vdwg.mxu0
        %v1854 = vpack.c.bf16 %v1542, %v1542
        %v1855 = vpack.c.bf16 %v1594, %v1594
        %v1856 = vpack.c.bf16 %v1671, %v1671
        %v1857 = vpack.c.bf16 %v1723, %v1723
        %v1859 = vsel %vm1114, %v1854, 0
        %v1862 = vsel %vm1114, %v1856, 0
        %1864 = vmatprep.subr.bf16.mxu0 0
        %1865 = vmatpush1.bf16.xpose.msra.mxu0 0
        %1866 = vmatprep.subr.bf16.mxu0 0
        %1867 = vmatpush1.bf16.xpose.msra.mxu0 0
        %1868 = vmatprep.subr.bf16.mxu0 0
        %1869 = vmatpush1.bf16.xpose.msra.mxu0 0
        %1870 = vmatprep.subr.bf16.mxu0 0
        %1871 = vmatpush1.bf16.xpose.msra.mxu0 0
        %1872 = vmatprep.subr.bf16.mxu0 0
        %1873 = vmatpush1.bf16.xpose.msra.mxu0 0
        %1874 = vmatprep.subr.bf16.mxu0 0
        %1875 = vmatpush1.bf16.xpose.msra.mxu0 0
        %1876 = vmatprep.subr.bf16.mxu0 0
        %1877 = vmatpush1.bf16.xpose.msra.mxu0 0
        %1878 = vmatprep.subr.bf16.mxu0 0
        %1879 = vmatpush1.bf16.xpose.msra.mxu0 %v1862
        %1880 = vmatprep.subr.bf16.mxu0 0
        %1881 = vmatpush2.bf16.xpose.msra.mxu0 0
        %1882 = vmatprep.subr.bf16.mxu0 0
        %1883 = vmatpush2.bf16.xpose.msra.mxu0 0
        %1884 = vmatprep.subr.bf16.mxu0 0
        %1885 = vmatpush2.bf16.xpose.msra.mxu0 0
        %1886 = vmatprep.subr.bf16.mxu0 0
        %1887 = vmatpush2.bf16.xpose.msra.mxu0 0
        %1888 = vmatprep.subr.bf16.mxu0 0
        %1889 = vmatpush2.bf16.xpose.msra.mxu0 0
        %1890 = vmatprep.subr.bf16.mxu0 0
        %1891 = vmatpush2.bf16.xpose.msra.mxu0 0
        %1892 = vmatprep.subr.bf16.mxu0 0
        %1893 = vmatpush2.bf16.xpose.msra.mxu0 0
        %1894 = vmatprep.subr.bf16.mxu0 0
        %1895 = vmatpush2.bf16.xpose.msra.mxu0 0
        %1896 = vmatprep.mubr.bf16.mxu0 0
        %1897 = vmatmul.mubr.bf16.gmra.mxu0 %v1859
        %v1898 = vpop.f32.mrf.mxu0
        %v1899 = vadd.f32 0.0, %v1898
        %v1900 = vpop.f32.mrf.mxu0
        %v1901 = vpop.f32.mrf.mxu0
        %v1902 = vpop.f32.mrf.mxu0
        %1903 = vdwg.mxu0
        %v1905 = vsel %vm1114, %v1855, 0
        %v1908 = vsel %vm1114, %v1857, 0
        %1910 = vmatprep.subr.bf16.mxu0 0
        %1911 = vmatpush1.bf16.xpose.msra.mxu0 0
        %1912 = vmatprep.subr.bf16.mxu0 0
        %1913 = vmatpush1.bf16.xpose.msra.mxu0 0
        %1914 = vmatprep.subr.bf16.mxu0 0
        %1915 = vmatpush1.bf16.xpose.msra.mxu0 0
        %1916 = vmatprep.subr.bf16.mxu0 0
        %1917 = vmatpush1.bf16.xpose.msra.mxu0 0
        %1918 = vmatprep.subr.bf16.mxu0 0
        %1919 = vmatpush1.bf16.xpose.msra.mxu0 0
        %1920 = vmatprep.subr.bf16.mxu0 0
        %1921 = vmatpush1.bf16.xpose.msra.mxu0 0
        %1922 = vmatprep.subr.bf16.mxu0 0
        %1923 = vmatpush1.bf16.xpose.msra.mxu0 0
        %1924 = vmatprep.subr.bf16.mxu0 0
        %1925 = vmatpush1.bf16.xpose.msra.mxu0 %v1908
        %1926 = vmatprep.subr.bf16.mxu0 0
        %1927 = vmatpush2.bf16.xpose.msra.mxu0 0
        %1928 = vmatprep.subr.bf16.mxu0 0
        %1929 = vmatpush2.bf16.xpose.msra.mxu0 0
        %1930 = vmatprep.subr.bf16.mxu0 0
        %1931 = vmatpush2.bf16.xpose.msra.mxu0 0
        %1932 = vmatprep.subr.bf16.mxu0 0
        %1933 = vmatpush2.bf16.xpose.msra.mxu0 0
        %1934 = vmatprep.subr.bf16.mxu0 0
        %1935 = vmatpush2.bf16.xpose.msra.mxu0 0
        %1936 = vmatprep.subr.bf16.mxu0 0
        %1937 = vmatpush2.bf16.xpose.msra.mxu0 0
        %1938 = vmatprep.subr.bf16.mxu0 0
        %1939 = vmatpush2.bf16.xpose.msra.mxu0 0
        %1940 = vmatprep.subr.bf16.mxu0 0
        %1941 = vmatpush2.bf16.xpose.msra.mxu0 0
        %1942 = vmatprep.mubr.bf16.mxu0 0
        %1943 = vmatmul.mubr.bf16.gmra.mxu0 %v1905
        %v1944 = vpop.f32.mrf.mxu0
        %v1945 = vadd.f32 0.0, %v1944
        %v1946 = vpop.f32.mrf.mxu0
        %v1947 = vpop.f32.mrf.mxu0
        %v1948 = vpop.f32.mrf.mxu0
        %1949 = vdwg.mxu0
        %v1950 = vsel %vm1211, %v1899, -inf
        %1951 = vmax.xlane.f32.xlu0 %v1950
        %v1952 = vpop.xlane.xlu0 %1951
        %v1953 = vsel %vm1211, %v1945, -inf
        %1954 = vmax.xlane.f32.xlu0 %v1953
        %v1955 = vpop.xlane.xlu0 %1954
        %v1956 = vsub.f32 %v1899, %v1952
        %v1957 = vsub.f32 %v1945, %v1955
        %v1958 = vmul.f32 %v1956, 1.442695
        %v1959 = vpow.pop %v1958
        %v1960 = vmul.f32 %v1957, 1.442695
        %v1961 = vpow.pop %v1960
        %v1962 = vsel %vm1211, %v1959, 0.0
        %1963 = vadd.xlane.f32.xlu0 %v1962
        %v1964 = vpop.xlane.xlu0 %1963
        %v1965 = vsel %vm1211, %v1961, 0.0
        %1966 = vadd.xlane.f32.xlu0 %v1965
        %v1967 = vpop.xlane.xlu0 %1966
        %v1968 = vrcp.pop %v1964
        %v1969 = vrcp.pop %v1967
        %v1970 = vmul.f32 %v1959, %v1968
        %v1971 = vmul.f32 %v1961, %v1969
        %v1972 = vpack.c.bf16 %v1970, %v1970
        %v1973 = vpack.c.bf16 %v1971, %v1971
        %v1974 = vpack.c.bf16 %v1797, %v1797
        %v1975 = vpack.c.bf16 %v1849, %v1849
        %v1977 = vsel %vm1211, %v1972, 0
        %v1980 = vsel %vm1241, %v1974, 0
        %1982 = vmatprep.subr.bf16.mxu0 0
        %1983 = vmatpush1.bf16.msra.mxu0 0
        %1984 = vmatprep.subr.bf16.mxu0 0
        %1985 = vmatpush1.bf16.msra.mxu0 0
        %1986 = vmatprep.subr.bf16.mxu0 0
        %1987 = vmatpush1.bf16.msra.mxu0 0
        %1988 = vmatprep.subr.bf16.mxu0 0
        %1989 = vmatpush1.bf16.msra.mxu0 0
        %1990 = vmatprep.subr.bf16.mxu0 0
        %1991 = vmatpush1.bf16.msra.mxu0 0
        %1992 = vmatprep.subr.bf16.mxu0 0
        %1993 = vmatpush1.bf16.msra.mxu0 0
        %1994 = vmatprep.subr.bf16.mxu0 0
        %1995 = vmatpush1.bf16.msra.mxu0 0
        %1996 = vmatprep.subr.bf16.mxu0 0
        %1997 = vmatpush1.bf16.msra.mxu0 %v1980
        %1998 = vmatprep.subr.bf16.mxu0 0
        %1999 = vmatpush2.bf16.msra.mxu0 0
        %2000 = vmatprep.subr.bf16.mxu0 0
        %2001 = vmatpush2.bf16.msra.mxu0 0
        %2002 = vmatprep.subr.bf16.mxu0 0
        %2003 = vmatpush2.bf16.msra.mxu0 0
        %2004 = vmatprep.subr.bf16.mxu0 0
        %2005 = vmatpush2.bf16.msra.mxu0 0
        %2006 = vmatprep.subr.bf16.mxu0 0
        %2007 = vmatpush2.bf16.msra.mxu0 0
        %2008 = vmatprep.subr.bf16.mxu0 0
        %2009 = vmatpush2.bf16.msra.mxu0 0
        %2010 = vmatprep.subr.bf16.mxu0 0
        %2011 = vmatpush2.bf16.msra.mxu0 0
        %2012 = vmatprep.subr.bf16.mxu0 0
        %2013 = vmatpush2.bf16.msra.mxu0 0
        %2014 = vmatprep.mubr.bf16.mxu0 0
        %2015 = vmatmul.mubr.bf16.gmra.mxu0 %v1977
        %v2016 = vpop.f32.mrf.mxu0
        %v2017 = vadd.f32 0.0, %v2016
        %v2018 = vpop.f32.mrf.mxu0
        %v2019 = vpop.f32.mrf.mxu0
        %v2020 = vpop.f32.mrf.mxu0
        %2021 = vdwg.mxu0
        %v2023 = vsel %vm1211, %v1973, 0
        %v2026 = vsel %vm1241, %v1975, 0
        %2028 = vmatprep.subr.bf16.mxu0 0
        %2029 = vmatpush1.bf16.msra.mxu0 0
        %2030 = vmatprep.subr.bf16.mxu0 0
        %2031 = vmatpush1.bf16.msra.mxu0 0
        %2032 = vmatprep.subr.bf16.mxu0 0
        %2033 = vmatpush1.bf16.msra.mxu0 0
        %2034 = vmatprep.subr.bf16.mxu0 0
        %2035 = vmatpush1.bf16.msra.mxu0 0
        %2036 = vmatprep.subr.bf16.mxu0 0
        %2037 = vmatpush1.bf16.msra.mxu0 0
        %2038 = vmatprep.subr.bf16.mxu0 0
        %2039 = vmatpush1.bf16.msra.mxu0 0
        %2040 = vmatprep.subr.bf16.mxu0 0
        %2041 = vmatpush1.bf16.msra.mxu0 0
        %2042 = vmatprep.subr.bf16.mxu0 0
        %2043 = vmatpush1.bf16.msra.mxu0 %v2026
        %2044 = vmatprep.subr.bf16.mxu0 0
        %2045 = vmatpush2.bf16.msra.mxu0 0
        %2046 = vmatprep.subr.bf16.mxu0 0
        %2047 = vmatpush2.bf16.msra.mxu0 0
        %2048 = vmatprep.subr.bf16.mxu0 0
        %2049 = vmatpush2.bf16.msra.mxu0 0
        %2050 = vmatprep.subr.bf16.mxu0 0
        %2051 = vmatpush2.bf16.msra.mxu0 0
        %2052 = vmatprep.subr.bf16.mxu0 0
        %2053 = vmatpush2.bf16.msra.mxu0 0
        %2054 = vmatprep.subr.bf16.mxu0 0
        %2055 = vmatpush2.bf16.msra.mxu0 0
        %2056 = vmatprep.subr.bf16.mxu0 0
        %2057 = vmatpush2.bf16.msra.mxu0 0
        %2058 = vmatprep.subr.bf16.mxu0 0
        %2059 = vmatpush2.bf16.msra.mxu0 0
        %2060 = vmatprep.mubr.bf16.mxu0 0
        %2061 = vmatmul.mubr.bf16.gmra.mxu0 %v2023
        %v2062 = vpop.f32.mrf.mxu0
        %v2063 = vadd.f32 0.0, %v2062
        %v2064 = vpop.f32.mrf.mxu0
        %v2065 = vpop.f32.mrf.mxu0
        %v2066 = vpop.f32.mrf.mxu0
        %2067 = vdwg.mxu0
        %v2068 = vpack.c.bf16 %v2017, %v2017
        %v2069 = vpack.c.bf16 %v2063, %v2063
        %v2070 = vld [vmem:[%s16] sm:$0xf]
        %v2071 = vld [vmem:[%s16 + $0x4] sm:$0xf]
        %v2072 = vld [vmem:[%s16 + $0x8] sm:$0xf]
        %v2073 = vld [vmem:[%s16 + $0xc] sm:$0xf]
        %v2076 = vunpack.c.l.b16 %v2070
        %v2077 = vunpack.c.l.b16 %v2071
        %v2078 = vpack.c.b16 %v2077, %v2076
        %v2081 = vsel %vm1114, %v2068, 0
        %2083 = vmatprep.subr.bf16.mxu0 0
        %2084 = vmatpush1.bf16.msra.mxu0 0
        %2085 = vmatprep.subr.bf16.mxu0 0
        %2086 = vmatpush1.bf16.msra.mxu0 0
        %2087 = vmatprep.subr.bf16.mxu0 0
        %2088 = vmatpush1.bf16.msra.mxu0 0
        %2089 = vmatprep.subr.bf16.mxu0 0
        %2090 = vmatpush1.bf16.msra.mxu0 0
        %2091 = vmatprep.subr.bf16.mxu0 0
        %2092 = vmatpush1.bf16.msra.mxu0 0
        %2093 = vmatprep.subr.bf16.mxu0 0
        %2094 = vmatpush1.bf16.msra.mxu0 0
        %2095 = vmatprep.subr.bf16.mxu0 0
        %2096 = vmatpush1.bf16.msra.mxu0 0
        %2097 = vmatprep.subr.bf16.mxu0 0
        %2098 = vmatpush1.bf16.msra.mxu0 %v2078
        %2099 = vmatprep.subr.bf16.mxu0 0
        %2100 = vmatpush2.bf16.msra.mxu0 0
        %2101 = vmatprep.subr.bf16.mxu0 0
        %2102 = vmatpush2.bf16.msra.mxu0 0
        %2103 = vmatprep.subr.bf16.mxu0 0
        %2104 = vmatpush2.bf16.msra.mxu0 0
        %2105 = vmatprep.subr.bf16.mxu0 0
        %2106 = vmatpush2.bf16.msra.mxu0 0
        %2107 = vmatprep.subr.bf16.mxu0 0
        %2108 = vmatpush2.bf16.msra.mxu0 0
        %2109 = vmatprep.subr.bf16.mxu0 0
        %2110 = vmatpush2.bf16.msra.mxu0 0
        %2111 = vmatprep.subr.bf16.mxu0 0
        %2112 = vmatpush2.bf16.msra.mxu0 0
        %2113 = vmatprep.subr.bf16.mxu0 0
        %2114 = vmatpush2.bf16.msra.mxu0 0
        %2115 = vmatprep.mubr.bf16.mxu0 0
        %2116 = vmatmul.mubr.bf16.gmra.mxu0 %v2081
        %v2117 = vpop.f32.mrf.mxu0
        %v2118 = vadd.f32 0.0, %v2117
        %v2119 = vpop.f32.mrf.mxu0
        %v2120 = vpop.f32.mrf.mxu0
        %v2121 = vpop.f32.mrf.mxu0
        %2122 = vdwg.mxu0
        %v2125 = vunpack.c.l.b16 %v2072
        %v2126 = vunpack.c.l.b16 %v2073
        %v2127 = vpack.c.b16 %v2126, %v2125
        %v2130 = vsel %vm1114, %v2069, 0
        %2132 = vmatprep.subr.bf16.mxu0 0
        %2133 = vmatpush1.bf16.msra.mxu0 0
        %2134 = vmatprep.subr.bf16.mxu0 0
        %2135 = vmatpush1.bf16.msra.mxu0 0
        %2136 = vmatprep.subr.bf16.mxu0 0
        %2137 = vmatpush1.bf16.msra.mxu0 0
        %2138 = vmatprep.subr.bf16.mxu0 0
        %2139 = vmatpush1.bf16.msra.mxu0 0
        %2140 = vmatprep.subr.bf16.mxu0 0
        %2141 = vmatpush1.bf16.msra.mxu0 0
        %2142 = vmatprep.subr.bf16.mxu0 0
        %2143 = vmatpush1.bf16.msra.mxu0 0
        %2144 = vmatprep.subr.bf16.mxu0 0
        %2145 = vmatpush1.bf16.msra.mxu0 0
        %2146 = vmatprep.subr.bf16.mxu0 0
        %2147 = vmatpush1.bf16.msra.mxu0 %v2127
        %2148 = vmatprep.subr.bf16.mxu0 0
        %2149 = vmatpush2.bf16.msra.mxu0 0
        %2150 = vmatprep.subr.bf16.mxu0 0
        %2151 = vmatpush2.bf16.msra.mxu0 0
        %2152 = vmatprep.subr.bf16.mxu0 0
        %2153 = vmatpush2.bf16.msra.mxu0 0
        %2154 = vmatprep.subr.bf16.mxu0 0
        %2155 = vmatpush2.bf16.msra.mxu0 0
        %2156 = vmatprep.subr.bf16.mxu0 0
        %2157 = vmatpush2.bf16.msra.mxu0 0
        %2158 = vmatprep.subr.bf16.mxu0 0
        %2159 = vmatpush2.bf16.msra.mxu0 0
        %2160 = vmatprep.subr.bf16.mxu0 0
        %2161 = vmatpush2.bf16.msra.mxu0 0
        %2162 = vmatprep.subr.bf16.mxu0 0
        %2163 = vmatpush2.bf16.msra.mxu0 0
        %2164 = vmatprep.mubr.bf16.mxu0 0
        %2165 = vmatmul.mubr.bf16.gmra.mxu0 %v2130
        %v2166 = vpop.f32.mrf.mxu0
        %v2167 = vadd.f32 0.0, %v2166
        %v2168 = vpop.f32.mrf.mxu0
        %v2169 = vpop.f32.mrf.mxu0
        %v2170 = vpop.f32.mrf.mxu0
        %2171 = vdwg.mxu0
        %v2172 = vadd.f32 %v2118, %v2167
        %v2173 = vadd.f32 %v1468, %v2172
        %v2174 = vld [vmem:[%s20 + $0x3] sm:$0x1]
        %v2175 = vlaneseq
        %v2176 = vshrl.u32 %v2175, 7
        %v2177 = vsub.s32 0, %v2176
        %v2178 = vrot.slane %v2174, %v2177
        %v2179 = vadd.f32 %v2173, %v2178
        %v2180 = vld [vmem:[%s20 + $0x4] sm:$0x1]
        %v2181 = vld [vmem:[%s20 + $0x5] sm:$0x1]
        %v2182 = vsel %vm759, %v2179, 0.0
        %2183 = vadd.xlane.f32.xlu0 %v2182
        %v2184 = vpop.xlane.xlu0 %2183
        %v2185 = vmul.f32 %v2184, %v1448
        %v2186 = vsub.f32 %v2179, %v2185
        %v2187 = vmul.f32 %v2186, %v2186
        %v2188 = vsel %vm759, %v2187, 0.0
        %2189 = vadd.xlane.f32.xlu0 %v2188
        %v2190 = vpop.xlane.xlu0 %2189
        %v2191 = vmul.f32 %v2190, %v1448
        %v2192 = vadd.f32 %v2191, 1e-05
        %v2193 = vrsqrt.pop %v2192
        %v2194 = vmul.f32 %v2186, %v2193
        %v2195 = vlaneseq
        %v2196 = vshrl.u32 %v2195, 7
        %v2197 = vsub.s32 0, %v2196
        %v2198 = vrot.slane %v2180, %v2197
        %v2199 = vmul.f32 %v2194, %v2198
        %v2200 = vlaneseq
        %v2201 = vshrl.u32 %v2200, 7
        %v2202 = vsub.s32 0, %v2201
        %v2203 = vrot.slane %v2181, %v2202
        %v2204 = vadd.f32 %v2199, %v2203
        %v2205 = vpack.c.bf16 %v2204, %v2204
        %v2206 = vld [vmem:[%s17] sm:$0xf]
        %v2207 = vld [vmem:[%s17 + $0x4] sm:$0xf]
        %v2208 = vld [vmem:[%s17 + $0x8] sm:$0xf]
        %v2209 = vld [vmem:[%s17 + $0xc] sm:$0xf]
        %v2210 = vld [vmem:[%s18] sm:$0x1]
        %v2212 = vlaneseq
        %v2213 = vshrl.u32 %v2212, 7
        %v2214 = vsub.s32 0, %v2213
        %v2215 = vrot.slane %v2210, %v2214
        %v2221 = vunpack.c.l.b16 %v2206
        %v2222 = vunpack.c.l.b16 %v2207
        %v2223 = vunpack.c.l.b16 %v2208
        %v2224 = vunpack.c.l.b16 %v2209
        %v2225 = vpack.c.b16 %v2222, %v2221
        %v2226 = vpack.c.b16 %v2224, %v2223
        %v2230 = vsel %vm759, %v2205, 0
        %2232 = vmatprep.subr.bf16.mxu0 0
        %2233 = vmatpush1.bf16.msra.mxu0 0
        %2234 = vmatprep.subr.bf16.mxu0 0
        %2235 = vmatpush1.bf16.msra.mxu0 0
        %2236 = vmatprep.subr.bf16.mxu0 0
        %2237 = vmatpush1.bf16.msra.mxu0 0
        %2238 = vmatprep.subr.bf16.mxu0 0
        %2239 = vmatpush1.bf16.msra.mxu0 0
        %2240 = vmatprep.subr.bf16.mxu0 0
        %2241 = vmatpush1.bf16.msra.mxu0 0
        %2242 = vmatprep.subr.bf16.mxu0 0
        %2243 = vmatpush1.bf16.msra.mxu0 0
        %2244 = vmatprep.subr.bf16.mxu0 0
        %2245 = vmatpush1.bf16.msra.mxu0 %v2226
        %2246 = vmatprep.subr.bf16.mxu0 0
        %2247 = vmatpush1.bf16.msra.mxu0 %v2225
        %2248 = vmatprep.subr.bf16.mxu0 0
        %2249 = vmatpush2.bf16.msra.mxu0 0
        %2250 = vmatprep.subr.bf16.mxu0 0
        %2251 = vmatpush2.bf16.msra.mxu0 0
        %2252 = vmatprep.subr.bf16.mxu0 0
        %2253 = vmatpush2.bf16.msra.mxu0 0
        %2254 = vmatprep.subr.bf16.mxu0 0
        %2255 = vmatpush2.bf16.msra.mxu0 0
        %2256 = vmatprep.subr.bf16.mxu0 0
        %2257 = vmatpush2.bf16.msra.mxu0 0
        %2258 = vmatprep.subr.bf16.mxu0 0
        %2259 = vmatpush2.bf16.msra.mxu0 0
        %2260 = vmatprep.subr.bf16.mxu0 0
        %2261 = vmatpush2.bf16.msra.mxu0 0
        %2262 = vmatprep.subr.bf16.mxu0 0
        %2263 = vmatpush2.bf16.msra.mxu0 0
        %2264 = vmatprep.mubr.bf16.mxu0 0
        %2265 = vmatmul.mubr.bf16.gmra.mxu0 %v2230
        %v2266 = vpop.f32.mrf.mxu0
        %v2267 = vadd.f32 %v2215, %v2266
        %v2268 = vpop.f32.mrf.mxu0
        %v2269 = vpop.f32.mrf.mxu0
        %v2270 = vpop.f32.mrf.mxu0
        %2271 = vdwg.mxu0
        %v2272 = vmax.f32 %v2267, 0.0
        %v2273 = vpack.c.bf16 %v2272, %v2272
        %v2274 = vld [vmem:[%s19] sm:$0xf]
        %v2275 = vld [vmem:[%s19 + $0x4] sm:$0xf]
        %v2276 = vld [vmem:[%s19 + $0x8] sm:$0xf]
        %v2277 = vld [vmem:[%s19 + $0xc] sm:$0xf]
        %v2278 = vld [vmem:[%s19 + $0x10] sm:$0xf]
        %v2279 = vld [vmem:[%s19 + $0x14] sm:$0xf]
        %v2280 = vld [vmem:[%s19 + $0x18] sm:$0xf]
        %v2281 = vld [vmem:[%s19 + $0x1c] sm:$0xf]
        %v2282 = vld [vmem:[%s19 + $0x20] sm:$0xf]
        %v2283 = vld [vmem:[%s19 + $0x24] sm:$0xf]
        %v2284 = vld [vmem:[%s19 + $0x28] sm:$0xf]
        %v2285 = vld [vmem:[%s19 + $0x2c] sm:$0xf]
        %v2286 = vld [vmem:[%s19 + $0x30] sm:$0xf]
        %v2287 = vld [vmem:[%s19 + $0x34] sm:$0xf]
        %v2288 = vld [vmem:[%s19 + $0x38] sm:$0xf]
        %v2289 = vld [vmem:[%s19 + $0x3c] sm:$0xf]
        %v2290 = vld [vmem:[%s20 + $0x6] sm:$0x1]
        %v2291 = vlaneseq
        %v2292 = vshrl.u32 %v2291, 7
        %v2293 = vsub.s32 0, %v2292
        %v2294 = vrot.slane %v2290, %v2293
        %v2311 = vunpack.c.l.b16 %v2274
        %v2312 = vunpack.c.l.b16 %v2275
        %v2313 = vunpack.c.l.b16 %v2276
        %v2314 = vunpack.c.l.b16 %v2277
        %v2315 = vunpack.c.l.b16 %v2278
        %v2316 = vunpack.c.l.b16 %v2279
        %v2317 = vunpack.c.l.b16 %v2280
        %v2318 = vunpack.c.l.b16 %v2281
        %v2319 = vunpack.c.l.b16 %v2282
        %v2320 = vunpack.c.l.b16 %v2283
        %v2321 = vunpack.c.l.b16 %v2284
        %v2322 = vunpack.c.l.b16 %v2285
        %v2323 = vunpack.c.l.b16 %v2286
        %v2324 = vunpack.c.l.b16 %v2287
        %v2325 = vunpack.c.l.b16 %v2288
        %v2326 = vunpack.c.l.b16 %v2289
        %v2327 = vpack.c.b16 %v2312, %v2311
        %v2328 = vpack.c.b16 %v2314, %v2313
        %v2329 = vpack.c.b16 %v2316, %v2315
        %v2330 = vpack.c.b16 %v2318, %v2317
        %v2331 = vpack.c.b16 %v2320, %v2319
        %v2332 = vpack.c.b16 %v2322, %v2321
        %v2333 = vpack.c.b16 %v2324, %v2323
        %v2334 = vpack.c.b16 %v2326, %v2325
        %2343 = vmatprep.subr.bf16.mxu0 0
        %2344 = vmatpush1.bf16.msra.mxu0 %v2334
        %2345 = vmatprep.subr.bf16.mxu0 0
        %2346 = vmatpush1.bf16.msra.mxu0 %v2333
        %2347 = vmatprep.subr.bf16.mxu0 0
        %2348 = vmatpush1.bf16.msra.mxu0 %v2332
        %2349 = vmatprep.subr.bf16.mxu0 0
        %2350 = vmatpush1.bf16.msra.mxu0 %v2331
        %2351 = vmatprep.subr.bf16.mxu0 0
        %2352 = vmatpush1.bf16.msra.mxu0 %v2330
        %2353 = vmatprep.subr.bf16.mxu0 0
        %2354 = vmatpush1.bf16.msra.mxu0 %v2329
        %2355 = vmatprep.subr.bf16.mxu0 0
        %2356 = vmatpush1.bf16.msra.mxu0 %v2328
        %2357 = vmatprep.subr.bf16.mxu0 0
        %2358 = vmatpush1.bf16.msra.mxu0 %v2327
        %2359 = vmatprep.subr.bf16.mxu0 0
        %2360 = vmatpush2.bf16.msra.mxu0 0
        %2361 = vmatprep.subr.bf16.mxu0 0
        %2362 = vmatpush2.bf16.msra.mxu0 0
        %2363 = vmatprep.subr.bf16.mxu0 0
        %2364 = vmatpush2.bf16.msra.mxu0 0
        %2365 = vmatprep.subr.bf16.mxu0 0
        %2366 = vmatpush2.bf16.msra.mxu0 0
        %2367 = vmatprep.subr.bf16.mxu0 0
        %2368 = vmatpush2.bf16.msra.mxu0 0
        %2369 = vmatprep.subr.bf16.mxu0 0
        %2370 = vmatpush2.bf16.msra.mxu0 0
        %2371 = vmatprep.subr.bf16.mxu0 0
        %2372 = vmatpush2.bf16.msra.mxu0 0
        %2373 = vmatprep.subr.bf16.mxu0 0
        %2374 = vmatpush2.bf16.msra.mxu0 0
        %2375 = vmatprep.mubr.bf16.mxu0 0
        %2376 = vmatmul.mubr.bf16.gmra.mxu0 %v2273
        %v2377 = vpop.f32.mrf.mxu0
        %v2378 = vadd.f32 %v2294, %v2377
        %v2379 = vpop.f32.mrf.mxu0
        %v2380 = vpop.f32.mrf.mxu0
        %v2381 = vpop.f32.mrf.mxu0
        %2382 = vdwg.mxu0
        %v2383 = vadd.f32 %v2204, %v2378
        %v2384 = vld [vmem:[%s20 + $0x7] sm:$0x1]
        %v2385 = vld [vmem:[%s20 + $0x8] sm:$0x1]
        %v2386 = vsel %vm759, %v2383, 0.0
        %2387 = vadd.xlane.f32.xlu0 %v2386
        %v2388 = vpop.xlane.xlu0 %2387
        %v2389 = vmul.f32 %v2388, %v1448
        %v2390 = vsub.f32 %v2383, %v2389
        %v2391 = vmul.f32 %v2390, %v2390
        %v2392 = vsel %vm759, %v2391, 0.0
        %2393 = vadd.xlane.f32.xlu0 %v2392
        %v2394 = vpop.xlane.xlu0 %2393
        %v2395 = vmul.f32 %v2394, %v1448
        %v2396 = vadd.f32 %v2395, 1e-05
        %v2397 = vrsqrt.pop %v2396
        %v2398 = vmul.f32 %v2390, %v2397
        %v2399 = vlaneseq
        %v2400 = vshrl.u32 %v2399, 7
        %v2401 = vsub.s32 0, %v2400
        %v2402 = vrot.slane %v2384, %v2401
        %v2403 = vmul.f32 %v2398, %v2402
        %v2404 = vlaneseq
        %v2405 = vshrl.u32 %v2404, 7
        %v2406 = vsub.s32 0, %v2405
        %v2407 = vrot.slane %v2385, %v2406
        %v2408 = vadd.f32 %v2403, %v2407
        %2409 = vst.msk [vmem:[%s695] sm:$0xff] %vm759, %v2408
        %s2410 = sand.u32 %s515, 1
        %s2411 = scalar_lea.sflag [#allocation3], %s2410
        %s2412 = sand.u32 %s515, 1
        %s2413 = smul.addr %s2412, 8
        %s2414 = scalar_lea.vmem [#allocation2], %s2413
        // Predicated region
        $region105: #{tpu_custom_call.1} parent=103 // pred_check
          %p2415 = pneg %p525
        $region106: #{tpu_custom_call.1} parent=103 // pred_check_branch
          %2417 = sbr.rel (%p2415) target = $region108
        $region107: #{tpu_custom_call.1} parent=103 // pred_region
          %s2419 = ssub.s32 128, 128
          %2420 = vsyncadd %s2411, %s2419
          %s2421 = sadd.s32 %s40, %s39
          %s2422 = smul.addr %s2421, 128
          %s2423 = scalar_lea.hbm %s21, %s2422
          %s2425 = sshll.u32 %s2414, 4
          %s2426 = int_to_ptr.vmem [resolvable:$true] %s2425
          %2428 = dma.vmem_to_hbm [thread:$0]  %s2426, 128, %s2423, %s2411
        $region108: #{tpu_custom_call.1} parent=103 // pred_fallthru
          _
      $region104: #{tpu_custom_call.1} parent=5 // pred_fallthru
        _
      %p2429 = scmp.le.s32.totalorder 2, %s30
      // Predicated region
      $region109: #{tpu_custom_call.1} parent=5 // pred_check
        %p2430 = pneg %p2429
      $region110: #{tpu_custom_call.1} parent=5 // pred_check_branch
        %2432 = sbr.rel (%p2430) target = $region112
      $region111: #{tpu_custom_call.1} parent=5 // pred_region
        %s2433 = ssub.s32 %s30, 2
        // Predicated region
        $region113: #{tpu_custom_call.1} parent=111 // pred_check
          %p2434 = pneg %p531
        $region114: #{tpu_custom_call.1} parent=111 // pred_check_branch
          %2436 = sbr.rel (%p2434) target = $region116
        $region115: #{tpu_custom_call.1} parent=111 // pred_region
          %s2437 = sand.u32 %s516, 1
          %s2438 = scalar_lea.sflag [#allocation3], %s2437
          %s2439 = sand.u32 %s516, 1
          %s2440 = smul.addr %s2439, 8
          %s2441 = scalar_lea.vmem [#allocation2], %s2440
          %2442 = dma.done %s2438, 128
        $region116: #{tpu_custom_call.1} parent=111 // pred_fallthru
          _
      $region112: #{tpu_custom_call.1} parent=5 // pred_fallthru
        _
    $region6: #{tpu_custom_call.1} parent=1 // loop_footer
      %s34 = sadd.s32 1, %s30
    $region7: #{tpu_custom_call.1} parent=1 // loop_footer_branch
      %29 = sbr.rel target = $region3
    $region8: #{tpu_custom_call.1} parent=1 // loop_exit
      _
    %2443 = vsyncpa [#allocation3], 1
    %s2444 = scalar_lea.sflag [#allocation3], 1
    %2445 = vsyncpa %s2444, 1

</llo_original>
